<compile_context>
chip_gen: v5e
topology: v5e:2x2
jax: 0.10.0
libtpu: 0.0.40
codegen_flags: <defaults>
</compile_context>

<pallas_src>
import jax
import jax.numpy as jnp
from jax.experimental import pallas as pl
from jax.experimental.pallas import tpu as pltpu


# ----------------------------------------------------------------------------
# Pallas kernel: full ConditionFlow.forward, transposed (features, batch)
# ----------------------------------------------------------------------------
def condition_flow_kernel(
    xT_ref, cT_ref,
    ce_w1T_ref, ce_b1T_ref, ce_w2T_ref, ce_b2T_ref,
    an_logsT_ref, an_biasT_ref,
    lin_wT_ref, lin_bT_ref,
    cp_wxT_ref, cp_wcT_ref, cp_binT_ref,
    cp_w1T_ref, cp_b1T_ref, cp_w2T_ref, cp_b2T_ref,
    cp_woutT_ref, cp_boutT_ref,
    out_maskT_ref,
    gz_mT_ref, gz_invsT_ref,
    zT_ref, logdetT_ref,
):
    f32 = jnp.float32
    xT = xT_ref[...]                      # (dim, bt)   f32
    condT = cT_ref[...]                   # (c_dim, bt) f32
    dim, bt = xT.shape
    num_layers = ce_w2T_ref.shape[0]
    num_blocks = cp_w1T_ref.shape[1]
    hidden = cp_binT_ref.shape[1]

    # Condition-only matmuls are loop-invariant: fuse them across all layers
    # into two GEMMs with num_layers*hidden (=128) output rows, then slice.
    hT_all = jnp.maximum(
        jnp.dot(ce_w1T_ref[...], condT, preferred_element_type=f32)
        + ce_b1T_ref[...], 0.0)                                   # (L*hidden, bt)
    cwcT_all = jnp.dot(cp_wcT_ref[...], condT,
                       preferred_element_type=f32)                # (L*hidden, bt)

    sum_logdet = jnp.zeros((1, bt), f32)

    # num_layers is small (4): static unroll.
    # TODO(synk): switch to lax.fori_loop with dynamic ref[l] indexing if the
    # flow is made much deeper (static unroll bloats vreg live ranges).
    for l in range(num_layers):
        lo, hi = l * hidden, (l + 1) * hidden

        # --- condition embedding MLP (2nd layer only; 1st layer hoisted) ----
        c_hidT = (jnp.dot(ce_w2T_ref[l], hT_all[lo:hi, :],
                          preferred_element_type=f32) + ce_b2T_ref[l])  # (2*dim, bt)
        # rows pre-permuted: [:dim] == original [:, 0::2] (scale drift),
        #                    [dim:] == original [:, 1::2] (bias drift)
        scale_driftT = c_hidT[:dim, :]
        bias_driftT = c_hidT[dim:, :]

        # --- conditional ActNorm --------------------------------------------
        sT = an_logsT_ref[l] + scale_driftT            # (dim, bt)
        xT = xT * jnp.exp(sT) + (an_biasT_ref[l] + bias_driftT)
        sum_logdet = sum_logdet + jnp.sum(sT, axis=0, keepdims=True)

        # --- LULinear (its constant log-det is added in the wrapper) ---------
        xT = jnp.dot(lin_wT_ref[l], xT, preferred_element_type=f32) + lin_bT_ref[l]

        # --- Additive coupling (identity mask pre-folded into cp_wx) ---------
        hcT = jnp.maximum(
            jnp.dot(cp_wxT_ref[l], xT, preferred_element_type=f32)
            + cwcT_all[lo:hi, :] + cp_binT_ref[l], 0.0)            # (hidden, bt)
        for k in range(num_blocks):
            tT = jnp.maximum(
                jnp.dot(cp_w1T_ref[l, k], hcT, preferred_element_type=f32)
                + cp_b1T_ref[l, k], 0.0)
            tT = jnp.maximum(
                jnp.dot(cp_w2T_ref[l, k], tT, preferred_element_type=f32)
                + cp_b2T_ref[l, k], 0.0)
            hcT = hcT + tT
        shiftT = (jnp.dot(cp_woutT_ref[l], hcT, preferred_element_type=f32)
                  + cp_boutT_ref[l])
        xT = xT + shiftT * out_maskT_ref[l]            # additive: logdet = 0

    # --- Gaussianize(zeros, x): mean / scale are constants (no matmul) -------
    zT = (xT - gz_mT_ref[...]) * gz_invsT_ref[...]

    # Lane-dense stores: (dim, bt) and (1, bt) with bt = 128 on the lane axis.
    zT_ref[...] = zT.astype(zT_ref.dtype)
    logdetT_ref[...] = sum_logdet.astype(logdetT_ref.dtype)


# ----------------------------------------------------------------------------
# Wrapper: parameter packing / constant folding (plain JAX) + pallas_call
# ----------------------------------------------------------------------------
def _resident_spec(a):
    nd = a.ndim
    return pl.BlockSpec(a.shape, lambda i, _nd=nd: (0,) * _nd)


def condition_flow_forward(x, cond, params, b_tile=128):
    f32 = jnp.float32
    B, dim = x.shape
    c_dim = cond.shape[1]
    L = params["mask"].shape[0]
    hidden = params["cp_bin"].shape[-1]

    swap = lambda a: jnp.swapaxes(a, -1, -2)

    # ---- layout plumbing: transpose weights for (features, batch) layout ----
    ce_w1T_all = jnp.transpose(params["ce_w1"], (0, 2, 1)).reshape(L * hidden, c_dim)
    ce_b1T_all = params["ce_b1"].reshape(L * hidden, 1)
    cp_wcT_all = jnp.transpose(params["cp_wc"], (0, 2, 1)).reshape(L * hidden, c_dim)

    # fold coupling identity mask into the cp_wx columns; pass output mask.
    id_mask = (params["mask"] < 0.0).astype(f32)                  # (L, 1, dim)
    cp_wxT_masked = swap(params["cp_wx"]) * id_mask               # (L, hidden, dim)
    out_maskT = swap(1.0 - id_mask)                               # (L, dim, 1)

    # Gaussianize(zeros, x): m / logs come straight from the bias.
    gz_mT = params["gz_b"][:, :dim].reshape(dim, 1)
    gz_logs = params["gz_b"][:, dim:]
    gz_invsT = jnp.exp(-gz_logs).reshape(dim, 1)

    # data-independent part of the log-det (LULinear + Gaussianize).
    const_logdet = jnp.sum(params["lin_logdiag"]) - jnp.sum(gz_logs)

    weights = (
        ce_w1T_all, ce_b1T_all, swap(params["ce_w2"]), swap(params["ce_b2"]),
        swap(params["an_logs"]), swap(params["an_bias"]),
        swap(params["lin_w"]), swap(params["lin_b"]),
        cp_wxT_masked, cp_wcT_all, swap(params["cp_bin"]),
        swap(params["cp_w1"]), swap(params["cp_b1"]),
        swap(params["cp_w2"]), swap(params["cp_b2"]),
        swap(params["cp_wout"]), swap(params["cp_bout"]),
        out_maskT, gz_mT, gz_invsT,
    )

    # ---- batch tiling: pad batch to a multiple of b_tile, transpose inputs ---
    Bp = ((B + b_tile - 1) // b_tile) * b_tile
    xT = x.astype(f32).T
    cT = cond.astype(f32).T
    if Bp != B:
        xT = jnp.pad(xT, ((0, 0), (0, Bp - B)))
        cT = jnp.pad(cT, ((0, 0), (0, Bp - B)))
    grid = (Bp // b_tile,)

    in_specs = (
        [pl.BlockSpec((dim, b_tile), lambda i: (0, i)),
         pl.BlockSpec((c_dim, b_tile), lambda i: (0, i))]
        + [_resident_spec(w) for w in weights]       # weights stay VMEM-resident
    )
    out_specs = (
        pl.BlockSpec((dim, b_tile), lambda i: (0, i)),
        pl.BlockSpec((1, b_tile), lambda i: (0, i)),
    )
    out_shape = (
        jax.ShapeDtypeStruct((dim, Bp), f32),
        jax.ShapeDtypeStruct((1, Bp), f32),
    )

    zT, logdetT = pl.pallas_call(
        condition_flow_kernel,
        grid=grid,
        in_specs=in_specs,
        out_specs=out_specs,
        out_shape=out_shape,
        compiler_params=pltpu.CompilerParams(
            dimension_semantics=("parallel",)),       # engages 2nd TC on v7x
    )(xT, cT, *weights)

    z = zT[:, :B].T
    logdet = logdetT[0, :B] + const_logdet
    return z, logdet


# ----------------------------------------------------------------------------
# Deterministic parameter construction (synthetic; no checkpoint load)
# ----------------------------------------------------------------------------
def init_params(key, dim, hidden_dim, c_dim, num_layers, num_blocks):
    f32 = jnp.float32
    keys = jax.random.split(key, 256)
    ctr = iter(range(256))

    def nrm(shape, scale):
        return (scale * jax.random.normal(keys[next(ctr)], shape)).astype(f32)

    # permutation: interleaved [s0,b0,s1,b1,...] -> [s..., b...]
    perm = jnp.concatenate([jnp.arange(0, 2 * dim, 2), jnp.arange(1, 2 * dim, 2)])

    base_mask = jnp.ones((dim,), f32).at[::2].set(-1.0)

    masks = []
    ce_w1, ce_b1, ce_w2, ce_b2 = [], [], [], []
    an_logs, an_bias = [], []
    lin_w, lin_b, lin_logdiag = [], [], []
    cp_wx, cp_wc, cp_bin = [], [], []
    cp_w1, cp_b1, cp_w2, cp_b2 = [], [], [], []
    cp_wout, cp_bout = [], []

    mask = base_mask
    for _ in range(num_layers):
        masks.append(mask[None, :])
        mask = mask * -1.0

        # condition embedding MLP (output columns interleaved, then permuted)
        ce_w1.append(nrm((c_dim, hidden_dim), 1.0 / c_dim ** 0.5))
        ce_b1.append(nrm((1, hidden_dim), 0.05))
        w2 = nrm((hidden_dim, 2 * dim), 0.1 / hidden_dim ** 0.5)
        b2 = nrm((1, 2 * dim), 0.05)
        ce_w2.append(w2[:, perm])
        ce_b2.append(b2[:, perm])

        # ActNorm
        an_logs.append(nrm((1, dim), 0.05))
        an_bias.append(nrm((1, dim), 0.05))

        # LULinear: W = L @ U  (P = I), applied as y = x @ W.T + b
        L_mat = jnp.eye(dim, dtype=f32) + jnp.tril(nrm((dim, dim), 0.1), k=-1)
        u_diag = 1.0 + nrm((dim,), 0.1)
        U_mat = jnp.diag(u_diag) + jnp.triu(nrm((dim, dim), 0.1), k=1)
        W = (L_mat @ U_mat).astype(f32)
        lin_w.append(W.T)
        lin_b.append(nrm((1, dim), 0.05))
        lin_logdiag.append(jnp.log(jnp.abs(u_diag))[None, :])

        # coupling residual net (input weight split: x-part / condition-part)
        cp_wx.append(nrm((dim, hidden_dim), 1.0 / dim ** 0.5))
        cp_wc.append(nrm((c_dim, hidden_dim), 1.0 / c_dim ** 0.5))
        cp_bin.append(nrm((1, hidden_dim), 0.05))
        w1s, b1s, w2s, b2s = [], [], [], []
        for _ in range(num_blocks):
            w1s.append(nrm((hidden_dim, hidden_dim), 0.5 / hidden_dim ** 0.5))
            b1s.append(nrm((1, hidden_dim), 0.05))
            w2s.append(nrm((hidden_dim, hidden_dim), 0.5 / hidden_dim ** 0.5))
            b2s.append(nrm((1, hidden_dim), 0.05))
        cp_w1.append(jnp.stack(w1s))
        cp_b1.append(jnp.stack(b1s))
        cp_w2.append(jnp.stack(w2s))
        cp_b2.append(jnp.stack(b2s))
        cp_wout.append(nrm((hidden_dim, dim), 0.1 / hidden_dim ** 0.5))
        cp_bout.append(nrm((1, dim), 0.05))

    gz_w = nrm((dim, 2 * dim), 0.1)[:, perm]
    gz_b = nrm((1, 2 * dim), 0.05)[:, perm]

    return dict(
        mask=jnp.stack(masks),
        ce_w1=jnp.stack(ce_w1), ce_b1=jnp.stack(ce_b1),
        ce_w2=jnp.stack(ce_w2), ce_b2=jnp.stack(ce_b2),
        an_logs=jnp.stack(an_logs), an_bias=jnp.stack(an_bias),
        lin_w=jnp.stack(lin_w), lin_b=jnp.stack(lin_b),
        lin_logdiag=jnp.stack(lin_logdiag),
        cp_wx=jnp.stack(cp_wx), cp_wc=jnp.stack(cp_wc), cp_bin=jnp.stack(cp_bin),
        cp_w1=jnp.stack(cp_w1), cp_b1=jnp.stack(cp_b1),
        cp_w2=jnp.stack(cp_w2), cp_b2=jnp.stack(cp_b2),
        cp_wout=jnp.stack(cp_wout), cp_bout=jnp.stack(cp_bout),
        gz_w=gz_w, gz_b=gz_b,
    )


# ----------------------------------------------------------------------------
# Pure-JAX reference (same math, untransposed) to check the Pallas lowering
# ----------------------------------------------------------------------------
def condition_flow_reference(x, cond, p):
    dim = x.shape[1]
    sum_logdet = jnp.zeros((x.shape[0],), jnp.float32)
    L = p["mask"].shape[0]
    NB = p["cp_w1"].shape[1]
    for l in range(L):
        h = jnp.maximum(cond @ p["ce_w1"][l] + p["ce_b1"][l], 0.0)
        c_hidden = h @ p["ce_w2"][l] + p["ce_b2"][l]
        scale_drift, bias_drift = c_hidden[:, :dim], c_hidden[:, dim:]
        s = p["an_logs"][l] + scale_drift
        b = p["an_bias"][l] + bias_drift
        x = x * jnp.exp(s) + b
        sum_logdet = sum_logdet + jnp.sum(s, axis=-1)
        x = x @ p["lin_w"][l] + p["lin_b"][l]
        sum_logdet = sum_logdet + jnp.sum(p["lin_logdiag"][l])
        id_mask = (p["mask"][l] < 0.0).astype(jnp.float32)
        x_id = x * id_mask
        hc = jnp.maximum(x_id @ p["cp_wx"][l] + cond @ p["cp_wc"][l] + p["cp_bin"][l], 0.0)
        for k in range(NB):
            t = jnp.maximum(hc @ p["cp_w1"][l, k] + p["cp_b1"][l, k], 0.0)
            t = jnp.maximum(t @ p["cp_w2"][l, k] + p["cp_b2"][l, k], 0.0)
            hc = hc + t
        shift = hc @ p["cp_wout"][l] + p["cp_bout"][l]
        x = x + shift * (1.0 - id_mask)
    hg = jnp.zeros_like(x) @ p["gz_w"] + p["gz_b"]
    m, logs = hg[:, :dim], hg[:, dim:]
    z = (x - m) * jnp.exp(-logs)
    sum_logdet = sum_logdet - jnp.sum(logs, axis=-1)
    return z, sum_logdet


if __name__ == "__main__":
    # B=256 with B_TILE=128 -> 2-step "parallel" batch grid (keeps both v7x
    # TensorCores busy) while every tensor stays tiny (a few hundred KiB).
    B, DIM, HIDDEN, CDIM = 256, 8, 32, 16
    NUM_LAYERS, NUM_BLOCKS = 4, 2

    key = jax.random.PRNGKey(0)
    kx, kc, kp = jax.random.split(key, 3)
    x = jax.random.normal(kx, (B, DIM), dtype=jnp.float32)
    cond = jax.random.normal(kc, (B, CDIM), dtype=jnp.float32)
    params = init_params(kp, DIM, HIDDEN, CDIM, NUM_LAYERS, NUM_BLOCKS)

    z, logdet = condition_flow_forward(x, cond, params)
    jax.block_until_ready((z, logdet))

    with jax.default_matmul_precision("float32"):
        z_ref, logdet_ref = condition_flow_reference(x, cond, params)

    assert z.shape == (B, DIM) and logdet.shape == (B,)
    assert jnp.allclose(z, z_ref, atol=1e-2, rtol=1e-2)
    assert jnp.allclose(logdet, logdet_ref, atol=1e-2, rtol=1e-2)

    # TODO(synk): inverse()/sampling()/log_prob() paths and dropout>0 are not
    # implemented (dropout_probability=0.0 in the reference config).
    print("KERNEL_OK")
</pallas_src>

<mosaic_0001>
module attributes {stable_mosaic.version = 11 : i64} {
  func.func @condition_flow_kernel(%arg0: i32, %arg1: memref<8x128xf32, #tpu.memory_space<vmem>>, %arg2: memref<16x128xf32, #tpu.memory_space<vmem>>, %arg3: memref<128x16xf32, #tpu.memory_space<vmem>>, %arg4: memref<128x1xf32, #tpu.memory_space<vmem>>, %arg5: memref<4x16x32xf32, #tpu.memory_space<vmem>>, %arg6: memref<4x16x1xf32, #tpu.memory_space<vmem>>, %arg7: memref<4x8x1xf32, #tpu.memory_space<vmem>>, %arg8: memref<4x8x1xf32, #tpu.memory_space<vmem>>, %arg9: memref<4x8x8xf32, #tpu.memory_space<vmem>>, %arg10: memref<4x8x1xf32, #tpu.memory_space<vmem>>, %arg11: memref<4x32x8xf32, #tpu.memory_space<vmem>>, %arg12: memref<128x16xf32, #tpu.memory_space<vmem>>, %arg13: memref<4x32x1xf32, #tpu.memory_space<vmem>>, %arg14: memref<4x2x32x32xf32, #tpu.memory_space<vmem>>, %arg15: memref<4x2x32x1xf32, #tpu.memory_space<vmem>>, %arg16: memref<4x2x32x32xf32, #tpu.memory_space<vmem>>, %arg17: memref<4x2x32x1xf32, #tpu.memory_space<vmem>>, %arg18: memref<4x8x32xf32, #tpu.memory_space<vmem>>, %arg19: memref<4x8x1xf32, #tpu.memory_space<vmem>>, %arg20: memref<4x8x1xf32, #tpu.memory_space<vmem>>, %arg21: memref<8x1xf32, #tpu.memory_space<vmem>>, %arg22: memref<8x1xf32, #tpu.memory_space<vmem>>, %arg23: memref<8x128xf32, #tpu.memory_space<vmem>>, %arg24: memref<1x128xf32, #tpu.memory_space<vmem>>) attributes {dimension_semantics = [#tpu.dimension_semantics<parallel>], iteration_bounds = array<i64: 2>, scalar_prefetch = 0 : i64, scratch_operands = 0 : i64, tpu.core_type = #tpu.core_type<tc>, window_params = [{transform_indices = @transform_0, window_bounds = array<i64: 8, 128>}, {transform_indices = @transform_1, window_bounds = array<i64: 16, 128>}, {pipeline_mode = #tpu.pipeline_mode<synchronous>, transform_indices = @transform_2, window_bounds = array<i64: 128, 16>}, {pipeline_mode = #tpu.pipeline_mode<synchronous>, transform_indices = @transform_3, window_bounds = array<i64: 128, 1>}, {pipeline_mode = #tpu.pipeline_mode<synchronous>, transform_indices = @transform_4, window_bounds = array<i64: 4, 16, 32>}, {pipeline_mode = #tpu.pipeline_mode<synchronous>, transform_indices = @transform_5, window_bounds = array<i64: 4, 16, 1>}, {pipeline_mode = #tpu.pipeline_mode<synchronous>, transform_indices = @transform_6, window_bounds = array<i64: 4, 8, 1>}, {pipeline_mode = #tpu.pipeline_mode<synchronous>, transform_indices = @transform_7, window_bounds = array<i64: 4, 8, 1>}, {pipeline_mode = #tpu.pipeline_mode<synchronous>, transform_indices = @transform_8, window_bounds = array<i64: 4, 8, 8>}, {pipeline_mode = #tpu.pipeline_mode<synchronous>, transform_indices = @transform_9, window_bounds = array<i64: 4, 8, 1>}, {pipeline_mode = #tpu.pipeline_mode<synchronous>, transform_indices = @transform_10, window_bounds = array<i64: 4, 32, 8>}, {pipeline_mode = #tpu.pipeline_mode<synchronous>, transform_indices = @transform_11, window_bounds = array<i64: 128, 16>}, {pipeline_mode = #tpu.pipeline_mode<synchronous>, transform_indices = @transform_12, window_bounds = array<i64: 4, 32, 1>}, {pipeline_mode = #tpu.pipeline_mode<synchronous>, transform_indices = @transform_13, window_bounds = array<i64: 4, 2, 32, 32>}, {pipeline_mode = #tpu.pipeline_mode<synchronous>, transform_indices = @transform_14, window_bounds = array<i64: 4, 2, 32, 1>}, {pipeline_mode = #tpu.pipeline_mode<synchronous>, transform_indices = @transform_15, window_bounds = array<i64: 4, 2, 32, 32>}, {pipeline_mode = #tpu.pipeline_mode<synchronous>, transform_indices = @transform_16, window_bounds = array<i64: 4, 2, 32, 1>}, {pipeline_mode = #tpu.pipeline_mode<synchronous>, transform_indices = @transform_17, window_bounds = array<i64: 4, 8, 32>}, {pipeline_mode = #tpu.pipeline_mode<synchronous>, transform_indices = @transform_18, window_bounds = array<i64: 4, 8, 1>}, {pipeline_mode = #tpu.pipeline_mode<synchronous>, transform_indices = @transform_19, window_bounds = array<i64: 4, 8, 1>}, {pipeline_mode = #tpu.pipeline_mode<synchronous>, transform_indices = @transform_20, window_bounds = array<i64: 8, 1>}, {pipeline_mode = #tpu.pipeline_mode<synchronous>, transform_indices = @transform_21, window_bounds = array<i64: 8, 1>}, {transform_indices = @transform_22, window_bounds = array<i64: 8, 128>}, {transform_indices = @transform_23, window_bounds = array<i64: 1, 128>}]} {
    %c0 = arith.constant 0 : index
    %c0_0 = arith.constant 0 : index
    %0 = vector.load %arg1[%c0, %c0_0] : memref<8x128xf32, #tpu.memory_space<vmem>>, vector<8x128xf32>
    %c0_1 = arith.constant 0 : index
    %c0_2 = arith.constant 0 : index
    %1 = vector.load %arg2[%c0_1, %c0_2] : memref<16x128xf32, #tpu.memory_space<vmem>>, vector<16x128xf32>
    %c0_3 = arith.constant 0 : index
    %c0_4 = arith.constant 0 : index
    %2 = vector.load %arg3[%c0_3, %c0_4] : memref<128x16xf32, #tpu.memory_space<vmem>>, vector<128x16xf32>
    %cst = arith.constant dense<0.000000e+00> : vector<128x128xf32>
    %3 = tpu.matmul %2, %1, %cst {dimension_numbers = #tpu.dot_dimension_numbers<[1], [0], [0], [1], [0, 0, 1, 1], [], []>} : vector<128x16xf32>, vector<16x128xf32>, vector<128x128xf32> -> vector<128x128xf32>
    %c0_5 = arith.constant 0 : index
    %c0_6 = arith.constant 0 : index
    %4 = vector.load %arg4[%c0_5, %c0_6] : memref<128x1xf32, #tpu.memory_space<vmem>>, vector<128x1xf32>
    %5 = vector.broadcast %4 : vector<128x1xf32> to vector<128x128xf32>
    %6 = arith.addf %3, %5 : vector<128x128xf32>
    %cst_7 = arith.constant 0.000000e+00 : f32
    %7 = vector.broadcast %cst_7 : f32 to vector<128x128xf32>
    %8 = arith.maximumf %6, %7 : vector<128x128xf32>
    %c0_8 = arith.constant 0 : index
    %c0_9 = arith.constant 0 : index
    %9 = vector.load %arg12[%c0_8, %c0_9] : memref<128x16xf32, #tpu.memory_space<vmem>>, vector<128x16xf32>
    %cst_10 = arith.constant dense<0.000000e+00> : vector<128x128xf32>
    %10 = tpu.matmul %9, %1, %cst_10 {dimension_numbers = #tpu.dot_dimension_numbers<[1], [0], [0], [1], [0, 0, 1, 1], [], []>} : vector<128x16xf32>, vector<16x128xf32>, vector<128x128xf32> -> vector<128x128xf32>
    %cst_11 = arith.constant 0.000000e+00 : f32
    %11 = vector.broadcast %cst_11 : f32 to vector<1x128xf32>
    %c0_12 = arith.constant 0 : index
    %c0_13 = arith.constant 0 : index
    %c0_14 = arith.constant 0 : index
    %12 = vector.load %arg5[%c0_12, %c0_13, %c0_14] : memref<4x16x32xf32, #tpu.memory_space<vmem>>, vector<1x16x32xf32>
    %13 = vector.shape_cast %12 : vector<1x16x32xf32> to vector<16x32xf32>
    %14 = vector.extract_strided_slice %8 {offsets = [0, 0], sizes = [32, 128], strides = [1, 1]} : vector<128x128xf32> to vector<32x128xf32>
    %cst_15 = arith.constant dense<0.000000e+00> : vector<16x128xf32>
    %15 = tpu.matmul %13, %14, %cst_15 {dimension_numbers = #tpu.dot_dimension_numbers<[1], [0], [0], [1], [0, 0, 1, 1], [], []>} : vector<16x32xf32>, vector<32x128xf32>, vector<16x128xf32> -> vector<16x128xf32>
    %c0_16 = arith.constant 0 : index
    %c0_17 = arith.constant 0 : index
    %c0_18 = arith.constant 0 : index
    %16 = vector.load %arg6[%c0_16, %c0_17, %c0_18] : memref<4x16x1xf32, #tpu.memory_space<vmem>>, vector<1x16x1xf32>
    %17 = vector.shape_cast %16 : vector<1x16x1xf32> to vector<16x1xf32>
    %18 = vector.broadcast %17 : vector<16x1xf32> to vector<16x128xf32>
    %19 = arith.addf %15, %18 : vector<16x128xf32>
    %20 = vector.extract_strided_slice %19 {offsets = [0, 0], sizes = [8, 128], strides = [1, 1]} : vector<16x128xf32> to vector<8x128xf32>
    %21 = vector.extract_strided_slice %19 {offsets = [8, 0], sizes = [8, 128], strides = [1, 1]} : vector<16x128xf32> to vector<8x128xf32>
    %c0_19 = arith.constant 0 : index
    %c0_20 = arith.constant 0 : index
    %c0_21 = arith.constant 0 : index
    %22 = vector.load %arg7[%c0_19, %c0_20, %c0_21] : memref<4x8x1xf32, #tpu.memory_space<vmem>>, vector<1x8x1xf32>
    %23 = vector.shape_cast %22 : vector<1x8x1xf32> to vector<8x1xf32>
    %24 = vector.broadcast %23 : vector<8x1xf32> to vector<8x128xf32>
    %25 = arith.addf %24, %20 : vector<8x128xf32>
    %26 = math.exp %25 : vector<8x128xf32>
    %27 = arith.mulf %0, %26 : vector<8x128xf32>
    %c0_22 = arith.constant 0 : index
    %c0_23 = arith.constant 0 : index
    %c0_24 = arith.constant 0 : index
    %28 = vector.load %arg8[%c0_22, %c0_23, %c0_24] : memref<4x8x1xf32, #tpu.memory_space<vmem>>, vector<1x8x1xf32>
    %29 = vector.shape_cast %28 : vector<1x8x1xf32> to vector<8x1xf32>
    %30 = vector.broadcast %29 : vector<8x1xf32> to vector<8x128xf32>
    %31 = arith.addf %30, %21 : vector<8x128xf32>
    %32 = arith.addf %27, %31 : vector<8x128xf32>
    %cst_25 = arith.constant dense<0.000000e+00> : vector<128xf32>
    %33 = vector.multi_reduction <add>, %25, %cst_25 [0] : vector<8x128xf32> to vector<128xf32>
    %34 = vector.shape_cast %33 : vector<128xf32> to vector<1x128xf32>
    %35 = arith.addf %11, %34 : vector<1x128xf32>
    %c0_26 = arith.constant 0 : index
    %c0_27 = arith.constant 0 : index
    %c0_28 = arith.constant 0 : index
    %36 = vector.load %arg9[%c0_26, %c0_27, %c0_28] : memref<4x8x8xf32, #tpu.memory_space<vmem>>, vector<1x8x8xf32>
    %37 = vector.shape_cast %36 : vector<1x8x8xf32> to vector<8x8xf32>
    %cst_29 = arith.constant dense<0.000000e+00> : vector<8x128xf32>
    %38 = tpu.matmul %37, %32, %cst_29 {dimension_numbers = #tpu.dot_dimension_numbers<[1], [0], [0], [1], [0, 0, 1, 1], [], []>} : vector<8x8xf32>, vector<8x128xf32>, vector<8x128xf32> -> vector<8x128xf32>
    %c0_30 = arith.constant 0 : index
    %c0_31 = arith.constant 0 : index
    %c0_32 = arith.constant 0 : index
    %39 = vector.load %arg10[%c0_30, %c0_31, %c0_32] : memref<4x8x1xf32, #tpu.memory_space<vmem>>, vector<1x8x1xf32>
    %40 = vector.shape_cast %39 : vector<1x8x1xf32> to vector<8x1xf32>
    %41 = vector.broadcast %40 : vector<8x1xf32> to vector<8x128xf32>
    %42 = arith.addf %38, %41 : vector<8x128xf32>
    %c0_33 = arith.constant 0 : index
    %c0_34 = arith.constant 0 : index
    %c0_35 = arith.constant 0 : index
    %43 = vector.load %arg11[%c0_33, %c0_34, %c0_35] : memref<4x32x8xf32, #tpu.memory_space<vmem>>, vector<1x32x8xf32>
    %44 = vector.shape_cast %43 : vector<1x32x8xf32> to vector<32x8xf32>
    %cst_36 = arith.constant dense<0.000000e+00> : vector<32x128xf32>
    %45 = tpu.matmul %44, %42, %cst_36 {dimension_numbers = #tpu.dot_dimension_numbers<[1], [0], [0], [1], [0, 0, 1, 1], [], []>} : vector<32x8xf32>, vector<8x128xf32>, vector<32x128xf32> -> vector<32x128xf32>
    %46 = vector.extract_strided_slice %10 {offsets = [0, 0], sizes = [32, 128], strides = [1, 1]} : vector<128x128xf32> to vector<32x128xf32>
    %47 = arith.addf %45, %46 : vector<32x128xf32>
    %c0_37 = arith.constant 0 : index
    %c0_38 = arith.constant 0 : index
    %c0_39 = arith.constant 0 : index
    %48 = vector.load %arg13[%c0_37, %c0_38, %c0_39] : memref<4x32x1xf32, #tpu.memory_space<vmem>>, vector<1x32x1xf32>
    %49 = vector.shape_cast %48 : vector<1x32x1xf32> to vector<32x1xf32>
    %50 = vector.broadcast %49 : vector<32x1xf32> to vector<32x128xf32>
    %51 = arith.addf %47, %50 : vector<32x128xf32>
    %cst_40 = arith.constant 0.000000e+00 : f32
    %52 = vector.broadcast %cst_40 : f32 to vector<32x128xf32>
    %53 = arith.maximumf %51, %52 : vector<32x128xf32>
    %c0_41 = arith.constant 0 : index
    %c0_42 = arith.constant 0 : index
    %c0_43 = arith.constant 0 : index
    %c0_44 = arith.constant 0 : index
    %54 = vector.load %arg14[%c0_41, %c0_42, %c0_43, %c0_44] : memref<4x2x32x32xf32, #tpu.memory_space<vmem>>, vector<1x1x32x32xf32>
    %55 = vector.shape_cast %54 : vector<1x1x32x32xf32> to vector<32x32xf32>
    %cst_45 = arith.constant dense<0.000000e+00> : vector<32x128xf32>
    %56 = tpu.matmul %55, %53, %cst_45 {dimension_numbers = #tpu.dot_dimension_numbers<[1], [0], [0], [1], [0, 0, 1, 1], [], []>} : vector<32x32xf32>, vector<32x128xf32>, vector<32x128xf32> -> vector<32x128xf32>
    %c0_46 = arith.constant 0 : index
    %c0_47 = arith.constant 0 : index
    %c0_48 = arith.constant 0 : index
    %c0_49 = arith.constant 0 : index
    %57 = vector.load %arg15[%c0_46, %c0_47, %c0_48, %c0_49] : memref<4x2x32x1xf32, #tpu.memory_space<vmem>>, vector<1x1x32x1xf32>
    %58 = vector.shape_cast %57 : vector<1x1x32x1xf32> to vector<32x1xf32>
    %59 = vector.broadcast %58 : vector<32x1xf32> to vector<32x128xf32>
    %60 = arith.addf %56, %59 : vector<32x128xf32>
    %cst_50 = arith.constant 0.000000e+00 : f32
    %61 = vector.broadcast %cst_50 : f32 to vector<32x128xf32>
    %62 = arith.maximumf %60, %61 : vector<32x128xf32>
    %c0_51 = arith.constant 0 : index
    %c0_52 = arith.constant 0 : index
    %c0_53 = arith.constant 0 : index
    %c0_54 = arith.constant 0 : index
    %63 = vector.load %arg16[%c0_51, %c0_52, %c0_53, %c0_54] : memref<4x2x32x32xf32, #tpu.memory_space<vmem>>, vector<1x1x32x32xf32>
    %64 = vector.shape_cast %63 : vector<1x1x32x32xf32> to vector<32x32xf32>
    %cst_55 = arith.constant dense<0.000000e+00> : vector<32x128xf32>
    %65 = tpu.matmul %64, %62, %cst_55 {dimension_numbers = #tpu.dot_dimension_numbers<[1], [0], [0], [1], [0, 0, 1, 1], [], []>} : vector<32x32xf32>, vector<32x128xf32>, vector<32x128xf32> -> vector<32x128xf32>
    %c0_56 = arith.constant 0 : index
    %c0_57 = arith.constant 0 : index
    %c0_58 = arith.constant 0 : index
    %c0_59 = arith.constant 0 : index
    %66 = vector.load %arg17[%c0_56, %c0_57, %c0_58, %c0_59] : memref<4x2x32x1xf32, #tpu.memory_space<vmem>>, vector<1x1x32x1xf32>
    %67 = vector.shape_cast %66 : vector<1x1x32x1xf32> to vector<32x1xf32>
    %68 = vector.broadcast %67 : vector<32x1xf32> to vector<32x128xf32>
    %69 = arith.addf %65, %68 : vector<32x128xf32>
    %cst_60 = arith.constant 0.000000e+00 : f32
    %70 = vector.broadcast %cst_60 : f32 to vector<32x128xf32>
    %71 = arith.maximumf %69, %70 : vector<32x128xf32>
    %72 = arith.addf %53, %71 : vector<32x128xf32>
    %c0_61 = arith.constant 0 : index
    %c1 = arith.constant 1 : index
    %c0_62 = arith.constant 0 : index
    %c0_63 = arith.constant 0 : index
    %73 = vector.load %arg14[%c0_61, %c1, %c0_62, %c0_63] : memref<4x2x32x32xf32, #tpu.memory_space<vmem>>, vector<1x1x32x32xf32>
    %74 = vector.shape_cast %73 : vector<1x1x32x32xf32> to vector<32x32xf32>
    %cst_64 = arith.constant dense<0.000000e+00> : vector<32x128xf32>
    %75 = tpu.matmul %74, %72, %cst_64 {dimension_numbers = #tpu.dot_dimension_numbers<[1], [0], [0], [1], [0, 0, 1, 1], [], []>} : vector<32x32xf32>, vector<32x128xf32>, vector<32x128xf32> -> vector<32x128xf32>
    %c0_65 = arith.constant 0 : index
    %c1_66 = arith.constant 1 : index
    %c0_67 = arith.constant 0 : index
    %c0_68 = arith.constant 0 : index
    %76 = vector.load %arg15[%c0_65, %c1_66, %c0_67, %c0_68] : memref<4x2x32x1xf32, #tpu.memory_space<vmem>>, vector<1x1x32x1xf32>
    %77 = vector.shape_cast %76 : vector<1x1x32x1xf32> to vector<32x1xf32>
    %78 = vector.broadcast %77 : vector<32x1xf32> to vector<32x128xf32>
    %79 = arith.addf %75, %78 : vector<32x128xf32>
    %cst_69 = arith.constant 0.000000e+00 : f32
    %80 = vector.broadcast %cst_69 : f32 to vector<32x128xf32>
    %81 = arith.maximumf %79, %80 : vector<32x128xf32>
    %c0_70 = arith.constant 0 : index
    %c1_71 = arith.constant 1 : index
    %c0_72 = arith.constant 0 : index
    %c0_73 = arith.constant 0 : index
    %82 = vector.load %arg16[%c0_70, %c1_71, %c0_72, %c0_73] : memref<4x2x32x32xf32, #tpu.memory_space<vmem>>, vector<1x1x32x32xf32>
    %83 = vector.shape_cast %82 : vector<1x1x32x32xf32> to vector<32x32xf32>
    %cst_74 = arith.constant dense<0.000000e+00> : vector<32x128xf32>
    %84 = tpu.matmul %83, %81, %cst_74 {dimension_numbers = #tpu.dot_dimension_numbers<[1], [0], [0], [1], [0, 0, 1, 1], [], []>} : vector<32x32xf32>, vector<32x128xf32>, vector<32x128xf32> -> vector<32x128xf32>
    %c0_75 = arith.constant 0 : index
    %c1_76 = arith.constant 1 : index
    %c0_77 = arith.constant 0 : index
    %c0_78 = arith.constant 0 : index
    %85 = vector.load %arg17[%c0_75, %c1_76, %c0_77, %c0_78] : memref<4x2x32x1xf32, #tpu.memory_space<vmem>>, vector<1x1x32x1xf32>
    %86 = vector.shape_cast %85 : vector<1x1x32x1xf32> to vector<32x1xf32>
    %87 = vector.broadcast %86 : vector<32x1xf32> to vector<32x128xf32>
    %88 = arith.addf %84, %87 : vector<32x128xf32>
    %cst_79 = arith.constant 0.000000e+00 : f32
    %89 = vector.broadcast %cst_79 : f32 to vector<32x128xf32>
    %90 = arith.maximumf %88, %89 : vector<32x128xf32>
    %91 = arith.addf %72, %90 : vector<32x128xf32>
    %c0_80 = arith.constant 0 : index
    %c0_81 = arith.constant 0 : index
    %c0_82 = arith.constant 0 : index
    %92 = vector.load %arg18[%c0_80, %c0_81, %c0_82] : memref<4x8x32xf32, #tpu.memory_space<vmem>>, vector<1x8x32xf32>
    %93 = vector.shape_cast %92 : vector<1x8x32xf32> to vector<8x32xf32>
    %cst_83 = arith.constant dense<0.000000e+00> : vector<8x128xf32>
    %94 = tpu.matmul %93, %91, %cst_83 {dimension_numbers = #tpu.dot_dimension_numbers<[1], [0], [0], [1], [0, 0, 1, 1], [], []>} : vector<8x32xf32>, vector<32x128xf32>, vector<8x128xf32> -> vector<8x128xf32>
    %c0_84 = arith.constant 0 : index
    %c0_85 = arith.constant 0 : index
    %c0_86 = arith.constant 0 : index
    %95 = vector.load %arg19[%c0_84, %c0_85, %c0_86] : memref<4x8x1xf32, #tpu.memory_space<vmem>>, vector<1x8x1xf32>
    %96 = vector.shape_cast %95 : vector<1x8x1xf32> to vector<8x1xf32>
    %97 = vector.broadcast %96 : vector<8x1xf32> to vector<8x128xf32>
    %98 = arith.addf %94, %97 : vector<8x128xf32>
    %c0_87 = arith.constant 0 : index
    %c0_88 = arith.constant 0 : index
    %c0_89 = arith.constant 0 : index
    %99 = vector.load %arg20[%c0_87, %c0_88, %c0_89] : memref<4x8x1xf32, #tpu.memory_space<vmem>>, vector<1x8x1xf32>
    %100 = vector.shape_cast %99 : vector<1x8x1xf32> to vector<8x1xf32>
    %101 = vector.broadcast %100 : vector<8x1xf32> to vector<8x128xf32>
    %102 = arith.mulf %98, %101 : vector<8x128xf32>
    %103 = arith.addf %42, %102 : vector<8x128xf32>
    %c1_90 = arith.constant 1 : index
    %c0_91 = arith.constant 0 : index
    %c0_92 = arith.constant 0 : index
    %104 = vector.load %arg5[%c1_90, %c0_91, %c0_92] : memref<4x16x32xf32, #tpu.memory_space<vmem>>, vector<1x16x32xf32>
    %105 = vector.shape_cast %104 : vector<1x16x32xf32> to vector<16x32xf32>
    %106 = vector.extract_strided_slice %8 {offsets = [32, 0], sizes = [32, 128], strides = [1, 1]} : vector<128x128xf32> to vector<32x128xf32>
    %cst_93 = arith.constant dense<0.000000e+00> : vector<16x128xf32>
    %107 = tpu.matmul %105, %106, %cst_93 {dimension_numbers = #tpu.dot_dimension_numbers<[1], [0], [0], [1], [0, 0, 1, 1], [], []>} : vector<16x32xf32>, vector<32x128xf32>, vector<16x128xf32> -> vector<16x128xf32>
    %c1_94 = arith.constant 1 : index
    %c0_95 = arith.constant 0 : index
    %c0_96 = arith.constant 0 : index
    %108 = vector.load %arg6[%c1_94, %c0_95, %c0_96] : memref<4x16x1xf32, #tpu.memory_space<vmem>>, vector<1x16x1xf32>
    %109 = vector.shape_cast %108 : vector<1x16x1xf32> to vector<16x1xf32>
    %110 = vector.broadcast %109 : vector<16x1xf32> to vector<16x128xf32>
    %111 = arith.addf %107, %110 : vector<16x128xf32>
    %112 = vector.extract_strided_slice %111 {offsets = [0, 0], sizes = [8, 128], strides = [1, 1]} : vector<16x128xf32> to vector<8x128xf32>
    %113 = vector.extract_strided_slice %111 {offsets = [8, 0], sizes = [8, 128], strides = [1, 1]} : vector<16x128xf32> to vector<8x128xf32>
    %c1_97 = arith.constant 1 : index
    %c0_98 = arith.constant 0 : index
    %c0_99 = arith.constant 0 : index
    %114 = vector.load %arg7[%c1_97, %c0_98, %c0_99] : memref<4x8x1xf32, #tpu.memory_space<vmem>>, vector<1x8x1xf32>
    %115 = vector.shape_cast %114 : vector<1x8x1xf32> to vector<8x1xf32>
    %116 = vector.broadcast %115 : vector<8x1xf32> to vector<8x128xf32>
    %117 = arith.addf %116, %112 : vector<8x128xf32>
    %118 = math.exp %117 : vector<8x128xf32>
    %119 = arith.mulf %103, %118 : vector<8x128xf32>
    %c1_100 = arith.constant 1 : index
    %c0_101 = arith.constant 0 : index
    %c0_102 = arith.constant 0 : index
    %120 = vector.load %arg8[%c1_100, %c0_101, %c0_102] : memref<4x8x1xf32, #tpu.memory_space<vmem>>, vector<1x8x1xf32>
    %121 = vector.shape_cast %120 : vector<1x8x1xf32> to vector<8x1xf32>
    %122 = vector.broadcast %121 : vector<8x1xf32> to vector<8x128xf32>
    %123 = arith.addf %122, %113 : vector<8x128xf32>
    %124 = arith.addf %119, %123 : vector<8x128xf32>
    %cst_103 = arith.constant dense<0.000000e+00> : vector<128xf32>
    %125 = vector.multi_reduction <add>, %117, %cst_103 [0] : vector<8x128xf32> to vector<128xf32>
    %126 = vector.shape_cast %125 : vector<128xf32> to vector<1x128xf32>
    %127 = arith.addf %35, %126 : vector<1x128xf32>
    %c1_104 = arith.constant 1 : index
    %c0_105 = arith.constant 0 : index
    %c0_106 = arith.constant 0 : index
    %128 = vector.load %arg9[%c1_104, %c0_105, %c0_106] : memref<4x8x8xf32, #tpu.memory_space<vmem>>, vector<1x8x8xf32>
    %129 = vector.shape_cast %128 : vector<1x8x8xf32> to vector<8x8xf32>
    %cst_107 = arith.constant dense<0.000000e+00> : vector<8x128xf32>
    %130 = tpu.matmul %129, %124, %cst_107 {dimension_numbers = #tpu.dot_dimension_numbers<[1], [0], [0], [1], [0, 0, 1, 1], [], []>} : vector<8x8xf32>, vector<8x128xf32>, vector<8x128xf32> -> vector<8x128xf32>
    %c1_108 = arith.constant 1 : index
    %c0_109 = arith.constant 0 : index
    %c0_110 = arith.constant 0 : index
    %131 = vector.load %arg10[%c1_108, %c0_109, %c0_110] : memref<4x8x1xf32, #tpu.memory_space<vmem>>, vector<1x8x1xf32>
    %132 = vector.shape_cast %131 : vector<1x8x1xf32> to vector<8x1xf32>
    %133 = vector.broadcast %132 : vector<8x1xf32> to vector<8x128xf32>
    %134 = arith.addf %130, %133 : vector<8x128xf32>
    %c1_111 = arith.constant 1 : index
    %c0_112 = arith.constant 0 : index
    %c0_113 = arith.constant 0 : index
    %135 = vector.load %arg11[%c1_111, %c0_112, %c0_113] : memref<4x32x8xf32, #tpu.memory_space<vmem>>, vector<1x32x8xf32>
    %136 = vector.shape_cast %135 : vector<1x32x8xf32> to vector<32x8xf32>
    %cst_114 = arith.constant dense<0.000000e+00> : vector<32x128xf32>
    %137 = tpu.matmul %136, %134, %cst_114 {dimension_numbers = #tpu.dot_dimension_numbers<[1], [0], [0], [1], [0, 0, 1, 1], [], []>} : vector<32x8xf32>, vector<8x128xf32>, vector<32x128xf32> -> vector<32x128xf32>
    %138 = vector.extract_strided_slice %10 {offsets = [32, 0], sizes = [32, 128], strides = [1, 1]} : vector<128x128xf32> to vector<32x128xf32>
    %139 = arith.addf %137, %138 : vector<32x128xf32>
    %c1_115 = arith.constant 1 : index
    %c0_116 = arith.constant 0 : index
    %c0_117 = arith.constant 0 : index
    %140 = vector.load %arg13[%c1_115, %c0_116, %c0_117] : memref<4x32x1xf32, #tpu.memory_space<vmem>>, vector<1x32x1xf32>
    %141 = vector.shape_cast %140 : vector<1x32x1xf32> to vector<32x1xf32>
    %142 = vector.broadcast %141 : vector<32x1xf32> to vector<32x128xf32>
    %143 = arith.addf %139, %142 : vector<32x128xf32>
    %cst_118 = arith.constant 0.000000e+00 : f32
    %144 = vector.broadcast %cst_118 : f32 to vector<32x128xf32>
    %145 = arith.maximumf %143, %144 : vector<32x128xf32>
    %c1_119 = arith.constant 1 : index
    %c0_120 = arith.constant 0 : index
    %c0_121 = arith.constant 0 : index
    %c0_122 = arith.constant 0 : index
    %146 = vector.load %arg14[%c1_119, %c0_120, %c0_121, %c0_122] : memref<4x2x32x32xf32, #tpu.memory_space<vmem>>, vector<1x1x32x32xf32>
    %147 = vector.shape_cast %146 : vector<1x1x32x32xf32> to vector<32x32xf32>
    %cst_123 = arith.constant dense<0.000000e+00> : vector<32x128xf32>
    %148 = tpu.matmul %147, %145, %cst_123 {dimension_numbers = #tpu.dot_dimension_numbers<[1], [0], [0], [1], [0, 0, 1, 1], [], []>} : vector<32x32xf32>, vector<32x128xf32>, vector<32x128xf32> -> vector<32x128xf32>
    %c1_124 = arith.constant 1 : index
    %c0_125 = arith.constant 0 : index
    %c0_126 = arith.constant 0 : index
    %c0_127 = arith.constant 0 : index
    %149 = vector.load %arg15[%c1_124, %c0_125, %c0_126, %c0_127] : memref<4x2x32x1xf32, #tpu.memory_space<vmem>>, vector<1x1x32x1xf32>
    %150 = vector.shape_cast %149 : vector<1x1x32x1xf32> to vector<32x1xf32>
    %151 = vector.broadcast %150 : vector<32x1xf32> to vector<32x128xf32>
    %152 = arith.addf %148, %151 : vector<32x128xf32>
    %cst_128 = arith.constant 0.000000e+00 : f32
    %153 = vector.broadcast %cst_128 : f32 to vector<32x128xf32>
    %154 = arith.maximumf %152, %153 : vector<32x128xf32>
    %c1_129 = arith.constant 1 : index
    %c0_130 = arith.constant 0 : index
    %c0_131 = arith.constant 0 : index
    %c0_132 = arith.constant 0 : index
    %155 = vector.load %arg16[%c1_129, %c0_130, %c0_131, %c0_132] : memref<4x2x32x32xf32, #tpu.memory_space<vmem>>, vector<1x1x32x32xf32>
    %156 = vector.shape_cast %155 : vector<1x1x32x32xf32> to vector<32x32xf32>
    %cst_133 = arith.constant dense<0.000000e+00> : vector<32x128xf32>
    %157 = tpu.matmul %156, %154, %cst_133 {dimension_numbers = #tpu.dot_dimension_numbers<[1], [0], [0], [1], [0, 0, 1, 1], [], []>} : vector<32x32xf32>, vector<32x128xf32>, vector<32x128xf32> -> vector<32x128xf32>
    %c1_134 = arith.constant 1 : index
    %c0_135 = arith.constant 0 : index
    %c0_136 = arith.constant 0 : index
    %c0_137 = arith.constant 0 : index
    %158 = vector.load %arg17[%c1_134, %c0_135, %c0_136, %c0_137] : memref<4x2x32x1xf32, #tpu.memory_space<vmem>>, vector<1x1x32x1xf32>
    %159 = vector.shape_cast %158 : vector<1x1x32x1xf32> to vector<32x1xf32>
    %160 = vector.broadcast %159 : vector<32x1xf32> to vector<32x128xf32>
    %161 = arith.addf %157, %160 : vector<32x128xf32>
    %cst_138 = arith.constant 0.000000e+00 : f32
    %162 = vector.broadcast %cst_138 : f32 to vector<32x128xf32>
    %163 = arith.maximumf %161, %162 : vector<32x128xf32>
    %164 = arith.addf %145, %163 : vector<32x128xf32>
    %c1_139 = arith.constant 1 : index
    %c1_140 = arith.constant 1 : index
    %c0_141 = arith.constant 0 : index
    %c0_142 = arith.constant 0 : index
    %165 = vector.load %arg14[%c1_139, %c1_140, %c0_141, %c0_142] : memref<4x2x32x32xf32, #tpu.memory_space<vmem>>, vector<1x1x32x32xf32>
    %166 = vector.shape_cast %165 : vector<1x1x32x32xf32> to vector<32x32xf32>
    %cst_143 = arith.constant dense<0.000000e+00> : vector<32x128xf32>
    %167 = tpu.matmul %166, %164, %cst_143 {dimension_numbers = #tpu.dot_dimension_numbers<[1], [0], [0], [1], [0, 0, 1, 1], [], []>} : vector<32x32xf32>, vector<32x128xf32>, vector<32x128xf32> -> vector<32x128xf32>
    %c1_144 = arith.constant 1 : index
    %c1_145 = arith.constant 1 : index
    %c0_146 = arith.constant 0 : index
    %c0_147 = arith.constant 0 : index
    %168 = vector.load %arg15[%c1_144, %c1_145, %c0_146, %c0_147] : memref<4x2x32x1xf32, #tpu.memory_space<vmem>>, vector<1x1x32x1xf32>
    %169 = vector.shape_cast %168 : vector<1x1x32x1xf32> to vector<32x1xf32>
    %170 = vector.broadcast %169 : vector<32x1xf32> to vector<32x128xf32>
    %171 = arith.addf %167, %170 : vector<32x128xf32>
    %cst_148 = arith.constant 0.000000e+00 : f32
    %172 = vector.broadcast %cst_148 : f32 to vector<32x128xf32>
    %173 = arith.maximumf %171, %172 : vector<32x128xf32>
    %c1_149 = arith.constant 1 : index
    %c1_150 = arith.constant 1 : index
    %c0_151 = arith.constant 0 : index
    %c0_152 = arith.constant 0 : index
    %174 = vector.load %arg16[%c1_149, %c1_150, %c0_151, %c0_152] : memref<4x2x32x32xf32, #tpu.memory_space<vmem>>, vector<1x1x32x32xf32>
    %175 = vector.shape_cast %174 : vector<1x1x32x32xf32> to vector<32x32xf32>
    %cst_153 = arith.constant dense<0.000000e+00> : vector<32x128xf32>
    %176 = tpu.matmul %175, %173, %cst_153 {dimension_numbers = #tpu.dot_dimension_numbers<[1], [0], [0], [1], [0, 0, 1, 1], [], []>} : vector<32x32xf32>, vector<32x128xf32>, vector<32x128xf32> -> vector<32x128xf32>
    %c1_154 = arith.constant 1 : index
    %c1_155 = arith.constant 1 : index
    %c0_156 = arith.constant 0 : index
    %c0_157 = arith.constant 0 : index
    %177 = vector.load %arg17[%c1_154, %c1_155, %c0_156, %c0_157] : memref<4x2x32x1xf32, #tpu.memory_space<vmem>>, vector<1x1x32x1xf32>
    %178 = vector.shape_cast %177 : vector<1x1x32x1xf32> to vector<32x1xf32>
    %179 = vector.broadcast %178 : vector<32x1xf32> to vector<32x128xf32>
    %180 = arith.addf %176, %179 : vector<32x128xf32>
    %cst_158 = arith.constant 0.000000e+00 : f32
    %181 = vector.broadcast %cst_158 : f32 to vector<32x128xf32>
    %182 = arith.maximumf %180, %181 : vector<32x128xf32>
    %183 = arith.addf %164, %182 : vector<32x128xf32>
    %c1_159 = arith.constant 1 : index
    %c0_160 = arith.constant 0 : index
    %c0_161 = arith.constant 0 : index
    %184 = vector.load %arg18[%c1_159, %c0_160, %c0_161] : memref<4x8x32xf32, #tpu.memory_space<vmem>>, vector<1x8x32xf32>
    %185 = vector.shape_cast %184 : vector<1x8x32xf32> to vector<8x32xf32>
    %cst_162 = arith.constant dense<0.000000e+00> : vector<8x128xf32>
    %186 = tpu.matmul %185, %183, %cst_162 {dimension_numbers = #tpu.dot_dimension_numbers<[1], [0], [0], [1], [0, 0, 1, 1], [], []>} : vector<8x32xf32>, vector<32x128xf32>, vector<8x128xf32> -> vector<8x128xf32>
    %c1_163 = arith.constant 1 : index
    %c0_164 = arith.constant 0 : index
    %c0_165 = arith.constant 0 : index
    %187 = vector.load %arg19[%c1_163, %c0_164, %c0_165] : memref<4x8x1xf32, #tpu.memory_space<vmem>>, vector<1x8x1xf32>
    %188 = vector.shape_cast %187 : vector<1x8x1xf32> to vector<8x1xf32>
    %189 = vector.broadcast %188 : vector<8x1xf32> to vector<8x128xf32>
    %190 = arith.addf %186, %189 : vector<8x128xf32>
    %c1_166 = arith.constant 1 : index
    %c0_167 = arith.constant 0 : index
    %c0_168 = arith.constant 0 : index
    %191 = vector.load %arg20[%c1_166, %c0_167, %c0_168] : memref<4x8x1xf32, #tpu.memory_space<vmem>>, vector<1x8x1xf32>
    %192 = vector.shape_cast %191 : vector<1x8x1xf32> to vector<8x1xf32>
    %193 = vector.broadcast %192 : vector<8x1xf32> to vector<8x128xf32>
    %194 = arith.mulf %190, %193 : vector<8x128xf32>
    %195 = arith.addf %134, %194 : vector<8x128xf32>
    %c2 = arith.constant 2 : index
    %c0_169 = arith.constant 0 : index
    %c0_170 = arith.constant 0 : index
    %196 = vector.load %arg5[%c2, %c0_169, %c0_170] : memref<4x16x32xf32, #tpu.memory_space<vmem>>, vector<1x16x32xf32>
    %197 = vector.shape_cast %196 : vector<1x16x32xf32> to vector<16x32xf32>
    %198 = vector.extract_strided_slice %8 {offsets = [64, 0], sizes = [32, 128], strides = [1, 1]} : vector<128x128xf32> to vector<32x128xf32>
    %cst_171 = arith.constant dense<0.000000e+00> : vector<16x128xf32>
    %199 = tpu.matmul %197, %198, %cst_171 {dimension_numbers = #tpu.dot_dimension_numbers<[1], [0], [0], [1], [0, 0, 1, 1], [], []>} : vector<16x32xf32>, vector<32x128xf32>, vector<16x128xf32> -> vector<16x128xf32>
    %c2_172 = arith.constant 2 : index
    %c0_173 = arith.constant 0 : index
    %c0_174 = arith.constant 0 : index
    %200 = vector.load %arg6[%c2_172, %c0_173, %c0_174] : memref<4x16x1xf32, #tpu.memory_space<vmem>>, vector<1x16x1xf32>
    %201 = vector.shape_cast %200 : vector<1x16x1xf32> to vector<16x1xf32>
    %202 = vector.broadcast %201 : vector<16x1xf32> to vector<16x128xf32>
    %203 = arith.addf %199, %202 : vector<16x128xf32>
    %204 = vector.extract_strided_slice %203 {offsets = [0, 0], sizes = [8, 128], strides = [1, 1]} : vector<16x128xf32> to vector<8x128xf32>
    %205 = vector.extract_strided_slice %203 {offsets = [8, 0], sizes = [8, 128], strides = [1, 1]} : vector<16x128xf32> to vector<8x128xf32>
    %c2_175 = arith.constant 2 : index
    %c0_176 = arith.constant 0 : index
    %c0_177 = arith.constant 0 : index
    %206 = vector.load %arg7[%c2_175, %c0_176, %c0_177] : memref<4x8x1xf32, #tpu.memory_space<vmem>>, vector<1x8x1xf32>
    %207 = vector.shape_cast %206 : vector<1x8x1xf32> to vector<8x1xf32>
    %208 = vector.broadcast %207 : vector<8x1xf32> to vector<8x128xf32>
    %209 = arith.addf %208, %204 : vector<8x128xf32>
    %210 = math.exp %209 : vector<8x128xf32>
    %211 = arith.mulf %195, %210 : vector<8x128xf32>
    %c2_178 = arith.constant 2 : index
    %c0_179 = arith.constant 0 : index
    %c0_180 = arith.constant 0 : index
    %212 = vector.load %arg8[%c2_178, %c0_179, %c0_180] : memref<4x8x1xf32, #tpu.memory_space<vmem>>, vector<1x8x1xf32>
    %213 = vector.shape_cast %212 : vector<1x8x1xf32> to vector<8x1xf32>
    %214 = vector.broadcast %213 : vector<8x1xf32> to vector<8x128xf32>
    %215 = arith.addf %214, %205 : vector<8x128xf32>
    %216 = arith.addf %211, %215 : vector<8x128xf32>
    %cst_181 = arith.constant dense<0.000000e+00> : vector<128xf32>
    %217 = vector.multi_reduction <add>, %209, %cst_181 [0] : vector<8x128xf32> to vector<128xf32>
    %218 = vector.shape_cast %217 : vector<128xf32> to vector<1x128xf32>
    %219 = arith.addf %127, %218 : vector<1x128xf32>
    %c2_182 = arith.constant 2 : index
    %c0_183 = arith.constant 0 : index
    %c0_184 = arith.constant 0 : index
    %220 = vector.load %arg9[%c2_182, %c0_183, %c0_184] : memref<4x8x8xf32, #tpu.memory_space<vmem>>, vector<1x8x8xf32>
    %221 = vector.shape_cast %220 : vector<1x8x8xf32> to vector<8x8xf32>
    %cst_185 = arith.constant dense<0.000000e+00> : vector<8x128xf32>
    %222 = tpu.matmul %221, %216, %cst_185 {dimension_numbers = #tpu.dot_dimension_numbers<[1], [0], [0], [1], [0, 0, 1, 1], [], []>} : vector<8x8xf32>, vector<8x128xf32>, vector<8x128xf32> -> vector<8x128xf32>
    %c2_186 = arith.constant 2 : index
    %c0_187 = arith.constant 0 : index
    %c0_188 = arith.constant 0 : index
    %223 = vector.load %arg10[%c2_186, %c0_187, %c0_188] : memref<4x8x1xf32, #tpu.memory_space<vmem>>, vector<1x8x1xf32>
    %224 = vector.shape_cast %223 : vector<1x8x1xf32> to vector<8x1xf32>
    %225 = vector.broadcast %224 : vector<8x1xf32> to vector<8x128xf32>
    %226 = arith.addf %222, %225 : vector<8x128xf32>
    %c2_189 = arith.constant 2 : index
    %c0_190 = arith.constant 0 : index
    %c0_191 = arith.constant 0 : index
    %227 = vector.load %arg11[%c2_189, %c0_190, %c0_191] : memref<4x32x8xf32, #tpu.memory_space<vmem>>, vector<1x32x8xf32>
    %228 = vector.shape_cast %227 : vector<1x32x8xf32> to vector<32x8xf32>
    %cst_192 = arith.constant dense<0.000000e+00> : vector<32x128xf32>
    %229 = tpu.matmul %228, %226, %cst_192 {dimension_numbers = #tpu.dot_dimension_numbers<[1], [0], [0], [1], [0, 0, 1, 1], [], []>} : vector<32x8xf32>, vector<8x128xf32>, vector<32x128xf32> -> vector<32x128xf32>
    %230 = vector.extract_strided_slice %10 {offsets = [64, 0], sizes = [32, 128], strides = [1, 1]} : vector<128x128xf32> to vector<32x128xf32>
    %231 = arith.addf %229, %230 : vector<32x128xf32>
    %c2_193 = arith.constant 2 : index
    %c0_194 = arith.constant 0 : index
    %c0_195 = arith.constant 0 : index
    %232 = vector.load %arg13[%c2_193, %c0_194, %c0_195] : memref<4x32x1xf32, #tpu.memory_space<vmem>>, vector<1x32x1xf32>
    %233 = vector.shape_cast %232 : vector<1x32x1xf32> to vector<32x1xf32>
    %234 = vector.broadcast %233 : vector<32x1xf32> to vector<32x128xf32>
    %235 = arith.addf %231, %234 : vector<32x128xf32>
    %cst_196 = arith.constant 0.000000e+00 : f32
    %236 = vector.broadcast %cst_196 : f32 to vector<32x128xf32>
    %237 = arith.maximumf %235, %236 : vector<32x128xf32>
    %c2_197 = arith.constant 2 : index
    %c0_198 = arith.constant 0 : index
    %c0_199 = arith.constant 0 : index
    %c0_200 = arith.constant 0 : index
    %238 = vector.load %arg14[%c2_197, %c0_198, %c0_199, %c0_200] : memref<4x2x32x32xf32, #tpu.memory_space<vmem>>, vector<1x1x32x32xf32>
    %239 = vector.shape_cast %238 : vector<1x1x32x32xf32> to vector<32x32xf32>
    %cst_201 = arith.constant dense<0.000000e+00> : vector<32x128xf32>
    %240 = tpu.matmul %239, %237, %cst_201 {dimension_numbers = #tpu.dot_dimension_numbers<[1], [0], [0], [1], [0, 0, 1, 1], [], []>} : vector<32x32xf32>, vector<32x128xf32>, vector<32x128xf32> -> vector<32x128xf32>
    %c2_202 = arith.constant 2 : index
    %c0_203 = arith.constant 0 : index
    %c0_204 = arith.constant 0 : index
    %c0_205 = arith.constant 0 : index
    %241 = vector.load %arg15[%c2_202, %c0_203, %c0_204, %c0_205] : memref<4x2x32x1xf32, #tpu.memory_space<vmem>>, vector<1x1x32x1xf32>
    %242 = vector.shape_cast %241 : vector<1x1x32x1xf32> to vector<32x1xf32>
    %243 = vector.broadcast %242 : vector<32x1xf32> to vector<32x128xf32>
    %244 = arith.addf %240, %243 : vector<32x128xf32>
    %cst_206 = arith.constant 0.000000e+00 : f32
    %245 = vector.broadcast %cst_206 : f32 to vector<32x128xf32>
    %246 = arith.maximumf %244, %245 : vector<32x128xf32>
    %c2_207 = arith.constant 2 : index
    %c0_208 = arith.constant 0 : index
    %c0_209 = arith.constant 0 : index
    %c0_210 = arith.constant 0 : index
    %247 = vector.load %arg16[%c2_207, %c0_208, %c0_209, %c0_210] : memref<4x2x32x32xf32, #tpu.memory_space<vmem>>, vector<1x1x32x32xf32>
    %248 = vector.shape_cast %247 : vector<1x1x32x32xf32> to vector<32x32xf32>
    %cst_211 = arith.constant dense<0.000000e+00> : vector<32x128xf32>
    %249 = tpu.matmul %248, %246, %cst_211 {dimension_numbers = #tpu.dot_dimension_numbers<[1], [0], [0], [1], [0, 0, 1, 1], [], []>} : vector<32x32xf32>, vector<32x128xf32>, vector<32x128xf32> -> vector<32x128xf32>
    %c2_212 = arith.constant 2 : index
    %c0_213 = arith.constant 0 : index
    %c0_214 = arith.constant 0 : index
    %c0_215 = arith.constant 0 : index
    %250 = vector.load %arg17[%c2_212, %c0_213, %c0_214, %c0_215] : memref<4x2x32x1xf32, #tpu.memory_space<vmem>>, vector<1x1x32x1xf32>
    %251 = vector.shape_cast %250 : vector<1x1x32x1xf32> to vector<32x1xf32>
    %252 = vector.broadcast %251 : vector<32x1xf32> to vector<32x128xf32>
    %253 = arith.addf %249, %252 : vector<32x128xf32>
    %cst_216 = arith.constant 0.000000e+00 : f32
    %254 = vector.broadcast %cst_216 : f32 to vector<32x128xf32>
    %255 = arith.maximumf %253, %254 : vector<32x128xf32>
    %256 = arith.addf %237, %255 : vector<32x128xf32>
    %c2_217 = arith.constant 2 : index
    %c1_218 = arith.constant 1 : index
    %c0_219 = arith.constant 0 : index
    %c0_220 = arith.constant 0 : index
    %257 = vector.load %arg14[%c2_217, %c1_218, %c0_219, %c0_220] : memref<4x2x32x32xf32, #tpu.memory_space<vmem>>, vector<1x1x32x32xf32>
    %258 = vector.shape_cast %257 : vector<1x1x32x32xf32> to vector<32x32xf32>
    %cst_221 = arith.constant dense<0.000000e+00> : vector<32x128xf32>
    %259 = tpu.matmul %258, %256, %cst_221 {dimension_numbers = #tpu.dot_dimension_numbers<[1], [0], [0], [1], [0, 0, 1, 1], [], []>} : vector<32x32xf32>, vector<32x128xf32>, vector<32x128xf32> -> vector<32x128xf32>
    %c2_222 = arith.constant 2 : index
    %c1_223 = arith.constant 1 : index
    %c0_224 = arith.constant 0 : index
    %c0_225 = arith.constant 0 : index
    %260 = vector.load %arg15[%c2_222, %c1_223, %c0_224, %c0_225] : memref<4x2x32x1xf32, #tpu.memory_space<vmem>>, vector<1x1x32x1xf32>
    %261 = vector.shape_cast %260 : vector<1x1x32x1xf32> to vector<32x1xf32>
    %262 = vector.broadcast %261 : vector<32x1xf32> to vector<32x128xf32>
    %263 = arith.addf %259, %262 : vector<32x128xf32>
    %cst_226 = arith.constant 0.000000e+00 : f32
    %264 = vector.broadcast %cst_226 : f32 to vector<32x128xf32>
    %265 = arith.maximumf %263, %264 : vector<32x128xf32>
    %c2_227 = arith.constant 2 : index
    %c1_228 = arith.constant 1 : index
    %c0_229 = arith.constant 0 : index
    %c0_230 = arith.constant 0 : index
    %266 = vector.load %arg16[%c2_227, %c1_228, %c0_229, %c0_230] : memref<4x2x32x32xf32, #tpu.memory_space<vmem>>, vector<1x1x32x32xf32>
    %267 = vector.shape_cast %266 : vector<1x1x32x32xf32> to vector<32x32xf32>
    %cst_231 = arith.constant dense<0.000000e+00> : vector<32x128xf32>
    %268 = tpu.matmul %267, %265, %cst_231 {dimension_numbers = #tpu.dot_dimension_numbers<[1], [0], [0], [1], [0, 0, 1, 1], [], []>} : vector<32x32xf32>, vector<32x128xf32>, vector<32x128xf32> -> vector<32x128xf32>
    %c2_232 = arith.constant 2 : index
    %c1_233 = arith.constant 1 : index
    %c0_234 = arith.constant 0 : index
    %c0_235 = arith.constant 0 : index
    %269 = vector.load %arg17[%c2_232, %c1_233, %c0_234, %c0_235] : memref<4x2x32x1xf32, #tpu.memory_space<vmem>>, vector<1x1x32x1xf32>
    %270 = vector.shape_cast %269 : vector<1x1x32x1xf32> to vector<32x1xf32>
    %271 = vector.broadcast %270 : vector<32x1xf32> to vector<32x128xf32>
    %272 = arith.addf %268, %271 : vector<32x128xf32>
    %cst_236 = arith.constant 0.000000e+00 : f32
    %273 = vector.broadcast %cst_236 : f32 to vector<32x128xf32>
    %274 = arith.maximumf %272, %273 : vector<32x128xf32>
    %275 = arith.addf %256, %274 : vector<32x128xf32>
    %c2_237 = arith.constant 2 : index
    %c0_238 = arith.constant 0 : index
    %c0_239 = arith.constant 0 : index
    %276 = vector.load %arg18[%c2_237, %c0_238, %c0_239] : memref<4x8x32xf32, #tpu.memory_space<vmem>>, vector<1x8x32xf32>
    %277 = vector.shape_cast %276 : vector<1x8x32xf32> to vector<8x32xf32>
    %cst_240 = arith.constant dense<0.000000e+00> : vector<8x128xf32>
    %278 = tpu.matmul %277, %275, %cst_240 {dimension_numbers = #tpu.dot_dimension_numbers<[1], [0], [0], [1], [0, 0, 1, 1], [], []>} : vector<8x32xf32>, vector<32x128xf32>, vector<8x128xf32> -> vector<8x128xf32>
    %c2_241 = arith.constant 2 : index
    %c0_242 = arith.constant 0 : index
    %c0_243 = arith.constant 0 : index
    %279 = vector.load %arg19[%c2_241, %c0_242, %c0_243] : memref<4x8x1xf32, #tpu.memory_space<vmem>>, vector<1x8x1xf32>
    %280 = vector.shape_cast %279 : vector<1x8x1xf32> to vector<8x1xf32>
    %281 = vector.broadcast %280 : vector<8x1xf32> to vector<8x128xf32>
    %282 = arith.addf %278, %281 : vector<8x128xf32>
    %c2_244 = arith.constant 2 : index
    %c0_245 = arith.constant 0 : index
    %c0_246 = arith.constant 0 : index
    %283 = vector.load %arg20[%c2_244, %c0_245, %c0_246] : memref<4x8x1xf32, #tpu.memory_space<vmem>>, vector<1x8x1xf32>
    %284 = vector.shape_cast %283 : vector<1x8x1xf32> to vector<8x1xf32>
    %285 = vector.broadcast %284 : vector<8x1xf32> to vector<8x128xf32>
    %286 = arith.mulf %282, %285 : vector<8x128xf32>
    %287 = arith.addf %226, %286 : vector<8x128xf32>
    %c3 = arith.constant 3 : index
    %c0_247 = arith.constant 0 : index
    %c0_248 = arith.constant 0 : index
    %288 = vector.load %arg5[%c3, %c0_247, %c0_248] : memref<4x16x32xf32, #tpu.memory_space<vmem>>, vector<1x16x32xf32>
    %289 = vector.shape_cast %288 : vector<1x16x32xf32> to vector<16x32xf32>
    %290 = vector.extract_strided_slice %8 {offsets = [96, 0], sizes = [32, 128], strides = [1, 1]} : vector<128x128xf32> to vector<32x128xf32>
    %cst_249 = arith.constant dense<0.000000e+00> : vector<16x128xf32>
    %291 = tpu.matmul %289, %290, %cst_249 {dimension_numbers = #tpu.dot_dimension_numbers<[1], [0], [0], [1], [0, 0, 1, 1], [], []>} : vector<16x32xf32>, vector<32x128xf32>, vector<16x128xf32> -> vector<16x128xf32>
    %c3_250 = arith.constant 3 : index
    %c0_251 = arith.constant 0 : index
    %c0_252 = arith.constant 0 : index
    %292 = vector.load %arg6[%c3_250, %c0_251, %c0_252] : memref<4x16x1xf32, #tpu.memory_space<vmem>>, vector<1x16x1xf32>
    %293 = vector.shape_cast %292 : vector<1x16x1xf32> to vector<16x1xf32>
    %294 = vector.broadcast %293 : vector<16x1xf32> to vector<16x128xf32>
    %295 = arith.addf %291, %294 : vector<16x128xf32>
    %296 = vector.extract_strided_slice %295 {offsets = [0, 0], sizes = [8, 128], strides = [1, 1]} : vector<16x128xf32> to vector<8x128xf32>
    %297 = vector.extract_strided_slice %295 {offsets = [8, 0], sizes = [8, 128], strides = [1, 1]} : vector<16x128xf32> to vector<8x128xf32>
    %c3_253 = arith.constant 3 : index
    %c0_254 = arith.constant 0 : index
    %c0_255 = arith.constant 0 : index
    %298 = vector.load %arg7[%c3_253, %c0_254, %c0_255] : memref<4x8x1xf32, #tpu.memory_space<vmem>>, vector<1x8x1xf32>
    %299 = vector.shape_cast %298 : vector<1x8x1xf32> to vector<8x1xf32>
    %300 = vector.broadcast %299 : vector<8x1xf32> to vector<8x128xf32>
    %301 = arith.addf %300, %296 : vector<8x128xf32>
    %302 = math.exp %301 : vector<8x128xf32>
    %303 = arith.mulf %287, %302 : vector<8x128xf32>
    %c3_256 = arith.constant 3 : index
    %c0_257 = arith.constant 0 : index
    %c0_258 = arith.constant 0 : index
    %304 = vector.load %arg8[%c3_256, %c0_257, %c0_258] : memref<4x8x1xf32, #tpu.memory_space<vmem>>, vector<1x8x1xf32>
    %305 = vector.shape_cast %304 : vector<1x8x1xf32> to vector<8x1xf32>
    %306 = vector.broadcast %305 : vector<8x1xf32> to vector<8x128xf32>
    %307 = arith.addf %306, %297 : vector<8x128xf32>
    %308 = arith.addf %303, %307 : vector<8x128xf32>
    %cst_259 = arith.constant dense<0.000000e+00> : vector<128xf32>
    %309 = vector.multi_reduction <add>, %301, %cst_259 [0] : vector<8x128xf32> to vector<128xf32>
    %310 = vector.shape_cast %309 : vector<128xf32> to vector<1x128xf32>
    %311 = arith.addf %219, %310 : vector<1x128xf32>
    %c3_260 = arith.constant 3 : index
    %c0_261 = arith.constant 0 : index
    %c0_262 = arith.constant 0 : index
    %312 = vector.load %arg9[%c3_260, %c0_261, %c0_262] : memref<4x8x8xf32, #tpu.memory_space<vmem>>, vector<1x8x8xf32>
    %313 = vector.shape_cast %312 : vector<1x8x8xf32> to vector<8x8xf32>
    %cst_263 = arith.constant dense<0.000000e+00> : vector<8x128xf32>
    %314 = tpu.matmul %313, %308, %cst_263 {dimension_numbers = #tpu.dot_dimension_numbers<[1], [0], [0], [1], [0, 0, 1, 1], [], []>} : vector<8x8xf32>, vector<8x128xf32>, vector<8x128xf32> -> vector<8x128xf32>
    %c3_264 = arith.constant 3 : index
    %c0_265 = arith.constant 0 : index
    %c0_266 = arith.constant 0 : index
    %315 = vector.load %arg10[%c3_264, %c0_265, %c0_266] : memref<4x8x1xf32, #tpu.memory_space<vmem>>, vector<1x8x1xf32>
    %316 = vector.shape_cast %315 : vector<1x8x1xf32> to vector<8x1xf32>
    %317 = vector.broadcast %316 : vector<8x1xf32> to vector<8x128xf32>
    %318 = arith.addf %314, %317 : vector<8x128xf32>
    %c3_267 = arith.constant 3 : index
    %c0_268 = arith.constant 0 : index
    %c0_269 = arith.constant 0 : index
    %319 = vector.load %arg11[%c3_267, %c0_268, %c0_269] : memref<4x32x8xf32, #tpu.memory_space<vmem>>, vector<1x32x8xf32>
    %320 = vector.shape_cast %319 : vector<1x32x8xf32> to vector<32x8xf32>
    %cst_270 = arith.constant dense<0.000000e+00> : vector<32x128xf32>
    %321 = tpu.matmul %320, %318, %cst_270 {dimension_numbers = #tpu.dot_dimension_numbers<[1], [0], [0], [1], [0, 0, 1, 1], [], []>} : vector<32x8xf32>, vector<8x128xf32>, vector<32x128xf32> -> vector<32x128xf32>
    %322 = vector.extract_strided_slice %10 {offsets = [96, 0], sizes = [32, 128], strides = [1, 1]} : vector<128x128xf32> to vector<32x128xf32>
    %323 = arith.addf %321, %322 : vector<32x128xf32>
    %c3_271 = arith.constant 3 : index
    %c0_272 = arith.constant 0 : index
    %c0_273 = arith.constant 0 : index
    %324 = vector.load %arg13[%c3_271, %c0_272, %c0_273] : memref<4x32x1xf32, #tpu.memory_space<vmem>>, vector<1x32x1xf32>
    %325 = vector.shape_cast %324 : vector<1x32x1xf32> to vector<32x1xf32>
    %326 = vector.broadcast %325 : vector<32x1xf32> to vector<32x128xf32>
    %327 = arith.addf %323, %326 : vector<32x128xf32>
    %cst_274 = arith.constant 0.000000e+00 : f32
    %328 = vector.broadcast %cst_274 : f32 to vector<32x128xf32>
    %329 = arith.maximumf %327, %328 : vector<32x128xf32>
    %c3_275 = arith.constant 3 : index
    %c0_276 = arith.constant 0 : index
    %c0_277 = arith.constant 0 : index
    %c0_278 = arith.constant 0 : index
    %330 = vector.load %arg14[%c3_275, %c0_276, %c0_277, %c0_278] : memref<4x2x32x32xf32, #tpu.memory_space<vmem>>, vector<1x1x32x32xf32>
    %331 = vector.shape_cast %330 : vector<1x1x32x32xf32> to vector<32x32xf32>
    %cst_279 = arith.constant dense<0.000000e+00> : vector<32x128xf32>
    %332 = tpu.matmul %331, %329, %cst_279 {dimension_numbers = #tpu.dot_dimension_numbers<[1], [0], [0], [1], [0, 0, 1, 1], [], []>} : vector<32x32xf32>, vector<32x128xf32>, vector<32x128xf32> -> vector<32x128xf32>
    %c3_280 = arith.constant 3 : index
    %c0_281 = arith.constant 0 : index
    %c0_282 = arith.constant 0 : index
    %c0_283 = arith.constant 0 : index
    %333 = vector.load %arg15[%c3_280, %c0_281, %c0_282, %c0_283] : memref<4x2x32x1xf32, #tpu.memory_space<vmem>>, vector<1x1x32x1xf32>
    %334 = vector.shape_cast %333 : vector<1x1x32x1xf32> to vector<32x1xf32>
    %335 = vector.broadcast %334 : vector<32x1xf32> to vector<32x128xf32>
    %336 = arith.addf %332, %335 : vector<32x128xf32>
    %cst_284 = arith.constant 0.000000e+00 : f32
    %337 = vector.broadcast %cst_284 : f32 to vector<32x128xf32>
    %338 = arith.maximumf %336, %337 : vector<32x128xf32>
    %c3_285 = arith.constant 3 : index
    %c0_286 = arith.constant 0 : index
    %c0_287 = arith.constant 0 : index
    %c0_288 = arith.constant 0 : index
    %339 = vector.load %arg16[%c3_285, %c0_286, %c0_287, %c0_288] : memref<4x2x32x32xf32, #tpu.memory_space<vmem>>, vector<1x1x32x32xf32>
    %340 = vector.shape_cast %339 : vector<1x1x32x32xf32> to vector<32x32xf32>
    %cst_289 = arith.constant dense<0.000000e+00> : vector<32x128xf32>
    %341 = tpu.matmul %340, %338, %cst_289 {dimension_numbers = #tpu.dot_dimension_numbers<[1], [0], [0], [1], [0, 0, 1, 1], [], []>} : vector<32x32xf32>, vector<32x128xf32>, vector<32x128xf32> -> vector<32x128xf32>
    %c3_290 = arith.constant 3 : index
    %c0_291 = arith.constant 0 : index
    %c0_292 = arith.constant 0 : index
    %c0_293 = arith.constant 0 : index
    %342 = vector.load %arg17[%c3_290, %c0_291, %c0_292, %c0_293] : memref<4x2x32x1xf32, #tpu.memory_space<vmem>>, vector<1x1x32x1xf32>
    %343 = vector.shape_cast %342 : vector<1x1x32x1xf32> to vector<32x1xf32>
    %344 = vector.broadcast %343 : vector<32x1xf32> to vector<32x128xf32>
    %345 = arith.addf %341, %344 : vector<32x128xf32>
    %cst_294 = arith.constant 0.000000e+00 : f32
    %346 = vector.broadcast %cst_294 : f32 to vector<32x128xf32>
    %347 = arith.maximumf %345, %346 : vector<32x128xf32>
    %348 = arith.addf %329, %347 : vector<32x128xf32>
    %c3_295 = arith.constant 3 : index
    %c1_296 = arith.constant 1 : index
    %c0_297 = arith.constant 0 : index
    %c0_298 = arith.constant 0 : index
    %349 = vector.load %arg14[%c3_295, %c1_296, %c0_297, %c0_298] : memref<4x2x32x32xf32, #tpu.memory_space<vmem>>, vector<1x1x32x32xf32>
    %350 = vector.shape_cast %349 : vector<1x1x32x32xf32> to vector<32x32xf32>
    %cst_299 = arith.constant dense<0.000000e+00> : vector<32x128xf32>
    %351 = tpu.matmul %350, %348, %cst_299 {dimension_numbers = #tpu.dot_dimension_numbers<[1], [0], [0], [1], [0, 0, 1, 1], [], []>} : vector<32x32xf32>, vector<32x128xf32>, vector<32x128xf32> -> vector<32x128xf32>
    %c3_300 = arith.constant 3 : index
    %c1_301 = arith.constant 1 : index
    %c0_302 = arith.constant 0 : index
    %c0_303 = arith.constant 0 : index
    %352 = vector.load %arg15[%c3_300, %c1_301, %c0_302, %c0_303] : memref<4x2x32x1xf32, #tpu.memory_space<vmem>>, vector<1x1x32x1xf32>
    %353 = vector.shape_cast %352 : vector<1x1x32x1xf32> to vector<32x1xf32>
    %354 = vector.broadcast %353 : vector<32x1xf32> to vector<32x128xf32>
    %355 = arith.addf %351, %354 : vector<32x128xf32>
    %cst_304 = arith.constant 0.000000e+00 : f32
    %356 = vector.broadcast %cst_304 : f32 to vector<32x128xf32>
    %357 = arith.maximumf %355, %356 : vector<32x128xf32>
    %c3_305 = arith.constant 3 : index
    %c1_306 = arith.constant 1 : index
    %c0_307 = arith.constant 0 : index
    %c0_308 = arith.constant 0 : index
    %358 = vector.load %arg16[%c3_305, %c1_306, %c0_307, %c0_308] : memref<4x2x32x32xf32, #tpu.memory_space<vmem>>, vector<1x1x32x32xf32>
    %359 = vector.shape_cast %358 : vector<1x1x32x32xf32> to vector<32x32xf32>
    %cst_309 = arith.constant dense<0.000000e+00> : vector<32x128xf32>
    %360 = tpu.matmul %359, %357, %cst_309 {dimension_numbers = #tpu.dot_dimension_numbers<[1], [0], [0], [1], [0, 0, 1, 1], [], []>} : vector<32x32xf32>, vector<32x128xf32>, vector<32x128xf32> -> vector<32x128xf32>
    %c3_310 = arith.constant 3 : index
    %c1_311 = arith.constant 1 : index
    %c0_312 = arith.constant 0 : index
    %c0_313 = arith.constant 0 : index
    %361 = vector.load %arg17[%c3_310, %c1_311, %c0_312, %c0_313] : memref<4x2x32x1xf32, #tpu.memory_space<vmem>>, vector<1x1x32x1xf32>
    %362 = vector.shape_cast %361 : vector<1x1x32x1xf32> to vector<32x1xf32>
    %363 = vector.broadcast %362 : vector<32x1xf32> to vector<32x128xf32>
    %364 = arith.addf %360, %363 : vector<32x128xf32>
    %cst_314 = arith.constant 0.000000e+00 : f32
    %365 = vector.broadcast %cst_314 : f32 to vector<32x128xf32>
    %366 = arith.maximumf %364, %365 : vector<32x128xf32>
    %367 = arith.addf %348, %366 : vector<32x128xf32>
    %c3_315 = arith.constant 3 : index
    %c0_316 = arith.constant 0 : index
    %c0_317 = arith.constant 0 : index
    %368 = vector.load %arg18[%c3_315, %c0_316, %c0_317] : memref<4x8x32xf32, #tpu.memory_space<vmem>>, vector<1x8x32xf32>
    %369 = vector.shape_cast %368 : vector<1x8x32xf32> to vector<8x32xf32>
    %cst_318 = arith.constant dense<0.000000e+00> : vector<8x128xf32>
    %370 = tpu.matmul %369, %367, %cst_318 {dimension_numbers = #tpu.dot_dimension_numbers<[1], [0], [0], [1], [0, 0, 1, 1], [], []>} : vector<8x32xf32>, vector<32x128xf32>, vector<8x128xf32> -> vector<8x128xf32>
    %c3_319 = arith.constant 3 : index
    %c0_320 = arith.constant 0 : index
    %c0_321 = arith.constant 0 : index
    %371 = vector.load %arg19[%c3_319, %c0_320, %c0_321] : memref<4x8x1xf32, #tpu.memory_space<vmem>>, vector<1x8x1xf32>
    %372 = vector.shape_cast %371 : vector<1x8x1xf32> to vector<8x1xf32>
    %373 = vector.broadcast %372 : vector<8x1xf32> to vector<8x128xf32>
    %374 = arith.addf %370, %373 : vector<8x128xf32>
    %c3_322 = arith.constant 3 : index
    %c0_323 = arith.constant 0 : index
    %c0_324 = arith.constant 0 : index
    %375 = vector.load %arg20[%c3_322, %c0_323, %c0_324] : memref<4x8x1xf32, #tpu.memory_space<vmem>>, vector<1x8x1xf32>
    %376 = vector.shape_cast %375 : vector<1x8x1xf32> to vector<8x1xf32>
    %377 = vector.broadcast %376 : vector<8x1xf32> to vector<8x128xf32>
    %378 = arith.mulf %374, %377 : vector<8x128xf32>
    %379 = arith.addf %318, %378 : vector<8x128xf32>
    %c0_325 = arith.constant 0 : index
    %c0_326 = arith.constant 0 : index
    %380 = vector.load %arg21[%c0_325, %c0_326] : memref<8x1xf32, #tpu.memory_space<vmem>>, vector<8x1xf32>
    %381 = vector.broadcast %380 : vector<8x1xf32> to vector<8x128xf32>
    %382 = arith.subf %379, %381 : vector<8x128xf32>
    %c0_327 = arith.constant 0 : index
    %c0_328 = arith.constant 0 : index
    %383 = vector.load %arg22[%c0_327, %c0_328] : memref<8x1xf32, #tpu.memory_space<vmem>>, vector<8x1xf32>
    %384 = vector.broadcast %383 : vector<8x1xf32> to vector<8x128xf32>
    %385 = arith.mulf %382, %384 : vector<8x128xf32>
    %c0_329 = arith.constant 0 : index
    %c0_330 = arith.constant 0 : index
    %386 = vector.load %arg23[%c0_329, %c0_330] : memref<8x128xf32, #tpu.memory_space<vmem>>, vector<8x128xf32>
    tpu.vector_store %arg23[%c0_329, %c0_330], %385 {strides = array<i32>} : memref<8x128xf32, #tpu.memory_space<vmem>>, vector<8x128xf32>,
    %c0_331 = arith.constant 0 : index
    %c0_332 = arith.constant 0 : index
    %387 = vector.load %arg24[%c0_331, %c0_332] : memref<1x128xf32, #tpu.memory_space<vmem>>, vector<1x128xf32>
    tpu.vector_store %arg24[%c0_331, %c0_332], %311 {strides = array<i32>} : memref<1x128xf32, #tpu.memory_space<vmem>>, vector<1x128xf32>,
    return
  }
  func.func @transform_0(%arg0: i32) -> (i32, i32) {
    %c0_i32 = arith.constant 0 : i32
    %c0_i32_0 = arith.constant 0 : i32
    return %c0_i32, %arg0 : i32, i32
  }
  func.func @transform_1(%arg0: i32) -> (i32, i32) {
    %c0_i32 = arith.constant 0 : i32
    %c0_i32_0 = arith.constant 0 : i32
    return %c0_i32, %arg0 : i32, i32
  }
  func.func @transform_2(%arg0: i32) -> (i32, i32) {
    %c0_i32 = arith.constant 0 : i32
    %c0_i32_0 = arith.constant 0 : i32
    %c0_i32_1 = arith.constant 0 : i32
    return %c0_i32, %c0_i32_0 : i32, i32
  }
  func.func @transform_3(%arg0: i32) -> (i32, i32) {
    %c0_i32 = arith.constant 0 : i32
    %c0_i32_0 = arith.constant 0 : i32
    %c0_i32_1 = arith.constant 0 : i32
    return %c0_i32, %c0_i32_0 : i32, i32
  }
  func.func @transform_4(%arg0: i32) -> (i32, i32, i32) {
    %c0_i32 = arith.constant 0 : i32
    %c0_i32_0 = arith.constant 0 : i32
    %c0_i32_1 = arith.constant 0 : i32
    %c0_i32_2 = arith.constant 0 : i32
    return %c0_i32, %c0_i32_0, %c0_i32_1 : i32, i32, i32
  }
  func.func @transform_5(%arg0: i32) -> (i32, i32, i32) {
    %c0_i32 = arith.constant 0 : i32
    %c0_i32_0 = arith.constant 0 : i32
    %c0_i32_1 = arith.constant 0 : i32
    %c0_i32_2 = arith.constant 0 : i32
    return %c0_i32, %c0_i32_0, %c0_i32_1 : i32, i32, i32
  }
  func.func @transform_6(%arg0: i32) -> (i32, i32, i32) {
    %c0_i32 = arith.constant 0 : i32
    %c0_i32_0 = arith.constant 0 : i32
    %c0_i32_1 = arith.constant 0 : i32
    %c0_i32_2 = arith.constant 0 : i32
    return %c0_i32, %c0_i32_0, %c0_i32_1 : i32, i32, i32
  }
  func.func @transform_7(%arg0: i32) -> (i32, i32, i32) {
    %c0_i32 = arith.constant 0 : i32
    %c0_i32_0 = arith.constant 0 : i32
    %c0_i32_1 = arith.constant 0 : i32
    %c0_i32_2 = arith.constant 0 : i32
    return %c0_i32, %c0_i32_0, %c0_i32_1 : i32, i32, i32
  }
  func.func @transform_8(%arg0: i32) -> (i32, i32, i32) {
    %c0_i32 = arith.constant 0 : i32
    %c0_i32_0 = arith.constant 0 : i32
    %c0_i32_1 = arith.constant 0 : i32
    %c0_i32_2 = arith.constant 0 : i32
    return %c0_i32, %c0_i32_0, %c0_i32_1 : i32, i32, i32
  }
  func.func @transform_9(%arg0: i32) -> (i32, i32, i32) {
    %c0_i32 = arith.constant 0 : i32
    %c0_i32_0 = arith.constant 0 : i32
    %c0_i32_1 = arith.constant 0 : i32
    %c0_i32_2 = arith.constant 0 : i32
    return %c0_i32, %c0_i32_0, %c0_i32_1 : i32, i32, i32
  }
  func.func @transform_10(%arg0: i32) -> (i32, i32, i32) {
    %c0_i32 = arith.constant 0 : i32
    %c0_i32_0 = arith.constant 0 : i32
    %c0_i32_1 = arith.constant 0 : i32
    %c0_i32_2 = arith.constant 0 : i32
    return %c0_i32, %c0_i32_0, %c0_i32_1 : i32, i32, i32
  }
  func.func @transform_11(%arg0: i32) -> (i32, i32) {
    %c0_i32 = arith.constant 0 : i32
    %c0_i32_0 = arith.constant 0 : i32
    %c0_i32_1 = arith.constant 0 : i32
    return %c0_i32, %c0_i32_0 : i32, i32
  }
  func.func @transform_12(%arg0: i32) -> (i32, i32, i32) {
    %c0_i32 = arith.constant 0 : i32
    %c0_i32_0 = arith.constant 0 : i32
    %c0_i32_1 = arith.constant 0 : i32
    %c0_i32_2 = arith.constant 0 : i32
    return %c0_i32, %c0_i32_0, %c0_i32_1 : i32, i32, i32
  }
  func.func @transform_13(%arg0: i32) -> (i32, i32, i32, i32) {
    %c0_i32 = arith.constant 0 : i32
    %c0_i32_0 = arith.constant 0 : i32
    %c0_i32_1 = arith.constant 0 : i32
    %c0_i32_2 = arith.constant 0 : i32
    %c0_i32_3 = arith.constant 0 : i32
    return %c0_i32, %c0_i32_0, %c0_i32_1, %c0_i32_2 : i32, i32, i32, i32
  }
  func.func @transform_14(%arg0: i32) -> (i32, i32, i32, i32) {
    %c0_i32 = arith.constant 0 : i32
    %c0_i32_0 = arith.constant 0 : i32
    %c0_i32_1 = arith.constant 0 : i32
    %c0_i32_2 = arith.constant 0 : i32
    %c0_i32_3 = arith.constant 0 : i32
    return %c0_i32, %c0_i32_0, %c0_i32_1, %c0_i32_2 : i32, i32, i32, i32
  }
  func.func @transform_15(%arg0: i32) -> (i32, i32, i32, i32) {
    %c0_i32 = arith.constant 0 : i32
    %c0_i32_0 = arith.constant 0 : i32
    %c0_i32_1 = arith.constant 0 : i32
    %c0_i32_2 = arith.constant 0 : i32
    %c0_i32_3 = arith.constant 0 : i32
    return %c0_i32, %c0_i32_0, %c0_i32_1, %c0_i32_2 : i32, i32, i32, i32
  }
  func.func @transform_16(%arg0: i32) -> (i32, i32, i32, i32) {
    %c0_i32 = arith.constant 0 : i32
    %c0_i32_0 = arith.constant 0 : i32
    %c0_i32_1 = arith.constant 0 : i32
    %c0_i32_2 = arith.constant 0 : i32
    %c0_i32_3 = arith.constant 0 : i32
    return %c0_i32, %c0_i32_0, %c0_i32_1, %c0_i32_2 : i32, i32, i32, i32
  }
  func.func @transform_17(%arg0: i32) -> (i32, i32, i32) {
    %c0_i32 = arith.constant 0 : i32
    %c0_i32_0 = arith.constant 0 : i32
    %c0_i32_1 = arith.constant 0 : i32
    %c0_i32_2 = arith.constant 0 : i32
    return %c0_i32, %c0_i32_0, %c0_i32_1 : i32, i32, i32
  }
  func.func @transform_18(%arg0: i32) -> (i32, i32, i32) {
    %c0_i32 = arith.constant 0 : i32
    %c0_i32_0 = arith.constant 0 : i32
    %c0_i32_1 = arith.constant 0 : i32
    %c0_i32_2 = arith.constant 0 : i32
    return %c0_i32, %c0_i32_0, %c0_i32_1 : i32, i32, i32
  }
  func.func @transform_19(%arg0: i32) -> (i32, i32, i32) {
    %c0_i32 = arith.constant 0 : i32
    %c0_i32_0 = arith.constant 0 : i32
    %c0_i32_1 = arith.constant 0 : i32
    %c0_i32_2 = arith.constant 0 : i32
    return %c0_i32, %c0_i32_0, %c0_i32_1 : i32, i32, i32
  }
  func.func @transform_20(%arg0: i32) -> (i32, i32) {
    %c0_i32 = arith.constant 0 : i32
    %c0_i32_0 = arith.constant 0 : i32
    %c0_i32_1 = arith.constant 0 : i32
    return %c0_i32, %c0_i32_0 : i32, i32
  }
  func.func @transform_21(%arg0: i32) -> (i32, i32) {
    %c0_i32 = arith.constant 0 : i32
    %c0_i32_0 = arith.constant 0 : i32
    %c0_i32_1 = arith.constant 0 : i32
    return %c0_i32, %c0_i32_0 : i32, i32
  }
  func.func @transform_22(%arg0: i32) -> (i32, i32) {
    %c0_i32 = arith.constant 0 : i32
    %c0_i32_0 = arith.constant 0 : i32
    return %c0_i32, %arg0 : i32, i32
  }
  func.func @transform_23(%arg0: i32) -> (i32, i32) {
    %c0_i32 = arith.constant 0 : i32
    %c0_i32_0 = arith.constant 0 : i32
    return %c0_i32, %arg0 : i32, i32
  }
}

</mosaic_0001>

<llo_original>
// kernel: tpu_custom_call.1
$region0: #{tpu_custom_call.1}
  #allocation0 [shape = 'u32[]', space=smem, size = 0x4, offset = 0x4, fixed_abs, tag = 'smem constant byte address 0x4 - core index']
  #allocation1 [shape = 'u32[72,128]{1,0:T(1,128)}', space=vmem, size = 0x9000, scoped, tag = 'internal scratch']
  %s0 = inlined_call_operand.vmem [shape: f32[8,256], index: 0, kind: input, shape index: {}]
  %s1 = inlined_call_operand.vmem [shape: f32[16,256], index: 1, kind: input, shape index: {}]
  %s2 = inlined_call_operand.vmem [shape: f32[128,16], index: 2, kind: input, shape index: {}]
  %s3 = inlined_call_operand.vmem [shape: f32[128,1], index: 3, kind: input, shape index: {}]
  %s4 = inlined_call_operand.vmem [shape: f32[4,16,32], index: 4, kind: input, shape index: {}]
  %s5 = inlined_call_operand.vmem [shape: f32[4,16,1], index: 5, kind: input, shape index: {}]
  %s6 = inlined_call_operand.vmem [shape: f32[4,8,1], index: 6, kind: input, shape index: {}]
  %s7 = inlined_call_operand.vmem [shape: f32[4,8,1], index: 7, kind: input, shape index: {}]
  %s8 = inlined_call_operand.vmem [shape: f32[4,8,8], index: 8, kind: input, shape index: {}]
  %s9 = inlined_call_operand.vmem [shape: f32[4,8,1], index: 9, kind: input, shape index: {}]
  %s10 = inlined_call_operand.vmem [shape: f32[4,32,8], index: 10, kind: input, shape index: {}]
  %s11 = inlined_call_operand.vmem [shape: f32[128,16], index: 11, kind: input, shape index: {}]
  %s12 = inlined_call_operand.vmem [shape: f32[4,32,1], index: 12, kind: input, shape index: {}]
  %s13 = inlined_call_operand.vmem [shape: f32[4,2,32,32], index: 13, kind: input, shape index: {}]
  %s14 = inlined_call_operand.vmem [shape: f32[4,2,32,1], index: 14, kind: input, shape index: {}]
  %s15 = inlined_call_operand.vmem [shape: f32[4,2,32,32], index: 15, kind: input, shape index: {}]
  %s16 = inlined_call_operand.vmem [shape: f32[4,2,32,1], index: 16, kind: input, shape index: {}]
  %s17 = inlined_call_operand.vmem [shape: f32[4,8,32], index: 17, kind: input, shape index: {}]
  %s18 = inlined_call_operand.vmem [shape: f32[4,8,1], index: 18, kind: input, shape index: {}]
  %s19 = inlined_call_operand.vmem [shape: f32[4,8,1], index: 19, kind: input, shape index: {}]
  %s20 = inlined_call_operand.vmem [shape: f32[8,1], index: 20, kind: input, shape index: {}]
  %s21 = inlined_call_operand.vmem [shape: f32[8,1], index: 21, kind: input, shape index: {}]
  %s22 = inlined_call_operand.hbm [shape: f32[8,256], index: 22, kind: output, shape index: {0}]
  %s23 = inlined_call_operand.hbm [shape: f32[1,256], index: 23, kind: output, shape index: {1}]
  %24 = xla_tuple %s22, %s23
  %s25 = sld [smem:[#allocation0]]
  $region167: #{tpu_custom_call.1} parent=0
    _
  %s27 = ssub.s32 1, %s25
  %s28 = scalar_select 0, %s27, %s25
  $region1: #{tpu_custom_call.1} parent=0
    #allocation2 [shape = 'u8[16384]{0}', space=vmem, size = 0x4000, scoped, tag = 'input window, operand 1']
    #allocation3 [shape = 'u8[8192]{0}', space=vmem, size = 0x2000, scoped, tag = 'output window, operand 0']
    #allocation4 [shape = 's32[2]{0}', space=sflag, size = 0x8, scoped, tag = 'scoped memory for tpu_custom_call.1']
    #allocation5 [shape = 'u8[1024]{0}', space=vmem, size = 0x400, scoped, tag = 'output window, operand 1']
    #allocation6 [shape = 's32[2]{0}', space=sflag, size = 0x8, scoped, tag = 'scoped memory for tpu_custom_call.1']
    %29 = vsyncpa [#allocation4], 0
    %s30 = scalar_lea.sflag [#allocation4], 1
    %31 = vsyncpa %s30, 0
    %32 = vsyncpa [#allocation6], 0
    %s33 = scalar_lea.sflag [#allocation6], 1
    %34 = vsyncpa %s33, 0
    loop: start=0, step=1, limit=4
    $region2: #{tpu_custom_call.1} parent=1 // loop_pre_header
      _
    $region3: #{tpu_custom_call.1} parent=1 // loop_header
      %s36 = sphi 0, %s40
      %p37 = scmp.ge.s32.totalorder %s36, 4
      %s46 = sphi 0, %s48
      %s49 = sphi 0, %s46
      %s50 = sphi 0, %s49
      %s66 = sphi 0, %s50
      %s72 = sphi 0, %s74
      %s75 = sphi 0, %s72
      %s76 = sphi 0, %s75
      %s92 = sphi 0, %s76
      %s96 = sphi 0, %s96
      %s98 = sphi 0, %s96
      %s99 = sphi 0, %s98
      %s113 = sphi 0, %s99
      %s117 = sphi 0, %s117
      %s119 = sphi 0, %s117
      %s120 = sphi 0, %s119
      %s134 = sphi 0, %s120
      %s138 = sphi 0, %s138
      %s140 = sphi 0, %s138
      %s141 = sphi 0, %s140
      %s155 = sphi 0, %s141
      %s159 = sphi 0, %s159
      %s161 = sphi 0, %s159
      %s162 = sphi 0, %s161
      %s176 = sphi 0, %s162
      %s180 = sphi 0, %s180
      %s182 = sphi 0, %s180
      %s183 = sphi 0, %s182
      %s197 = sphi 0, %s183
      %s201 = sphi 0, %s201
      %s203 = sphi 0, %s201
      %s204 = sphi 0, %s203
      %s218 = sphi 0, %s204
      %s222 = sphi 0, %s222
      %s224 = sphi 0, %s222
      %s225 = sphi 0, %s224
      %s239 = sphi 0, %s225
      %s243 = sphi 0, %s243
      %s245 = sphi 0, %s243
      %s246 = sphi 0, %s245
      %s260 = sphi 0, %s246
      %s264 = sphi 0, %s264
      %s266 = sphi 0, %s264
      %s267 = sphi 0, %s266
      %s281 = sphi 0, %s267
      %s285 = sphi 0, %s285
      %s287 = sphi 0, %s285
      %s288 = sphi 0, %s287
      %s302 = sphi 0, %s288
      %s306 = sphi 0, %s306
      %s308 = sphi 0, %s306
      %s309 = sphi 0, %s308
      %s323 = sphi 0, %s309
      %s327 = sphi 0, %s327
      %s329 = sphi 0, %s327
      %s330 = sphi 0, %s329
      %s344 = sphi 0, %s330
      %s348 = sphi 0, %s348
      %s350 = sphi 0, %s348
      %s351 = sphi 0, %s350
      %s365 = sphi 0, %s351
      %s369 = sphi 0, %s369
      %s371 = sphi 0, %s369
      %s372 = sphi 0, %s371
      %s386 = sphi 0, %s372
      %s390 = sphi 0, %s390
      %s392 = sphi 0, %s390
      %s393 = sphi 0, %s392
      %s407 = sphi 0, %s393
      %s411 = sphi 0, %s411
      %s413 = sphi 0, %s411
      %s414 = sphi 0, %s413
      %s428 = sphi 0, %s414
      %s432 = sphi 0, %s432
      %s434 = sphi 0, %s432
      %s435 = sphi 0, %s434
      %s449 = sphi 0, %s435
      %s453 = sphi 0, %s453
      %s455 = sphi 0, %s453
      %s456 = sphi 0, %s455
      %s470 = sphi 0, %s456
      %s474 = sphi 0, %s474
      %s476 = sphi 0, %s474
      %s477 = sphi 0, %s476
      %s491 = sphi 0, %s477
      %s495 = sphi 0, %s495
      %s497 = sphi 0, %s495
      %s498 = sphi 0, %s497
      %s512 = sphi 0, %s498
      %s518 = sphi 0, %s520
      %s521 = sphi 0, %s518
      %s522 = sphi 0, %s521
      %s538 = sphi 0, %s522
      %s544 = sphi 0, %s546
      %s547 = sphi 0, %s544
      %s548 = sphi 0, %s547
      %s564 = sphi 0, %s548
    $region4: #{tpu_custom_call.1} parent=1 // loop_header_branch
      %39 = sbr.rel (%p37) target = $region8
    $region5: #{tpu_custom_call.1} parent=1 // loop_body
      %s41 = ssub.s32 %s36, 1
      %s42 = ssub.s32 %s36, 2
      %s43 = sadd.s32 %s36, 1
      %s44 = ssub.s32 %s36, %s43
      %p45 = scmp.eq.s32.totalorder %s44, 0
      %s47 = sadd.s32 %s46, 1
      %s48 = scalar_select %p45, %s46, %s47
      %p51 = pneg %p45
      %p52 = scmp.eq.s32.totalorder %s36, 1
      %p53 = por %p51, %p52
      %p54 = scmp.ne.s32.totalorder %s46, %s49
      %p55 = scmp.eq.s32.totalorder %s36, 0
      %p56 = por %p54, %p55
      %p57 = scmp.ne.s32.totalorder %s46, %s49
      %p58 = scmp.eq.s32.totalorder %s41, 1
      %p59 = por %p57, %p58
      %p60 = scmp.ne.s32.totalorder %s49, %s50
      %p61 = scmp.eq.s32.totalorder %s41, 0
      %p62 = por %p60, %p61
      %p63 = scmp.ne.s32.totalorder %s49, %s50
      %p64 = scmp.eq.s32.totalorder %s42, 1
      %p65 = por %p63, %p64
      %p67 = scmp.ne.s32.totalorder %s50, %s66
      %p68 = scmp.eq.s32.totalorder %s42, 0
      %p69 = por %p67, %p68
      %s70 = ssub.s32 %s36, %s43
      %p71 = scmp.eq.s32.totalorder %s70, 0
      %s73 = sadd.s32 %s72, 1
      %s74 = scalar_select %p71, %s72, %s73
      %p77 = pneg %p71
      %p78 = scmp.eq.s32.totalorder %s36, 1
      %p79 = por %p77, %p78
      %p80 = scmp.ne.s32.totalorder %s72, %s75
      %p81 = scmp.eq.s32.totalorder %s36, 0
      %p82 = por %p80, %p81
      %p83 = scmp.ne.s32.totalorder %s72, %s75
      %p84 = scmp.eq.s32.totalorder %s41, 1
      %p85 = por %p83, %p84
      %p86 = scmp.ne.s32.totalorder %s75, %s76
      %p87 = scmp.eq.s32.totalorder %s41, 0
      %p88 = por %p86, %p87
      %p89 = scmp.ne.s32.totalorder %s75, %s76
      %p90 = scmp.eq.s32.totalorder %s42, 1
      %p91 = por %p89, %p90
      %p93 = scmp.ne.s32.totalorder %s76, %s92
      %p94 = scmp.eq.s32.totalorder %s42, 0
      %p95 = por %p93, %p94
      %s97 = sadd.s32 %s96, 1
      %p100 = scmp.eq.s32.totalorder %s36, 1
      %p101 = scmp.ne.s32.totalorder %s96, %s98
      %p102 = scmp.eq.s32.totalorder %s36, 0
      %p103 = por %p101, %p102
      %p104 = scmp.ne.s32.totalorder %s96, %s98
      %p105 = scmp.eq.s32.totalorder %s41, 1
      %p106 = por %p104, %p105
      %p107 = scmp.ne.s32.totalorder %s98, %s99
      %p108 = scmp.eq.s32.totalorder %s41, 0
      %p109 = por %p107, %p108
      %p110 = scmp.ne.s32.totalorder %s98, %s99
      %p111 = scmp.eq.s32.totalorder %s42, 1
      %p112 = por %p110, %p111
      %p114 = scmp.ne.s32.totalorder %s99, %s113
      %p115 = scmp.eq.s32.totalorder %s42, 0
      %p116 = por %p114, %p115
      %s118 = sadd.s32 %s117, 1
      %p121 = scmp.eq.s32.totalorder %s36, 1
      %p122 = scmp.ne.s32.totalorder %s117, %s119
      %p123 = scmp.eq.s32.totalorder %s36, 0
      %p124 = por %p122, %p123
      %p125 = scmp.ne.s32.totalorder %s117, %s119
      %p126 = scmp.eq.s32.totalorder %s41, 1
      %p127 = por %p125, %p126
      %p128 = scmp.ne.s32.totalorder %s119, %s120
      %p129 = scmp.eq.s32.totalorder %s41, 0
      %p130 = por %p128, %p129
      %p131 = scmp.ne.s32.totalorder %s119, %s120
      %p132 = scmp.eq.s32.totalorder %s42, 1
      %p133 = por %p131, %p132
      %p135 = scmp.ne.s32.totalorder %s120, %s134
      %p136 = scmp.eq.s32.totalorder %s42, 0
      %p137 = por %p135, %p136
      %s139 = sadd.s32 %s138, 1
      %p142 = scmp.eq.s32.totalorder %s36, 1
      %p143 = scmp.ne.s32.totalorder %s138, %s140
      %p144 = scmp.eq.s32.totalorder %s36, 0
      %p145 = por %p143, %p144
      %p146 = scmp.ne.s32.totalorder %s138, %s140
      %p147 = scmp.eq.s32.totalorder %s41, 1
      %p148 = por %p146, %p147
      %p149 = scmp.ne.s32.totalorder %s140, %s141
      %p150 = scmp.eq.s32.totalorder %s41, 0
      %p151 = por %p149, %p150
      %p152 = scmp.ne.s32.totalorder %s140, %s141
      %p153 = scmp.eq.s32.totalorder %s42, 1
      %p154 = por %p152, %p153
      %p156 = scmp.ne.s32.totalorder %s141, %s155
      %p157 = scmp.eq.s32.totalorder %s42, 0
      %p158 = por %p156, %p157
      %s160 = sadd.s32 %s159, 1
      %p163 = scmp.eq.s32.totalorder %s36, 1
      %p164 = scmp.ne.s32.totalorder %s159, %s161
      %p165 = scmp.eq.s32.totalorder %s36, 0
      %p166 = por %p164, %p165
      %p167 = scmp.ne.s32.totalorder %s159, %s161
      %p168 = scmp.eq.s32.totalorder %s41, 1
      %p169 = por %p167, %p168
      %p170 = scmp.ne.s32.totalorder %s161, %s162
      %p171 = scmp.eq.s32.totalorder %s41, 0
      %p172 = por %p170, %p171
      %p173 = scmp.ne.s32.totalorder %s161, %s162
      %p174 = scmp.eq.s32.totalorder %s42, 1
      %p175 = por %p173, %p174
      %p177 = scmp.ne.s32.totalorder %s162, %s176
      %p178 = scmp.eq.s32.totalorder %s42, 0
      %p179 = por %p177, %p178
      %s181 = sadd.s32 %s180, 1
      %p184 = scmp.eq.s32.totalorder %s36, 1
      %p185 = scmp.ne.s32.totalorder %s180, %s182
      %p186 = scmp.eq.s32.totalorder %s36, 0
      %p187 = por %p185, %p186
      %p188 = scmp.ne.s32.totalorder %s180, %s182
      %p189 = scmp.eq.s32.totalorder %s41, 1
      %p190 = por %p188, %p189
      %p191 = scmp.ne.s32.totalorder %s182, %s183
      %p192 = scmp.eq.s32.totalorder %s41, 0
      %p193 = por %p191, %p192
      %p194 = scmp.ne.s32.totalorder %s182, %s183
      %p195 = scmp.eq.s32.totalorder %s42, 1
      %p196 = por %p194, %p195
      %p198 = scmp.ne.s32.totalorder %s183, %s197
      %p199 = scmp.eq.s32.totalorder %s42, 0
      %p200 = por %p198, %p199
      %s202 = sadd.s32 %s201, 1
      %p205 = scmp.eq.s32.totalorder %s36, 1
      %p206 = scmp.ne.s32.totalorder %s201, %s203
      %p207 = scmp.eq.s32.totalorder %s36, 0
      %p208 = por %p206, %p207
      %p209 = scmp.ne.s32.totalorder %s201, %s203
      %p210 = scmp.eq.s32.totalorder %s41, 1
      %p211 = por %p209, %p210
      %p212 = scmp.ne.s32.totalorder %s203, %s204
      %p213 = scmp.eq.s32.totalorder %s41, 0
      %p214 = por %p212, %p213
      %p215 = scmp.ne.s32.totalorder %s203, %s204
      %p216 = scmp.eq.s32.totalorder %s42, 1
      %p217 = por %p215, %p216
      %p219 = scmp.ne.s32.totalorder %s204, %s218
      %p220 = scmp.eq.s32.totalorder %s42, 0
      %p221 = por %p219, %p220
      %s223 = sadd.s32 %s222, 1
      %p226 = scmp.eq.s32.totalorder %s36, 1
      %p227 = scmp.ne.s32.totalorder %s222, %s224
      %p228 = scmp.eq.s32.totalorder %s36, 0
      %p229 = por %p227, %p228
      %p230 = scmp.ne.s32.totalorder %s222, %s224
      %p231 = scmp.eq.s32.totalorder %s41, 1
      %p232 = por %p230, %p231
      %p233 = scmp.ne.s32.totalorder %s224, %s225
      %p234 = scmp.eq.s32.totalorder %s41, 0
      %p235 = por %p233, %p234
      %p236 = scmp.ne.s32.totalorder %s224, %s225
      %p237 = scmp.eq.s32.totalorder %s42, 1
      %p238 = por %p236, %p237
      %p240 = scmp.ne.s32.totalorder %s225, %s239
      %p241 = scmp.eq.s32.totalorder %s42, 0
      %p242 = por %p240, %p241
      %s244 = sadd.s32 %s243, 1
      %p247 = scmp.eq.s32.totalorder %s36, 1
      %p248 = scmp.ne.s32.totalorder %s243, %s245
      %p249 = scmp.eq.s32.totalorder %s36, 0
      %p250 = por %p248, %p249
      %p251 = scmp.ne.s32.totalorder %s243, %s245
      %p252 = scmp.eq.s32.totalorder %s41, 1
      %p253 = por %p251, %p252
      %p254 = scmp.ne.s32.totalorder %s245, %s246
      %p255 = scmp.eq.s32.totalorder %s41, 0
      %p256 = por %p254, %p255
      %p257 = scmp.ne.s32.totalorder %s245, %s246
      %p258 = scmp.eq.s32.totalorder %s42, 1
      %p259 = por %p257, %p258
      %p261 = scmp.ne.s32.totalorder %s246, %s260
      %p262 = scmp.eq.s32.totalorder %s42, 0
      %p263 = por %p261, %p262
      %s265 = sadd.s32 %s264, 1
      %p268 = scmp.eq.s32.totalorder %s36, 1
      %p269 = scmp.ne.s32.totalorder %s264, %s266
      %p270 = scmp.eq.s32.totalorder %s36, 0
      %p271 = por %p269, %p270
      %p272 = scmp.ne.s32.totalorder %s264, %s266
      %p273 = scmp.eq.s32.totalorder %s41, 1
      %p274 = por %p272, %p273
      %p275 = scmp.ne.s32.totalorder %s266, %s267
      %p276 = scmp.eq.s32.totalorder %s41, 0
      %p277 = por %p275, %p276
      %p278 = scmp.ne.s32.totalorder %s266, %s267
      %p279 = scmp.eq.s32.totalorder %s42, 1
      %p280 = por %p278, %p279
      %p282 = scmp.ne.s32.totalorder %s267, %s281
      %p283 = scmp.eq.s32.totalorder %s42, 0
      %p284 = por %p282, %p283
      %s286 = sadd.s32 %s285, 1
      %p289 = scmp.eq.s32.totalorder %s36, 1
      %p290 = scmp.ne.s32.totalorder %s285, %s287
      %p291 = scmp.eq.s32.totalorder %s36, 0
      %p292 = por %p290, %p291
      %p293 = scmp.ne.s32.totalorder %s285, %s287
      %p294 = scmp.eq.s32.totalorder %s41, 1
      %p295 = por %p293, %p294
      %p296 = scmp.ne.s32.totalorder %s287, %s288
      %p297 = scmp.eq.s32.totalorder %s41, 0
      %p298 = por %p296, %p297
      %p299 = scmp.ne.s32.totalorder %s287, %s288
      %p300 = scmp.eq.s32.totalorder %s42, 1
      %p301 = por %p299, %p300
      %p303 = scmp.ne.s32.totalorder %s288, %s302
      %p304 = scmp.eq.s32.totalorder %s42, 0
      %p305 = por %p303, %p304
      %s307 = sadd.s32 %s306, 1
      %p310 = scmp.eq.s32.totalorder %s36, 1
      %p311 = scmp.ne.s32.totalorder %s306, %s308
      %p312 = scmp.eq.s32.totalorder %s36, 0
      %p313 = por %p311, %p312
      %p314 = scmp.ne.s32.totalorder %s306, %s308
      %p315 = scmp.eq.s32.totalorder %s41, 1
      %p316 = por %p314, %p315
      %p317 = scmp.ne.s32.totalorder %s308, %s309
      %p318 = scmp.eq.s32.totalorder %s41, 0
      %p319 = por %p317, %p318
      %p320 = scmp.ne.s32.totalorder %s308, %s309
      %p321 = scmp.eq.s32.totalorder %s42, 1
      %p322 = por %p320, %p321
      %p324 = scmp.ne.s32.totalorder %s309, %s323
      %p325 = scmp.eq.s32.totalorder %s42, 0
      %p326 = por %p324, %p325
      %s328 = sadd.s32 %s327, 1
      %p331 = scmp.eq.s32.totalorder %s36, 1
      %p332 = scmp.ne.s32.totalorder %s327, %s329
      %p333 = scmp.eq.s32.totalorder %s36, 0
      %p334 = por %p332, %p333
      %p335 = scmp.ne.s32.totalorder %s327, %s329
      %p336 = scmp.eq.s32.totalorder %s41, 1
      %p337 = por %p335, %p336
      %p338 = scmp.ne.s32.totalorder %s329, %s330
      %p339 = scmp.eq.s32.totalorder %s41, 0
      %p340 = por %p338, %p339
      %p341 = scmp.ne.s32.totalorder %s329, %s330
      %p342 = scmp.eq.s32.totalorder %s42, 1
      %p343 = por %p341, %p342
      %p345 = scmp.ne.s32.totalorder %s330, %s344
      %p346 = scmp.eq.s32.totalorder %s42, 0
      %p347 = por %p345, %p346
      %s349 = sadd.s32 %s348, 1
      %p352 = scmp.eq.s32.totalorder %s36, 1
      %p353 = scmp.ne.s32.totalorder %s348, %s350
      %p354 = scmp.eq.s32.totalorder %s36, 0
      %p355 = por %p353, %p354
      %p356 = scmp.ne.s32.totalorder %s348, %s350
      %p357 = scmp.eq.s32.totalorder %s41, 1
      %p358 = por %p356, %p357
      %p359 = scmp.ne.s32.totalorder %s350, %s351
      %p360 = scmp.eq.s32.totalorder %s41, 0
      %p361 = por %p359, %p360
      %p362 = scmp.ne.s32.totalorder %s350, %s351
      %p363 = scmp.eq.s32.totalorder %s42, 1
      %p364 = por %p362, %p363
      %p366 = scmp.ne.s32.totalorder %s351, %s365
      %p367 = scmp.eq.s32.totalorder %s42, 0
      %p368 = por %p366, %p367
      %s370 = sadd.s32 %s369, 1
      %p373 = scmp.eq.s32.totalorder %s36, 1
      %p374 = scmp.ne.s32.totalorder %s369, %s371
      %p375 = scmp.eq.s32.totalorder %s36, 0
      %p376 = por %p374, %p375
      %p377 = scmp.ne.s32.totalorder %s369, %s371
      %p378 = scmp.eq.s32.totalorder %s41, 1
      %p379 = por %p377, %p378
      %p380 = scmp.ne.s32.totalorder %s371, %s372
      %p381 = scmp.eq.s32.totalorder %s41, 0
      %p382 = por %p380, %p381
      %p383 = scmp.ne.s32.totalorder %s371, %s372
      %p384 = scmp.eq.s32.totalorder %s42, 1
      %p385 = por %p383, %p384
      %p387 = scmp.ne.s32.totalorder %s372, %s386
      %p388 = scmp.eq.s32.totalorder %s42, 0
      %p389 = por %p387, %p388
      %s391 = sadd.s32 %s390, 1
      %p394 = scmp.eq.s32.totalorder %s36, 1
      %p395 = scmp.ne.s32.totalorder %s390, %s392
      %p396 = scmp.eq.s32.totalorder %s36, 0
      %p397 = por %p395, %p396
      %p398 = scmp.ne.s32.totalorder %s390, %s392
      %p399 = scmp.eq.s32.totalorder %s41, 1
      %p400 = por %p398, %p399
      %p401 = scmp.ne.s32.totalorder %s392, %s393
      %p402 = scmp.eq.s32.totalorder %s41, 0
      %p403 = por %p401, %p402
      %p404 = scmp.ne.s32.totalorder %s392, %s393
      %p405 = scmp.eq.s32.totalorder %s42, 1
      %p406 = por %p404, %p405
      %p408 = scmp.ne.s32.totalorder %s393, %s407
      %p409 = scmp.eq.s32.totalorder %s42, 0
      %p410 = por %p408, %p409
      %s412 = sadd.s32 %s411, 1
      %p415 = scmp.eq.s32.totalorder %s36, 1
      %p416 = scmp.ne.s32.totalorder %s411, %s413
      %p417 = scmp.eq.s32.totalorder %s36, 0
      %p418 = por %p416, %p417
      %p419 = scmp.ne.s32.totalorder %s411, %s413
      %p420 = scmp.eq.s32.totalorder %s41, 1
      %p421 = por %p419, %p420
      %p422 = scmp.ne.s32.totalorder %s413, %s414
      %p423 = scmp.eq.s32.totalorder %s41, 0
      %p424 = por %p422, %p423
      %p425 = scmp.ne.s32.totalorder %s413, %s414
      %p426 = scmp.eq.s32.totalorder %s42, 1
      %p427 = por %p425, %p426
      %p429 = scmp.ne.s32.totalorder %s414, %s428
      %p430 = scmp.eq.s32.totalorder %s42, 0
      %p431 = por %p429, %p430
      %s433 = sadd.s32 %s432, 1
      %p436 = scmp.eq.s32.totalorder %s36, 1
      %p437 = scmp.ne.s32.totalorder %s432, %s434
      %p438 = scmp.eq.s32.totalorder %s36, 0
      %p439 = por %p437, %p438
      %p440 = scmp.ne.s32.totalorder %s432, %s434
      %p441 = scmp.eq.s32.totalorder %s41, 1
      %p442 = por %p440, %p441
      %p443 = scmp.ne.s32.totalorder %s434, %s435
      %p444 = scmp.eq.s32.totalorder %s41, 0
      %p445 = por %p443, %p444
      %p446 = scmp.ne.s32.totalorder %s434, %s435
      %p447 = scmp.eq.s32.totalorder %s42, 1
      %p448 = por %p446, %p447
      %p450 = scmp.ne.s32.totalorder %s435, %s449
      %p451 = scmp.eq.s32.totalorder %s42, 0
      %p452 = por %p450, %p451
      %s454 = sadd.s32 %s453, 1
      %p457 = scmp.eq.s32.totalorder %s36, 1
      %p458 = scmp.ne.s32.totalorder %s453, %s455
      %p459 = scmp.eq.s32.totalorder %s36, 0
      %p460 = por %p458, %p459
      %p461 = scmp.ne.s32.totalorder %s453, %s455
      %p462 = scmp.eq.s32.totalorder %s41, 1
      %p463 = por %p461, %p462
      %p464 = scmp.ne.s32.totalorder %s455, %s456
      %p465 = scmp.eq.s32.totalorder %s41, 0
      %p466 = por %p464, %p465
      %p467 = scmp.ne.s32.totalorder %s455, %s456
      %p468 = scmp.eq.s32.totalorder %s42, 1
      %p469 = por %p467, %p468
      %p471 = scmp.ne.s32.totalorder %s456, %s470
      %p472 = scmp.eq.s32.totalorder %s42, 0
      %p473 = por %p471, %p472
      %s475 = sadd.s32 %s474, 1
      %p478 = scmp.eq.s32.totalorder %s36, 1
      %p479 = scmp.ne.s32.totalorder %s474, %s476
      %p480 = scmp.eq.s32.totalorder %s36, 0
      %p481 = por %p479, %p480
      %p482 = scmp.ne.s32.totalorder %s474, %s476
      %p483 = scmp.eq.s32.totalorder %s41, 1
      %p484 = por %p482, %p483
      %p485 = scmp.ne.s32.totalorder %s476, %s477
      %p486 = scmp.eq.s32.totalorder %s41, 0
      %p487 = por %p485, %p486
      %p488 = scmp.ne.s32.totalorder %s476, %s477
      %p489 = scmp.eq.s32.totalorder %s42, 1
      %p490 = por %p488, %p489
      %p492 = scmp.ne.s32.totalorder %s477, %s491
      %p493 = scmp.eq.s32.totalorder %s42, 0
      %p494 = por %p492, %p493
      %s496 = sadd.s32 %s495, 1
      %p499 = scmp.eq.s32.totalorder %s36, 1
      %p500 = scmp.ne.s32.totalorder %s495, %s497
      %p501 = scmp.eq.s32.totalorder %s36, 0
      %p502 = por %p500, %p501
      %p503 = scmp.ne.s32.totalorder %s495, %s497
      %p504 = scmp.eq.s32.totalorder %s41, 1
      %p505 = por %p503, %p504
      %p506 = scmp.ne.s32.totalorder %s497, %s498
      %p507 = scmp.eq.s32.totalorder %s41, 0
      %p508 = por %p506, %p507
      %p509 = scmp.ne.s32.totalorder %s497, %s498
      %p510 = scmp.eq.s32.totalorder %s42, 1
      %p511 = por %p509, %p510
      %p513 = scmp.ne.s32.totalorder %s498, %s512
      %p514 = scmp.eq.s32.totalorder %s42, 0
      %p515 = por %p513, %p514
      %s516 = ssub.s32 %s36, %s43
      %p517 = scmp.eq.s32.totalorder %s516, 0
      %s519 = sadd.s32 %s518, 1
      %s520 = scalar_select %p517, %s518, %s519
      %p523 = pneg %p517
      %p524 = scmp.eq.s32.totalorder %s36, 1
      %p525 = por %p523, %p524
      %p526 = scmp.ne.s32.totalorder %s518, %s521
      %p527 = scmp.eq.s32.totalorder %s36, 0
      %p528 = por %p526, %p527
      %p529 = scmp.ne.s32.totalorder %s518, %s521
      %p530 = scmp.eq.s32.totalorder %s41, 1
      %p531 = por %p529, %p530
      %p532 = scmp.ne.s32.totalorder %s521, %s522
      %p533 = scmp.eq.s32.totalorder %s41, 0
      %p534 = por %p532, %p533
      %p535 = scmp.ne.s32.totalorder %s521, %s522
      %p536 = scmp.eq.s32.totalorder %s42, 1
      %p537 = por %p535, %p536
      %p539 = scmp.ne.s32.totalorder %s522, %s538
      %p540 = scmp.eq.s32.totalorder %s42, 0
      %p541 = por %p539, %p540
      %s542 = ssub.s32 %s36, %s43
      %p543 = scmp.eq.s32.totalorder %s542, 0
      %s545 = sadd.s32 %s544, 1
      %s546 = scalar_select %p543, %s544, %s545
      %p549 = pneg %p543
      %p550 = scmp.eq.s32.totalorder %s36, 1
      %p551 = por %p549, %p550
      %p552 = scmp.ne.s32.totalorder %s544, %s547
      %p553 = scmp.eq.s32.totalorder %s36, 0
      %p554 = por %p552, %p553
      %p555 = scmp.ne.s32.totalorder %s544, %s547
      %p556 = scmp.eq.s32.totalorder %s41, 1
      %p557 = por %p555, %p556
      %p558 = scmp.ne.s32.totalorder %s547, %s548
      %p559 = scmp.eq.s32.totalorder %s41, 0
      %p560 = por %p558, %p559
      %p561 = scmp.ne.s32.totalorder %s547, %s548
      %p562 = scmp.eq.s32.totalorder %s42, 1
      %p563 = por %p561, %p562
      %p565 = scmp.ne.s32.totalorder %s548, %s564
      %p566 = scmp.eq.s32.totalorder %s42, 0
      %p567 = por %p565, %p566
      %p568 = scmp.le.s32.totalorder 1, %s36
      %p569 = scmp.lt.s32.totalorder %s36, 3
      %p570 = pnand %p568, %p569
      %p571 = pneg %p570
      // Predicated region
      $region9: #{tpu_custom_call.1} parent=5 // pred_check
        _
      $region10: #{tpu_custom_call.1} parent=5 // pred_check_branch
        %573 = sbr.rel (%p570) target = $region12
      $region11: #{tpu_custom_call.1} parent=5 // pred_region
        %s574 = ssub.s32 %s36, 1
        // Predicated region
        $region13: #{tpu_custom_call.1} parent=11 // pred_check
          %p575 = pneg %p109
        $region14: #{tpu_custom_call.1} parent=11 // pred_check_branch
          %577 = sbr.rel (%p575) target = $region16
        $region15: #{tpu_custom_call.1} parent=11 // pred_region
          _
        $region16: #{tpu_custom_call.1} parent=11 // pred_fallthru
          _
        // Predicated region
        $region17: #{tpu_custom_call.1} parent=11 // pred_check
          %p578 = pneg %p130
        $region18: #{tpu_custom_call.1} parent=11 // pred_check_branch
          %580 = sbr.rel (%p578) target = $region20
        $region19: #{tpu_custom_call.1} parent=11 // pred_region
          _
        $region20: #{tpu_custom_call.1} parent=11 // pred_fallthru
          _
        // Predicated region
        $region21: #{tpu_custom_call.1} parent=11 // pred_check
          %p581 = pneg %p151
        $region22: #{tpu_custom_call.1} parent=11 // pred_check_branch
          %583 = sbr.rel (%p581) target = $region24
        $region23: #{tpu_custom_call.1} parent=11 // pred_region
          _
        $region24: #{tpu_custom_call.1} parent=11 // pred_fallthru
          _
        // Predicated region
        $region25: #{tpu_custom_call.1} parent=11 // pred_check
          %p584 = pneg %p172
        $region26: #{tpu_custom_call.1} parent=11 // pred_check_branch
          %586 = sbr.rel (%p584) target = $region28
        $region27: #{tpu_custom_call.1} parent=11 // pred_region
          _
        $region28: #{tpu_custom_call.1} parent=11 // pred_fallthru
          _
        // Predicated region
        $region29: #{tpu_custom_call.1} parent=11 // pred_check
          %p587 = pneg %p193
        $region30: #{tpu_custom_call.1} parent=11 // pred_check_branch
          %589 = sbr.rel (%p587) target = $region32
        $region31: #{tpu_custom_call.1} parent=11 // pred_region
          _
        $region32: #{tpu_custom_call.1} parent=11 // pred_fallthru
          _
        // Predicated region
        $region33: #{tpu_custom_call.1} parent=11 // pred_check
          %p590 = pneg %p214
        $region34: #{tpu_custom_call.1} parent=11 // pred_check_branch
          %592 = sbr.rel (%p590) target = $region36
        $region35: #{tpu_custom_call.1} parent=11 // pred_region
          _
        $region36: #{tpu_custom_call.1} parent=11 // pred_fallthru
          _
        // Predicated region
        $region37: #{tpu_custom_call.1} parent=11 // pred_check
          %p593 = pneg %p235
        $region38: #{tpu_custom_call.1} parent=11 // pred_check_branch
          %595 = sbr.rel (%p593) target = $region40
        $region39: #{tpu_custom_call.1} parent=11 // pred_region
          _
        $region40: #{tpu_custom_call.1} parent=11 // pred_fallthru
          _
        // Predicated region
        $region41: #{tpu_custom_call.1} parent=11 // pred_check
          %p596 = pneg %p256
        $region42: #{tpu_custom_call.1} parent=11 // pred_check_branch
          %598 = sbr.rel (%p596) target = $region44
        $region43: #{tpu_custom_call.1} parent=11 // pred_region
          _
        $region44: #{tpu_custom_call.1} parent=11 // pred_fallthru
          _
        // Predicated region
        $region45: #{tpu_custom_call.1} parent=11 // pred_check
          %p599 = pneg %p277
        $region46: #{tpu_custom_call.1} parent=11 // pred_check_branch
          %601 = sbr.rel (%p599) target = $region48
        $region47: #{tpu_custom_call.1} parent=11 // pred_region
          _
        $region48: #{tpu_custom_call.1} parent=11 // pred_fallthru
          _
        // Predicated region
        $region49: #{tpu_custom_call.1} parent=11 // pred_check
          %p602 = pneg %p298
        $region50: #{tpu_custom_call.1} parent=11 // pred_check_branch
          %604 = sbr.rel (%p602) target = $region52
        $region51: #{tpu_custom_call.1} parent=11 // pred_region
          _
        $region52: #{tpu_custom_call.1} parent=11 // pred_fallthru
          _
        // Predicated region
        $region53: #{tpu_custom_call.1} parent=11 // pred_check
          %p605 = pneg %p319
        $region54: #{tpu_custom_call.1} parent=11 // pred_check_branch
          %607 = sbr.rel (%p605) target = $region56
        $region55: #{tpu_custom_call.1} parent=11 // pred_region
          _
        $region56: #{tpu_custom_call.1} parent=11 // pred_fallthru
          _
        // Predicated region
        $region57: #{tpu_custom_call.1} parent=11 // pred_check
          %p608 = pneg %p340
        $region58: #{tpu_custom_call.1} parent=11 // pred_check_branch
          %610 = sbr.rel (%p608) target = $region60
        $region59: #{tpu_custom_call.1} parent=11 // pred_region
          _
        $region60: #{tpu_custom_call.1} parent=11 // pred_fallthru
          _
        // Predicated region
        $region61: #{tpu_custom_call.1} parent=11 // pred_check
          %p611 = pneg %p361
        $region62: #{tpu_custom_call.1} parent=11 // pred_check_branch
          %613 = sbr.rel (%p611) target = $region64
        $region63: #{tpu_custom_call.1} parent=11 // pred_region
          _
        $region64: #{tpu_custom_call.1} parent=11 // pred_fallthru
          _
        // Predicated region
        $region65: #{tpu_custom_call.1} parent=11 // pred_check
          %p614 = pneg %p382
        $region66: #{tpu_custom_call.1} parent=11 // pred_check_branch
          %616 = sbr.rel (%p614) target = $region68
        $region67: #{tpu_custom_call.1} parent=11 // pred_region
          _
        $region68: #{tpu_custom_call.1} parent=11 // pred_fallthru
          _
        // Predicated region
        $region69: #{tpu_custom_call.1} parent=11 // pred_check
          %p617 = pneg %p403
        $region70: #{tpu_custom_call.1} parent=11 // pred_check_branch
          %619 = sbr.rel (%p617) target = $region72
        $region71: #{tpu_custom_call.1} parent=11 // pred_region
          _
        $region72: #{tpu_custom_call.1} parent=11 // pred_fallthru
          _
        // Predicated region
        $region73: #{tpu_custom_call.1} parent=11 // pred_check
          %p620 = pneg %p424
        $region74: #{tpu_custom_call.1} parent=11 // pred_check_branch
          %622 = sbr.rel (%p620) target = $region76
        $region75: #{tpu_custom_call.1} parent=11 // pred_region
          _
        $region76: #{tpu_custom_call.1} parent=11 // pred_fallthru
          _
        // Predicated region
        $region77: #{tpu_custom_call.1} parent=11 // pred_check
          %p623 = pneg %p445
        $region78: #{tpu_custom_call.1} parent=11 // pred_check_branch
          %625 = sbr.rel (%p623) target = $region80
        $region79: #{tpu_custom_call.1} parent=11 // pred_region
          _
        $region80: #{tpu_custom_call.1} parent=11 // pred_fallthru
          _
        // Predicated region
        $region81: #{tpu_custom_call.1} parent=11 // pred_check
          %p626 = pneg %p466
        $region82: #{tpu_custom_call.1} parent=11 // pred_check_branch
          %628 = sbr.rel (%p626) target = $region84
        $region83: #{tpu_custom_call.1} parent=11 // pred_region
          _
        $region84: #{tpu_custom_call.1} parent=11 // pred_fallthru
          _
        // Predicated region
        $region85: #{tpu_custom_call.1} parent=11 // pred_check
          %p629 = pneg %p487
        $region86: #{tpu_custom_call.1} parent=11 // pred_check_branch
          %631 = sbr.rel (%p629) target = $region88
        $region87: #{tpu_custom_call.1} parent=11 // pred_region
          _
        $region88: #{tpu_custom_call.1} parent=11 // pred_fallthru
          _
        // Predicated region
        $region89: #{tpu_custom_call.1} parent=11 // pred_check
          %p632 = pneg %p508
        $region90: #{tpu_custom_call.1} parent=11 // pred_check_branch
          %634 = sbr.rel (%p632) target = $region92
        $region91: #{tpu_custom_call.1} parent=11 // pred_region
          _
        $region92: #{tpu_custom_call.1} parent=11 // pred_fallthru
          _
      $region12: #{tpu_custom_call.1} parent=5 // pred_fallthru
        _
      %p635 = scmp.lt.s32.totalorder %s36, 2
      // Predicated region
      $region93: #{tpu_custom_call.1} parent=5 // pred_check
        %p636 = pneg %p635
      $region94: #{tpu_custom_call.1} parent=5 // pred_check_branch
        %638 = sbr.rel (%p636) target = $region96
      $region95: #{tpu_custom_call.1} parent=5 // pred_region
        // Predicated region
        $region97: #{tpu_custom_call.1} parent=95 // pred_check
          %p639 = pneg %p56
        $region98: #{tpu_custom_call.1} parent=95 // pred_check_branch
          %641 = sbr.rel (%p639) target = $region100
        $region99: #{tpu_custom_call.1} parent=95 // pred_region
          %p642 = scmp.lt.s32.totalorder %s36, 1
          %s643 = scalar_select %p642, %s36, 1
          %s644 = smul.addr %s643, 8
          %s645 = scalar_lea.vmem %s0, %s644
        $region100: #{tpu_custom_call.1} parent=95 // pred_fallthru
          _
        // Predicated region
        $region101: #{tpu_custom_call.1} parent=95 // pred_check
          %p646 = pneg %p82
        $region102: #{tpu_custom_call.1} parent=95 // pred_check_branch
          %648 = sbr.rel (%p646) target = $region104
        $region103: #{tpu_custom_call.1} parent=95 // pred_region
          %s649 = sand.u32 %s72, 1
          %s650 = sand.u32 %s72, 1
          %s651 = smul.addr %s650, 16
          %s652 = scalar_lea.vmem [#allocation2], %s651
          %s653 = smul.addr %s36, 8
          %s654 = scalar_lea.vmem %s1, %s653
          // Predicated region
          $region105: #{tpu_custom_call.1} parent=103 // pred_check
            _
          $region106: #{tpu_custom_call.1} parent=103 // pred_check_branch
            %656 = sbr.rel (0) target = $region108
          $region107: #{tpu_custom_call.1} parent=103 // pred_region
            // Predicated region
            $region109: #{tpu_custom_call.1} parent=107 // pred_check
              _
            $region110: #{tpu_custom_call.1} parent=107 // pred_check_branch
              %658 = sbr.rel (0) target = $region112
            $region111: #{tpu_custom_call.1} parent=107 // pred_region
              // Predicated region
              $region124: #{tpu_custom_call.1} parent=111 // pred_check
                _
              $region125: #{tpu_custom_call.1} parent=111 // pred_check_branch
                %676 = sbr.rel (0) target = $region127
              $region126: #{tpu_custom_call.1} parent=111 // pred_region
                loop: start=0, step=1, limit=1
                $region128: #{tpu_custom_call.1} parent=126 // loop_pre_header
                  _
                $region129: #{tpu_custom_call.1} parent=126 // loop_header
                  %s678 = sphi 0, %s682
                  %p679 = scmp.ge.s32.totalorder %s678, 1
                  %s683 = sphi %s654, %s654
                  %s684 = sphi %s652, %s652
                $region130: #{tpu_custom_call.1} parent=126 // loop_header_branch
                  %681 = sbr.rel (%p679) target = $region134
                $region131: #{tpu_custom_call.1} parent=126 // loop_body
                  %v685 = vld [vmem:[%s683] sm:$0xff]
                  %686 = vst [vmem:[%s684] sm:$0xff] %v685
                  %v687 = vld [vmem:[%s683 + $0x10] sm:$0xff]
                  %688 = vst [vmem:[%s684 + $0x8] sm:$0xff] %v687
                $region132: #{tpu_custom_call.1} parent=126 // loop_footer
                  %s682 = sadd.s32 1, %s678
                $region133: #{tpu_custom_call.1} parent=126 // loop_footer_branch
                  %677 = sbr.rel target = $region129
                $region134: #{tpu_custom_call.1} parent=126 // loop_exit
                  _
              $region127: #{tpu_custom_call.1} parent=111 // pred_fallthru
                _
              // Predicated region
              $region135: #{tpu_custom_call.1} parent=111 // pred_check
                _
              $region136: #{tpu_custom_call.1} parent=111 // pred_check_branch
                %690 = sbr.rel target = $region138
              $region137: #{tpu_custom_call.1} parent=111 // pred_region
                _
              $region138: #{tpu_custom_call.1} parent=111 // pred_fallthru
                _
            $region112: #{tpu_custom_call.1} parent=107 // pred_fallthru
              _
            // Predicated region
            $region113: #{tpu_custom_call.1} parent=107 // pred_check
              _
            $region114: #{tpu_custom_call.1} parent=107 // pred_check_branch
              %660 = sbr.rel target = $region116
            $region115: #{tpu_custom_call.1} parent=107 // pred_region
              %s662 = ssub.s32 256, 1
              loop: start=0, step=1, limit=1
              $region117: #{tpu_custom_call.1} parent=115 // loop_pre_header
                _
              $region118: #{tpu_custom_call.1} parent=115 // loop_header
                %s664 = sphi 0, %s668
                %p665 = scmp.ge.s32.totalorder %s664, 1
                %s669 = sphi %s654, %s654
                %s670 = sphi %s652, %s652
              $region119: #{tpu_custom_call.1} parent=115 // loop_header_branch
                %667 = sbr.rel (%p665) target = $region123
              $region120: #{tpu_custom_call.1} parent=115 // loop_body
                %v671 = vld [vmem:[%s669] sm:%s662]
                %672 = vst [vmem:[%s670] sm:%s662] %v671
                %v673 = vld [vmem:[%s669 + $0x10] sm:%s662]
                %674 = vst [vmem:[%s670 + $0x8] sm:%s662] %v673
              $region121: #{tpu_custom_call.1} parent=115 // loop_footer
                %s668 = sadd.s32 1, %s664
              $region122: #{tpu_custom_call.1} parent=115 // loop_footer_branch
                %663 = sbr.rel target = $region118
              $region123: #{tpu_custom_call.1} parent=115 // loop_exit
                _
            $region116: #{tpu_custom_call.1} parent=107 // pred_fallthru
              _
          $region108: #{tpu_custom_call.1} parent=103 // pred_fallthru
            _
          %691 = vnop
        $region104: #{tpu_custom_call.1} parent=95 // pred_fallthru
          _
      $region96: #{tpu_custom_call.1} parent=5 // pred_fallthru
        _
      %p692 = scmp.le.s32.totalorder 1, %s36
      %p693 = scmp.lt.s32.totalorder %s36, 3
      %p694 = pnand %p692, %p693
      %p695 = pneg %p694
      // Predicated region
      $region139: #{tpu_custom_call.1} parent=5 // pred_check
        _
      $region140: #{tpu_custom_call.1} parent=5 // pred_check_branch
        %697 = sbr.rel (%p694) target = $region142
      $region141: #{tpu_custom_call.1} parent=5 // pred_region
        %s698 = ssub.s32 %s36, 1
        %s699 = sand.u32 %s75, 1
        %s700 = sand.u32 %s75, 1
        %s701 = smul.addr %s700, 16
        %s702 = scalar_lea.vmem [#allocation2], %s701
        // Predicated region
        $region143: #{tpu_custom_call.1} parent=141 // pred_check
          %p703 = pneg %p88
        $region144: #{tpu_custom_call.1} parent=141 // pred_check_branch
          %705 = sbr.rel (%p703) target = $region146
        $region145: #{tpu_custom_call.1} parent=141 // pred_region
          _
        $region146: #{tpu_custom_call.1} parent=141 // pred_fallthru
          _
        %p706 = scmp.lt.s32.totalorder %s41, 1
        %s707 = scalar_select %p706, %s41, 1
        %s708 = smul.addr %s707, 8
        %s709 = scalar_lea.vmem %s0, %s708
        %p710 = pneg %p62
        %p711 = pneg %p59
        %s712 = sand.u32 %s75, 1
        %s713 = sand.u32 %s75, 1
        %s714 = smul.addr %s713, 16
        %s715 = scalar_lea.vmem [#allocation2], %s714
        %p716 = pneg %p88
        %p717 = pneg %p85
        %p718 = pneg %p109
        %p719 = pneg %p106
        %p720 = pneg %p130
        %p721 = pneg %p127
        %p722 = pneg %p151
        %p723 = pneg %p148
        %p724 = pneg %p172
        %p725 = pneg %p169
        %p726 = pneg %p193
        %p727 = pneg %p190
        %p728 = pneg %p214
        %p729 = pneg %p211
        %p730 = pneg %p235
        %p731 = pneg %p232
        %p732 = pneg %p256
        %p733 = pneg %p253
        %p734 = pneg %p277
        %p735 = pneg %p274
        %p736 = pneg %p298
        %p737 = pneg %p295
        %p738 = pneg %p319
        %p739 = pneg %p316
        %p740 = pneg %p340
        %p741 = pneg %p337
        %p742 = pneg %p361
        %p743 = pneg %p358
        %p744 = pneg %p382
        %p745 = pneg %p379
        %p746 = pneg %p403
        %p747 = pneg %p400
        %p748 = pneg %p424
        %p749 = pneg %p421
        %p750 = pneg %p445
        %p751 = pneg %p442
        %p752 = pneg %p466
        %p753 = pneg %p463
        %p754 = pneg %p487
        %p755 = pneg %p484
        %p756 = pneg %p508
        %p757 = pneg %p505
        %p758 = pneg %p534
        %p759 = pneg %p531
        %s760 = sand.u32 %s521, 1
        %s761 = scalar_lea.sflag [#allocation4], %s760
        %s762 = sand.u32 %s521, 1
        %s763 = smul.addr %s762, 8
        %s764 = scalar_lea.vmem [#allocation3], %s763
        %p765 = pneg %p560
        %p766 = pneg %p557
        %s767 = sand.u32 %s547, 1
        %s768 = scalar_lea.sflag [#allocation6], %s767
        %s769 = sand.u32 %s547, 1
        %s770 = scalar_lea.vmem [#allocation5], %s769
        %p771 = scmp.lt.s32.totalorder %s41, 1
        %s772 = scalar_select %p771, %s41, 1
        %s773 = smul.addr %s772, 8
        %s774 = scalar_lea.vmem %s0, %s773
        %v775 = vld [vmem:[%s774] sm:$0xff]
        %v776 = vld [vmem:[%s702] sm:$0xff]
        %v777 = vld [vmem:[%s702 + $0x8] sm:$0xff]
        %v778 = vld [vmem:[%s2] sm:$0xff]
        %v779 = vld [vmem:[%s2 + $0x8] sm:$0xff]
        %v780 = vld [vmem:[%s2 + $0x10] sm:$0xff]
        %v781 = vld [vmem:[%s2 + $0x18] sm:$0xff]
        %v782 = vld [vmem:[%s2 + $0x20] sm:$0xff]
        %v783 = vld [vmem:[%s2 + $0x28] sm:$0xff]
        %v784 = vld [vmem:[%s2 + $0x30] sm:$0xff]
        %v785 = vld [vmem:[%s2 + $0x38] sm:$0xff]
        %v786 = vld [vmem:[%s2 + $0x40] sm:$0xff]
        %v787 = vld [vmem:[%s2 + $0x48] sm:$0xff]
        %v788 = vld [vmem:[%s2 + $0x50] sm:$0xff]
        %v789 = vld [vmem:[%s2 + $0x58] sm:$0xff]
        %v790 = vld [vmem:[%s2 + $0x60] sm:$0xff]
        %v791 = vld [vmem:[%s2 + $0x68] sm:$0xff]
        %v792 = vld [vmem:[%s2 + $0x70] sm:$0xff]
        %v793 = vld [vmem:[%s2 + $0x78] sm:$0xff]
        %v794 = vld [vmem:[%s3] sm:$0xff]
        %v795 = vld [vmem:[%s3 + $0x8] sm:$0xff]
        %v796 = vld [vmem:[%s3 + $0x10] sm:$0xff]
        %v797 = vld [vmem:[%s3 + $0x18] sm:$0xff]
        %v798 = vld [vmem:[%s3 + $0x20] sm:$0xff]
        %v799 = vld [vmem:[%s3 + $0x28] sm:$0xff]
        %v800 = vld [vmem:[%s3 + $0x30] sm:$0xff]
        %v801 = vld [vmem:[%s3 + $0x38] sm:$0xff]
        %v802 = vld [vmem:[%s3 + $0x40] sm:$0xff]
        %v803 = vld [vmem:[%s3 + $0x48] sm:$0xff]
        %v804 = vld [vmem:[%s3 + $0x50] sm:$0xff]
        %v805 = vld [vmem:[%s3 + $0x58] sm:$0xff]
        %v806 = vld [vmem:[%s3 + $0x60] sm:$0xff]
        %v807 = vld [vmem:[%s3 + $0x68] sm:$0xff]
        %v808 = vld [vmem:[%s3 + $0x70] sm:$0xff]
        %v809 = vld [vmem:[%s3 + $0x78] sm:$0xff]
        %811 = vset.pattern.permute.xlu0 0
        %812 = vperm.xlu0 %811, %v794
        %v813 = vpop.permute.xlu0 %812
        %816 = vset.pattern.permute.xlu0 0
        %817 = vperm.xlu0 %816, %v795
        %v818 = vpop.permute.xlu0 %817
        %821 = vset.pattern.permute.xlu0 0
        %822 = vperm.xlu0 %821, %v796
        %v823 = vpop.permute.xlu0 %822
        %826 = vset.pattern.permute.xlu0 0
        %827 = vperm.xlu0 %826, %v797
        %v828 = vpop.permute.xlu0 %827
        %831 = vset.pattern.permute.xlu0 0
        %832 = vperm.xlu0 %831, %v798
        %v833 = vpop.permute.xlu0 %832
        %836 = vset.pattern.permute.xlu0 0
        %837 = vperm.xlu0 %836, %v799
        %v838 = vpop.permute.xlu0 %837
        %841 = vset.pattern.permute.xlu0 0
        %842 = vperm.xlu0 %841, %v800
        %v843 = vpop.permute.xlu0 %842
        %846 = vset.pattern.permute.xlu0 0
        %847 = vperm.xlu0 %846, %v801
        %v848 = vpop.permute.xlu0 %847
        %851 = vset.pattern.permute.xlu0 0
        %852 = vperm.xlu0 %851, %v802
        %v853 = vpop.permute.xlu0 %852
        %856 = vset.pattern.permute.xlu0 0
        %857 = vperm.xlu0 %856, %v803
        %v858 = vpop.permute.xlu0 %857
        %861 = vset.pattern.permute.xlu0 0
        %862 = vperm.xlu0 %861, %v804
        %v863 = vpop.permute.xlu0 %862
        %866 = vset.pattern.permute.xlu0 0
        %867 = vperm.xlu0 %866, %v805
        %v868 = vpop.permute.xlu0 %867
        %871 = vset.pattern.permute.xlu0 0
        %872 = vperm.xlu0 %871, %v806
        %v873 = vpop.permute.xlu0 %872
        %876 = vset.pattern.permute.xlu0 0
        %877 = vperm.xlu0 %876, %v807
        %v878 = vpop.permute.xlu0 %877
        %881 = vset.pattern.permute.xlu0 0
        %882 = vperm.xlu0 %881, %v808
        %v883 = vpop.permute.xlu0 %882
        %886 = vset.pattern.permute.xlu0 0
        %887 = vperm.xlu0 %886, %v809
        %v888 = vpop.permute.xlu0 %887
        %vm890 = vcmask 130048
        %v892 = vsel %vm890, %v778, 0
        %v895 = vsel %vm890, %v779, 0
        %v898 = vsel %vm890, %v780, 0
        %v901 = vsel %vm890, %v781, 0
        %v904 = vsel %vm890, %v782, 0
        %v907 = vsel %vm890, %v783, 0
        %v910 = vsel %vm890, %v784, 0
        %v913 = vsel %vm890, %v785, 0
        %v916 = vsel %vm890, %v786, 0
        %v919 = vsel %vm890, %v787, 0
        %v922 = vsel %vm890, %v788, 0
        %v925 = vsel %vm890, %v789, 0
        %v928 = vsel %vm890, %v790, 0
        %v931 = vsel %vm890, %v791, 0
        %v934 = vsel %vm890, %v792, 0
        %v937 = vsel %vm890, %v793, 0
        %939 = vmatpush.msra.mxu0 0.0
        %940 = vmatpush.msra.mxu0 0.0
        %941 = vmatpush.msra.mxu0 0.0
        %942 = vmatpush.msra.mxu0 0.0
        %943 = vmatpush.msra.mxu0 0.0
        %944 = vmatpush.msra.mxu0 0.0
        %945 = vmatpush.msra.mxu0 0.0
        %946 = vmatpush.msra.mxu0 0.0
        %947 = vmatpush.msra.mxu0 0.0
        %948 = vmatpush.msra.mxu0 0.0
        %949 = vmatpush.msra.mxu0 0.0
        %950 = vmatpush.msra.mxu0 0.0
        %951 = vmatpush.msra.mxu0 0.0
        %952 = vmatpush.msra.mxu0 0.0
        %953 = vmatpush.msra.mxu0 %v777
        %954 = vmatpush.msra.mxu0 %v776
        %955 = vmatmul.f32.gmra.mxu0 %v892
        %v956 = vpop.f32.mrf.mxu0
        %v957 = vadd.f32 %v813, %v956
        %958 = vmatmul.f32.gmra.mxu0 %v895
        %v959 = vpop.f32.mrf.mxu0
        %v960 = vadd.f32 %v818, %v959
        %961 = vmatmul.f32.gmra.mxu0 %v898
        %v962 = vpop.f32.mrf.mxu0
        %v963 = vadd.f32 %v823, %v962
        %964 = vmatmul.f32.gmra.mxu0 %v901
        %v965 = vpop.f32.mrf.mxu0
        %v966 = vadd.f32 %v828, %v965
        %967 = vmatmul.f32.gmra.mxu0 %v904
        %v968 = vpop.f32.mrf.mxu0
        %v969 = vadd.f32 %v833, %v968
        %970 = vmatmul.f32.gmra.mxu0 %v907
        %v971 = vpop.f32.mrf.mxu0
        %v972 = vadd.f32 %v838, %v971
        %973 = vmatmul.f32.gmra.mxu0 %v910
        %v974 = vpop.f32.mrf.mxu0
        %v975 = vadd.f32 %v843, %v974
        %976 = vmatmul.f32.gmra.mxu0 %v913
        %v977 = vpop.f32.mrf.mxu0
        %v978 = vadd.f32 %v848, %v977
        %979 = vmatmul.f32.gmra.mxu0 %v916
        %v980 = vpop.f32.mrf.mxu0
        %v981 = vadd.f32 %v853, %v980
        %982 = vmatmul.f32.gmra.mxu0 %v919
        %v983 = vpop.f32.mrf.mxu0
        %v984 = vadd.f32 %v858, %v983
        %985 = vmatmul.f32.gmra.mxu0 %v922
        %v986 = vpop.f32.mrf.mxu0
        %v987 = vadd.f32 %v863, %v986
        %988 = vmatmul.f32.gmra.mxu0 %v925
        %v989 = vpop.f32.mrf.mxu0
        %v990 = vadd.f32 %v868, %v989
        %991 = vmatmul.f32.gmra.mxu0 %v928
        %v992 = vpop.f32.mrf.mxu0
        %v993 = vadd.f32 %v873, %v992
        %994 = vmatmul.f32.gmra.mxu0 %v931
        %v995 = vpop.f32.mrf.mxu0
        %v996 = vadd.f32 %v878, %v995
        %997 = vmatmul.f32.gmra.mxu0 %v934
        %v998 = vpop.f32.mrf.mxu0
        %v999 = vadd.f32 %v883, %v998
        %1000 = vmatmul.f32.gmra.mxu0 %v937
        %v1001 = vpop.f32.mrf.mxu0
        %v1002 = vadd.f32 %v888, %v1001
        %1003 = vdwg.mxu0
        %v1004 = vmax.f32 %v957, 0.0
        %v1005 = vmax.f32 %v960, 0.0
        %v1006 = vmax.f32 %v963, 0.0
        %v1007 = vmax.f32 %v966, 0.0
        %v1008 = vmax.f32 %v969, 0.0
        %v1009 = vmax.f32 %v972, 0.0
        %v1010 = vmax.f32 %v975, 0.0
        %v1011 = vmax.f32 %v978, 0.0
        %v1012 = vmax.f32 %v981, 0.0
        %v1013 = vmax.f32 %v984, 0.0
        %v1014 = vmax.f32 %v987, 0.0
        %v1015 = vmax.f32 %v990, 0.0
        %v1016 = vmax.f32 %v993, 0.0
        %v1017 = vmax.f32 %v996, 0.0
        %v1018 = vmax.f32 %v999, 0.0
        %v1019 = vmax.f32 %v1002, 0.0
        %v1020 = vld [vmem:[%s11] sm:$0xff]
        %v1021 = vld [vmem:[%s11 + $0x8] sm:$0xff]
        %v1022 = vld [vmem:[%s11 + $0x10] sm:$0xff]
        %v1023 = vld [vmem:[%s11 + $0x18] sm:$0xff]
        %v1024 = vld [vmem:[%s11 + $0x20] sm:$0xff]
        %v1025 = vld [vmem:[%s11 + $0x28] sm:$0xff]
        %v1026 = vld [vmem:[%s11 + $0x30] sm:$0xff]
        %v1027 = vld [vmem:[%s11 + $0x38] sm:$0xff]
        %v1028 = vld [vmem:[%s11 + $0x40] sm:$0xff]
        %v1029 = vld [vmem:[%s11 + $0x48] sm:$0xff]
        %v1030 = vld [vmem:[%s11 + $0x50] sm:$0xff]
        %v1031 = vld [vmem:[%s11 + $0x58] sm:$0xff]
        %v1032 = vld [vmem:[%s11 + $0x60] sm:$0xff]
        %v1033 = vld [vmem:[%s11 + $0x68] sm:$0xff]
        %v1034 = vld [vmem:[%s11 + $0x70] sm:$0xff]
        %v1035 = vld [vmem:[%s11 + $0x78] sm:$0xff]
        %v1037 = vsel %vm890, %v1020, 0
        %v1040 = vsel %vm890, %v1021, 0
        %v1043 = vsel %vm890, %v1022, 0
        %v1046 = vsel %vm890, %v1023, 0
        %v1049 = vsel %vm890, %v1024, 0
        %v1052 = vsel %vm890, %v1025, 0
        %v1055 = vsel %vm890, %v1026, 0
        %v1058 = vsel %vm890, %v1027, 0
        %v1061 = vsel %vm890, %v1028, 0
        %v1064 = vsel %vm890, %v1029, 0
        %v1067 = vsel %vm890, %v1030, 0
        %v1070 = vsel %vm890, %v1031, 0
        %v1073 = vsel %vm890, %v1032, 0
        %v1076 = vsel %vm890, %v1033, 0
        %v1079 = vsel %vm890, %v1034, 0
        %v1082 = vsel %vm890, %v1035, 0
        %1084 = vmatpush.msra.mxu0 0.0
        %1085 = vmatpush.msra.mxu0 0.0
        %1086 = vmatpush.msra.mxu0 0.0
        %1087 = vmatpush.msra.mxu0 0.0
        %1088 = vmatpush.msra.mxu0 0.0
        %1089 = vmatpush.msra.mxu0 0.0
        %1090 = vmatpush.msra.mxu0 0.0
        %1091 = vmatpush.msra.mxu0 0.0
        %1092 = vmatpush.msra.mxu0 0.0
        %1093 = vmatpush.msra.mxu0 0.0
        %1094 = vmatpush.msra.mxu0 0.0
        %1095 = vmatpush.msra.mxu0 0.0
        %1096 = vmatpush.msra.mxu0 0.0
        %1097 = vmatpush.msra.mxu0 0.0
        %1098 = vmatpush.msra.mxu0 %v777
        %1099 = vmatpush.msra.mxu0 %v776
        %1100 = vmatmul.f32.gmra.mxu0 %v1037
        %v1101 = vpop.f32.mrf.mxu0
        %v1102 = vadd.f32 0.0, %v1101
        %1103 = vmatmul.f32.gmra.mxu0 %v1040
        %v1104 = vpop.f32.mrf.mxu0
        %v1105 = vadd.f32 0.0, %v1104
        %1106 = vmatmul.f32.gmra.mxu0 %v1043
        %v1107 = vpop.f32.mrf.mxu0
        %v1108 = vadd.f32 0.0, %v1107
        %1109 = vmatmul.f32.gmra.mxu0 %v1046
        %v1110 = vpop.f32.mrf.mxu0
        %v1111 = vadd.f32 0.0, %v1110
        %1112 = vmatmul.f32.gmra.mxu0 %v1049
        %v1113 = vpop.f32.mrf.mxu0
        %v1114 = vadd.f32 0.0, %v1113
        %1115 = vmatmul.f32.gmra.mxu0 %v1052
        %v1116 = vpop.f32.mrf.mxu0
        %v1117 = vadd.f32 0.0, %v1116
        %1118 = vmatmul.f32.gmra.mxu0 %v1055
        %v1119 = vpop.f32.mrf.mxu0
        %v1120 = vadd.f32 0.0, %v1119
        %1121 = vmatmul.f32.gmra.mxu0 %v1058
        %v1122 = vpop.f32.mrf.mxu0
        %v1123 = vadd.f32 0.0, %v1122
        %1124 = vmatmul.f32.gmra.mxu0 %v1061
        %v1125 = vpop.f32.mrf.mxu0
        %v1126 = vadd.f32 0.0, %v1125
        %1127 = vmatmul.f32.gmra.mxu0 %v1064
        %v1128 = vpop.f32.mrf.mxu0
        %v1129 = vadd.f32 0.0, %v1128
        %1130 = vmatmul.f32.gmra.mxu0 %v1067
        %v1131 = vpop.f32.mrf.mxu0
        %v1132 = vadd.f32 0.0, %v1131
        %1133 = vmatmul.f32.gmra.mxu0 %v1070
        %v1134 = vpop.f32.mrf.mxu0
        %v1135 = vadd.f32 0.0, %v1134
        %1136 = vmatmul.f32.gmra.mxu0 %v1073
        %v1137 = vpop.f32.mrf.mxu0
        %v1138 = vadd.f32 0.0, %v1137
        %1139 = vmatmul.f32.gmra.mxu0 %v1076
        %v1140 = vpop.f32.mrf.mxu0
        %v1141 = vadd.f32 0.0, %v1140
        %1142 = vmatmul.f32.gmra.mxu0 %v1079
        %v1143 = vpop.f32.mrf.mxu0
        %v1144 = vadd.f32 0.0, %v1143
        %1145 = vmatmul.f32.gmra.mxu0 %v1082
        %v1146 = vpop.f32.mrf.mxu0
        %v1147 = vadd.f32 0.0, %v1146
        %1148 = vdwg.mxu0
        %v1149 = vld [vmem:[%s4] sm:$0xff]
        %v1150 = vld [vmem:[%s4 + $0x8] sm:$0xff]
        %v1151 = vld [vmem:[%s5] sm:$0xff]
        %v1152 = vld [vmem:[%s5 + $0x8] sm:$0xff]
        %1154 = vset.pattern.permute.xlu0 0
        %1155 = vperm.xlu0 %1154, %v1151
        %v1156 = vpop.permute.xlu0 %1155
        %1159 = vset.pattern.permute.xlu0 0
        %1160 = vperm.xlu0 %1159, %v1152
        %v1161 = vpop.permute.xlu0 %1160
        %vm1163 = vcmask 261120
        %v1165 = vsel %vm1163, %v1149, 0
        %v1168 = vsel %vm1163, %v1150, 0
        %1170 = vmatpush.msra.mxu0 0.0
        %1171 = vmatpush.msra.mxu0 0.0
        %1172 = vmatpush.msra.mxu0 0.0
        %1173 = vmatpush.msra.mxu0 0.0
        %1174 = vmatpush.msra.mxu0 0.0
        %1175 = vmatpush.msra.mxu0 0.0
        %1176 = vmatpush.msra.mxu0 0.0
        %1177 = vmatpush.msra.mxu0 0.0
        %1178 = vmatpush.msra.mxu0 0.0
        %1179 = vmatpush.msra.mxu0 0.0
        %1180 = vmatpush.msra.mxu0 0.0
        %1181 = vmatpush.msra.mxu0 0.0
        %1182 = vmatpush.msra.mxu0 %v1007
        %1183 = vmatpush.msra.mxu0 %v1006
        %1184 = vmatpush.msra.mxu0 %v1005
        %1185 = vmatpush.msra.mxu0 %v1004
        %1186 = vmatmul.f32.gmra.mxu0 %v1165
        %v1187 = vpop.f32.mrf.mxu0
        %v1188 = vadd.f32 %v1156, %v1187
        %1189 = vmatmul.f32.gmra.mxu0 %v1168
        %v1190 = vpop.f32.mrf.mxu0
        %v1191 = vadd.f32 %v1161, %v1190
        %1192 = vdwg.mxu0
        %v1193 = vld [vmem:[%s6] sm:$0xff]
        %1195 = vset.pattern.permute.xlu0 0
        %1196 = vperm.xlu0 %1195, %v1193
        %v1197 = vpop.permute.xlu0 %1196
        %v1199 = vadd.f32 %v1197, %v1188
        %v1200 = vmul.f32 %v1199, 1.442695
        %v1201 = vpow.pop %v1200
        %v1202 = vmul.f32 %v775, %v1201
        %v1203 = vld [vmem:[%s7] sm:$0xff]
        %1205 = vset.pattern.permute.xlu0 0
        %1206 = vperm.xlu0 %1205, %v1203
        %v1207 = vpop.permute.xlu0 %1206
        %v1209 = vadd.f32 %v1207, %v1191
        %v1210 = vadd.f32 %v1202, %v1209
        %v1211 = vrot.slane %v1199, 4
        %v1212 = vadd.f32 %v1199, %v1211
        %v1213 = vrot.slane %v1212, 2
        %v1214 = vadd.f32 %v1212, %v1213
        %v1215 = vrot.slane %v1214, 1
        %v1216 = vadd.f32 %v1214, %v1215
        %v1217 = vadd.f32 %v1216, 0.0
        %v1218 = vld [vmem:[%s8] sm:$0xff]
        %v1219 = vld [vmem:[%s9] sm:$0xff]
        %1221 = vset.pattern.permute.xlu0 0
        %1222 = vperm.xlu0 %1221, %v1219
        %v1223 = vpop.permute.xlu0 %1222
        %vm1225 = vcmask 64512
        %v1227 = vsel %vm1225, %v1218, 0
        %1229 = vmatpush.msra.mxu0 0.0
        %1230 = vmatpush.msra.mxu0 0.0
        %1231 = vmatpush.msra.mxu0 0.0
        %1232 = vmatpush.msra.mxu0 0.0
        %1233 = vmatpush.msra.mxu0 0.0
        %1234 = vmatpush.msra.mxu0 0.0
        %1235 = vmatpush.msra.mxu0 0.0
        %1236 = vmatpush.msra.mxu0 0.0
        %1237 = vmatpush.msra.mxu0 0.0
        %1238 = vmatpush.msra.mxu0 0.0
        %1239 = vmatpush.msra.mxu0 0.0
        %1240 = vmatpush.msra.mxu0 0.0
        %1241 = vmatpush.msra.mxu0 0.0
        %1242 = vmatpush.msra.mxu0 0.0
        %1243 = vmatpush.msra.mxu0 0.0
        %1244 = vmatpush.msra.mxu0 %v1210
        %1245 = vmatmul.f32.gmra.mxu0 %v1227
        %v1246 = vpop.f32.mrf.mxu0
        %v1247 = vadd.f32 %v1223, %v1246
        %1248 = vdwg.mxu0
        %v1249 = vld [vmem:[%s10] sm:$0xff]
        %v1250 = vld [vmem:[%s10 + $0x8] sm:$0xff]
        %v1251 = vld [vmem:[%s10 + $0x10] sm:$0xff]
        %v1252 = vld [vmem:[%s10 + $0x18] sm:$0xff]
        %v1254 = vsel %vm1225, %v1249, 0
        %v1257 = vsel %vm1225, %v1250, 0
        %v1260 = vsel %vm1225, %v1251, 0
        %v1263 = vsel %vm1225, %v1252, 0
        %1265 = vmatpush.msra.mxu0 0.0
        %1266 = vmatpush.msra.mxu0 0.0
        %1267 = vmatpush.msra.mxu0 0.0
        %1268 = vmatpush.msra.mxu0 0.0
        %1269 = vmatpush.msra.mxu0 0.0
        %1270 = vmatpush.msra.mxu0 0.0
        %1271 = vmatpush.msra.mxu0 0.0
        %1272 = vmatpush.msra.mxu0 0.0
        %1273 = vmatpush.msra.mxu0 0.0
        %1274 = vmatpush.msra.mxu0 0.0
        %1275 = vmatpush.msra.mxu0 0.0
        %1276 = vmatpush.msra.mxu0 0.0
        %1277 = vmatpush.msra.mxu0 0.0
        %1278 = vmatpush.msra.mxu0 0.0
        %1279 = vmatpush.msra.mxu0 0.0
        %1280 = vmatpush.msra.mxu0 %v1247
        %1281 = vmatmul.f32.gmra.mxu0 %v1254
        %v1282 = vpop.f32.mrf.mxu0
        %v1283 = vadd.f32 %v1102, %v1282
        %1284 = vmatmul.f32.gmra.mxu0 %v1257
        %v1285 = vpop.f32.mrf.mxu0
        %v1286 = vadd.f32 %v1105, %v1285
        %1287 = vmatmul.f32.gmra.mxu0 %v1260
        %v1288 = vpop.f32.mrf.mxu0
        %v1289 = vadd.f32 %v1108, %v1288
        %1290 = vmatmul.f32.gmra.mxu0 %v1263
        %v1291 = vpop.f32.mrf.mxu0
        %v1292 = vadd.f32 %v1111, %v1291
        %1293 = vdwg.mxu0
        %v1294 = vld [vmem:[%s12] sm:$0xff]
        %v1295 = vld [vmem:[%s12 + $0x8] sm:$0xff]
        %v1296 = vld [vmem:[%s12 + $0x10] sm:$0xff]
        %v1297 = vld [vmem:[%s12 + $0x18] sm:$0xff]
        %1299 = vset.pattern.permute.xlu0 0
        %1300 = vperm.xlu0 %1299, %v1294
        %v1301 = vpop.permute.xlu0 %1300
        %1304 = vset.pattern.permute.xlu0 0
        %1305 = vperm.xlu0 %1304, %v1295
        %v1306 = vpop.permute.xlu0 %1305
        %1309 = vset.pattern.permute.xlu0 0
        %1310 = vperm.xlu0 %1309, %v1296
        %v1311 = vpop.permute.xlu0 %1310
        %1314 = vset.pattern.permute.xlu0 0
        %1315 = vperm.xlu0 %1314, %v1297
        %v1316 = vpop.permute.xlu0 %1315
        %v1318 = vadd.f32 %v1283, %v1301
        %v1319 = vadd.f32 %v1286, %v1306
        %v1320 = vadd.f32 %v1289, %v1311
        %v1321 = vadd.f32 %v1292, %v1316
        %v1322 = vmax.f32 %v1318, 0.0
        %v1323 = vmax.f32 %v1319, 0.0
        %v1324 = vmax.f32 %v1320, 0.0
        %v1325 = vmax.f32 %v1321, 0.0
        %v1326 = vld [vmem:[%s13] sm:$0xff]
        %v1327 = vld [vmem:[%s13 + $0x8] sm:$0xff]
        %v1328 = vld [vmem:[%s13 + $0x10] sm:$0xff]
        %v1329 = vld [vmem:[%s13 + $0x18] sm:$0xff]
        %v1330 = vld [vmem:[%s14] sm:$0xff]
        %v1331 = vld [vmem:[%s14 + $0x8] sm:$0xff]
        %v1332 = vld [vmem:[%s14 + $0x10] sm:$0xff]
        %v1333 = vld [vmem:[%s14 + $0x18] sm:$0xff]
        %1335 = vset.pattern.permute.xlu0 0
        %1336 = vperm.xlu0 %1335, %v1330
        %v1337 = vpop.permute.xlu0 %1336
        %1340 = vset.pattern.permute.xlu0 0
        %1341 = vperm.xlu0 %1340, %v1331
        %v1342 = vpop.permute.xlu0 %1341
        %1345 = vset.pattern.permute.xlu0 0
        %1346 = vperm.xlu0 %1345, %v1332
        %v1347 = vpop.permute.xlu0 %1346
        %1350 = vset.pattern.permute.xlu0 0
        %1351 = vperm.xlu0 %1350, %v1333
        %v1352 = vpop.permute.xlu0 %1351
        %v1355 = vsel %vm1163, %v1326, 0
        %v1358 = vsel %vm1163, %v1327, 0
        %v1361 = vsel %vm1163, %v1328, 0
        %v1364 = vsel %vm1163, %v1329, 0
        %1366 = vmatpush.msra.mxu0 0.0
        %1367 = vmatpush.msra.mxu0 0.0
        %1368 = vmatpush.msra.mxu0 0.0
        %1369 = vmatpush.msra.mxu0 0.0
        %1370 = vmatpush.msra.mxu0 0.0
        %1371 = vmatpush.msra.mxu0 0.0
        %1372 = vmatpush.msra.mxu0 0.0
        %1373 = vmatpush.msra.mxu0 0.0
        %1374 = vmatpush.msra.mxu0 0.0
        %1375 = vmatpush.msra.mxu0 0.0
        %1376 = vmatpush.msra.mxu0 0.0
        %1377 = vmatpush.msra.mxu0 0.0
        %1378 = vmatpush.msra.mxu0 %v1325
        %1379 = vmatpush.msra.mxu0 %v1324
        %1380 = vmatpush.msra.mxu0 %v1323
        %1381 = vmatpush.msra.mxu0 %v1322
        %1382 = vmatmul.f32.gmra.mxu0 %v1355
        %v1383 = vpop.f32.mrf.mxu0
        %v1384 = vadd.f32 %v1337, %v1383
        %1385 = vmatmul.f32.gmra.mxu0 %v1358
        %v1386 = vpop.f32.mrf.mxu0
        %v1387 = vadd.f32 %v1342, %v1386
        %1388 = vmatmul.f32.gmra.mxu0 %v1361
        %v1389 = vpop.f32.mrf.mxu0
        %v1390 = vadd.f32 %v1347, %v1389
        %1391 = vmatmul.f32.gmra.mxu0 %v1364
        %v1392 = vpop.f32.mrf.mxu0
        %v1393 = vadd.f32 %v1352, %v1392
        %1394 = vdwg.mxu0
        %v1395 = vmax.f32 %v1384, 0.0
        %v1396 = vmax.f32 %v1387, 0.0
        %v1397 = vmax.f32 %v1390, 0.0
        %v1398 = vmax.f32 %v1393, 0.0
        %v1399 = vld [vmem:[%s15] sm:$0xff]
        %v1400 = vld [vmem:[%s15 + $0x8] sm:$0xff]
        %v1401 = vld [vmem:[%s15 + $0x10] sm:$0xff]
        %v1402 = vld [vmem:[%s15 + $0x18] sm:$0xff]
        %v1403 = vld [vmem:[%s16] sm:$0xff]
        %v1404 = vld [vmem:[%s16 + $0x8] sm:$0xff]
        %v1405 = vld [vmem:[%s16 + $0x10] sm:$0xff]
        %v1406 = vld [vmem:[%s16 + $0x18] sm:$0xff]
        %1408 = vset.pattern.permute.xlu0 0
        %1409 = vperm.xlu0 %1408, %v1403
        %v1410 = vpop.permute.xlu0 %1409
        %1413 = vset.pattern.permute.xlu0 0
        %1414 = vperm.xlu0 %1413, %v1404
        %v1415 = vpop.permute.xlu0 %1414
        %1418 = vset.pattern.permute.xlu0 0
        %1419 = vperm.xlu0 %1418, %v1405
        %v1420 = vpop.permute.xlu0 %1419
        %1423 = vset.pattern.permute.xlu0 0
        %1424 = vperm.xlu0 %1423, %v1406
        %v1425 = vpop.permute.xlu0 %1424
        %v1428 = vsel %vm1163, %v1399, 0
        %v1431 = vsel %vm1163, %v1400, 0
        %v1434 = vsel %vm1163, %v1401, 0
        %v1437 = vsel %vm1163, %v1402, 0
        %1439 = vmatpush.msra.mxu0 0.0
        %1440 = vmatpush.msra.mxu0 0.0
        %1441 = vmatpush.msra.mxu0 0.0
        %1442 = vmatpush.msra.mxu0 0.0
        %1443 = vmatpush.msra.mxu0 0.0
        %1444 = vmatpush.msra.mxu0 0.0
        %1445 = vmatpush.msra.mxu0 0.0
        %1446 = vmatpush.msra.mxu0 0.0
        %1447 = vmatpush.msra.mxu0 0.0
        %1448 = vmatpush.msra.mxu0 0.0
        %1449 = vmatpush.msra.mxu0 0.0
        %1450 = vmatpush.msra.mxu0 0.0
        %1451 = vmatpush.msra.mxu0 %v1398
        %1452 = vmatpush.msra.mxu0 %v1397
        %1453 = vmatpush.msra.mxu0 %v1396
        %1454 = vmatpush.msra.mxu0 %v1395
        %1455 = vmatmul.f32.gmra.mxu0 %v1428
        %v1456 = vpop.f32.mrf.mxu0
        %v1457 = vadd.f32 %v1410, %v1456
        %1458 = vmatmul.f32.gmra.mxu0 %v1431
        %v1459 = vpop.f32.mrf.mxu0
        %v1460 = vadd.f32 %v1415, %v1459
        %1461 = vmatmul.f32.gmra.mxu0 %v1434
        %v1462 = vpop.f32.mrf.mxu0
        %v1463 = vadd.f32 %v1420, %v1462
        %1464 = vmatmul.f32.gmra.mxu0 %v1437
        %v1465 = vpop.f32.mrf.mxu0
        %v1466 = vadd.f32 %v1425, %v1465
        %1467 = vdwg.mxu0
        %v1468 = vmax.f32 %v1457, 0.0
        %v1469 = vmax.f32 %v1460, 0.0
        %v1470 = vmax.f32 %v1463, 0.0
        %v1471 = vmax.f32 %v1466, 0.0
        %v1472 = vadd.f32 %v1322, %v1468
        %v1473 = vadd.f32 %v1323, %v1469
        %v1474 = vadd.f32 %v1324, %v1470
        %v1475 = vadd.f32 %v1325, %v1471
        %s1476 = scalar_lea.vmem %s13, 32
        %v1477 = vld [vmem:[%s1476] sm:$0xff]
        %v1478 = vld [vmem:[%s1476 + $0x8] sm:$0xff]
        %v1479 = vld [vmem:[%s1476 + $0x10] sm:$0xff]
        %v1480 = vld [vmem:[%s1476 + $0x18] sm:$0xff]
        %s1481 = scalar_lea.vmem %s14, 32
        %v1482 = vld [vmem:[%s1481] sm:$0xff]
        %v1483 = vld [vmem:[%s1481 + $0x8] sm:$0xff]
        %v1484 = vld [vmem:[%s1481 + $0x10] sm:$0xff]
        %v1485 = vld [vmem:[%s1481 + $0x18] sm:$0xff]
        %1487 = vset.pattern.permute.xlu0 0
        %1488 = vperm.xlu0 %1487, %v1482
        %v1489 = vpop.permute.xlu0 %1488
        %1492 = vset.pattern.permute.xlu0 0
        %1493 = vperm.xlu0 %1492, %v1483
        %v1494 = vpop.permute.xlu0 %1493
        %1497 = vset.pattern.permute.xlu0 0
        %1498 = vperm.xlu0 %1497, %v1484
        %v1499 = vpop.permute.xlu0 %1498
        %1502 = vset.pattern.permute.xlu0 0
        %1503 = vperm.xlu0 %1502, %v1485
        %v1504 = vpop.permute.xlu0 %1503
        %v1507 = vsel %vm1163, %v1477, 0
        %v1510 = vsel %vm1163, %v1478, 0
        %v1513 = vsel %vm1163, %v1479, 0
        %v1516 = vsel %vm1163, %v1480, 0
        %1518 = vmatpush.msra.mxu0 0.0
        %1519 = vmatpush.msra.mxu0 0.0
        %1520 = vmatpush.msra.mxu0 0.0
        %1521 = vmatpush.msra.mxu0 0.0
        %1522 = vmatpush.msra.mxu0 0.0
        %1523 = vmatpush.msra.mxu0 0.0
        %1524 = vmatpush.msra.mxu0 0.0
        %1525 = vmatpush.msra.mxu0 0.0
        %1526 = vmatpush.msra.mxu0 0.0
        %1527 = vmatpush.msra.mxu0 0.0
        %1528 = vmatpush.msra.mxu0 0.0
        %1529 = vmatpush.msra.mxu0 0.0
        %1530 = vmatpush.msra.mxu0 %v1475
        %1531 = vmatpush.msra.mxu0 %v1474
        %1532 = vmatpush.msra.mxu0 %v1473
        %1533 = vmatpush.msra.mxu0 %v1472
        %1534 = vmatmul.f32.gmra.mxu0 %v1507
        %v1535 = vpop.f32.mrf.mxu0
        %v1536 = vadd.f32 %v1489, %v1535
        %1537 = vmatmul.f32.gmra.mxu0 %v1510
        %v1538 = vpop.f32.mrf.mxu0
        %v1539 = vadd.f32 %v1494, %v1538
        %1540 = vmatmul.f32.gmra.mxu0 %v1513
        %v1541 = vpop.f32.mrf.mxu0
        %v1542 = vadd.f32 %v1499, %v1541
        %1543 = vmatmul.f32.gmra.mxu0 %v1516
        %v1544 = vpop.f32.mrf.mxu0
        %v1545 = vadd.f32 %v1504, %v1544
        %1546 = vdwg.mxu0
        %v1547 = vmax.f32 %v1536, 0.0
        %v1548 = vmax.f32 %v1539, 0.0
        %v1549 = vmax.f32 %v1542, 0.0
        %v1550 = vmax.f32 %v1545, 0.0
        %s1551 = scalar_lea.vmem %s15, 32
        %v1552 = vld [vmem:[%s1551] sm:$0xff]
        %v1553 = vld [vmem:[%s1551 + $0x8] sm:$0xff]
        %v1554 = vld [vmem:[%s1551 + $0x10] sm:$0xff]
        %v1555 = vld [vmem:[%s1551 + $0x18] sm:$0xff]
        %s1556 = scalar_lea.vmem %s16, 32
        %v1557 = vld [vmem:[%s1556] sm:$0xff]
        %v1558 = vld [vmem:[%s1556 + $0x8] sm:$0xff]
        %v1559 = vld [vmem:[%s1556 + $0x10] sm:$0xff]
        %v1560 = vld [vmem:[%s1556 + $0x18] sm:$0xff]
        %1562 = vset.pattern.permute.xlu0 0
        %1563 = vperm.xlu0 %1562, %v1557
        %v1564 = vpop.permute.xlu0 %1563
        %1567 = vset.pattern.permute.xlu0 0
        %1568 = vperm.xlu0 %1567, %v1558
        %v1569 = vpop.permute.xlu0 %1568
        %1572 = vset.pattern.permute.xlu0 0
        %1573 = vperm.xlu0 %1572, %v1559
        %v1574 = vpop.permute.xlu0 %1573
        %1577 = vset.pattern.permute.xlu0 0
        %1578 = vperm.xlu0 %1577, %v1560
        %v1579 = vpop.permute.xlu0 %1578
        %v1582 = vsel %vm1163, %v1552, 0
        %v1585 = vsel %vm1163, %v1553, 0
        %v1588 = vsel %vm1163, %v1554, 0
        %v1591 = vsel %vm1163, %v1555, 0
        %1593 = vmatpush.msra.mxu0 0.0
        %1594 = vmatpush.msra.mxu0 0.0
        %1595 = vmatpush.msra.mxu0 0.0
        %1596 = vmatpush.msra.mxu0 0.0
        %1597 = vmatpush.msra.mxu0 0.0
        %1598 = vmatpush.msra.mxu0 0.0
        %1599 = vmatpush.msra.mxu0 0.0
        %1600 = vmatpush.msra.mxu0 0.0
        %1601 = vmatpush.msra.mxu0 0.0
        %1602 = vmatpush.msra.mxu0 0.0
        %1603 = vmatpush.msra.mxu0 0.0
        %1604 = vmatpush.msra.mxu0 0.0
        %1605 = vmatpush.msra.mxu0 %v1550
        %1606 = vmatpush.msra.mxu0 %v1549
        %1607 = vmatpush.msra.mxu0 %v1548
        %1608 = vmatpush.msra.mxu0 %v1547
        %1609 = vmatmul.f32.gmra.mxu0 %v1582
        %v1610 = vpop.f32.mrf.mxu0
        %v1611 = vadd.f32 %v1564, %v1610
        %1612 = vmatmul.f32.gmra.mxu0 %v1585
        %v1613 = vpop.f32.mrf.mxu0
        %v1614 = vadd.f32 %v1569, %v1613
        %1615 = vmatmul.f32.gmra.mxu0 %v1588
        %v1616 = vpop.f32.mrf.mxu0
        %v1617 = vadd.f32 %v1574, %v1616
        %1618 = vmatmul.f32.gmra.mxu0 %v1591
        %v1619 = vpop.f32.mrf.mxu0
        %v1620 = vadd.f32 %v1579, %v1619
        %1621 = vdwg.mxu0
        %v1622 = vmax.f32 %v1611, 0.0
        %v1623 = vmax.f32 %v1614, 0.0
        %v1624 = vmax.f32 %v1617, 0.0
        %v1625 = vmax.f32 %v1620, 0.0
        %v1626 = vadd.f32 %v1472, %v1622
        %v1627 = vadd.f32 %v1473, %v1623
        %v1628 = vadd.f32 %v1474, %v1624
        %v1629 = vadd.f32 %v1475, %v1625
        %v1630 = vld [vmem:[%s17] sm:$0xff]
        %v1631 = vld [vmem:[%s18] sm:$0xff]
        %1633 = vset.pattern.permute.xlu0 0
        %1634 = vperm.xlu0 %1633, %v1631
        %v1635 = vpop.permute.xlu0 %1634
        %v1638 = vsel %vm1163, %v1630, 0
        %1640 = vmatpush.msra.mxu0 0.0
        %1641 = vmatpush.msra.mxu0 0.0
        %1642 = vmatpush.msra.mxu0 0.0
        %1643 = vmatpush.msra.mxu0 0.0
        %1644 = vmatpush.msra.mxu0 0.0
        %1645 = vmatpush.msra.mxu0 0.0
        %1646 = vmatpush.msra.mxu0 0.0
        %1647 = vmatpush.msra.mxu0 0.0
        %1648 = vmatpush.msra.mxu0 0.0
        %1649 = vmatpush.msra.mxu0 0.0
        %1650 = vmatpush.msra.mxu0 0.0
        %1651 = vmatpush.msra.mxu0 0.0
        %1652 = vmatpush.msra.mxu0 %v1629
        %1653 = vmatpush.msra.mxu0 %v1628
        %1654 = vmatpush.msra.mxu0 %v1627
        %1655 = vmatpush.msra.mxu0 %v1626
        %1656 = vmatmul.f32.gmra.mxu0 %v1638
        %v1657 = vpop.f32.mrf.mxu0
        %v1658 = vadd.f32 %v1635, %v1657
        %1659 = vdwg.mxu0
        %v1660 = vld [vmem:[%s19] sm:$0xff]
        %1662 = vset.pattern.permute.xlu0 0
        %1663 = vperm.xlu0 %1662, %v1660
        %v1664 = vpop.permute.xlu0 %1663
        %v1666 = vmul.f32 %v1658, %v1664
        %v1667 = vadd.f32 %v1247, %v1666
        %s1668 = scalar_lea.vmem %s4, 16
        %v1669 = vld [vmem:[%s1668] sm:$0xff]
        %v1670 = vld [vmem:[%s1668 + $0x8] sm:$0xff]
        %s1671 = scalar_lea.vmem %s5, 16
        %v1672 = vld [vmem:[%s1671] sm:$0xff]
        %v1673 = vld [vmem:[%s1671 + $0x8] sm:$0xff]
        %1675 = vset.pattern.permute.xlu0 0
        %1676 = vperm.xlu0 %1675, %v1672
        %v1677 = vpop.permute.xlu0 %1676
        %1680 = vset.pattern.permute.xlu0 0
        %1681 = vperm.xlu0 %1680, %v1673
        %v1682 = vpop.permute.xlu0 %1681
        %v1685 = vsel %vm1163, %v1669, 0
        %v1688 = vsel %vm1163, %v1670, 0
        %1690 = vmatpush.msra.mxu0 0.0
        %1691 = vmatpush.msra.mxu0 0.0
        %1692 = vmatpush.msra.mxu0 0.0
        %1693 = vmatpush.msra.mxu0 0.0
        %1694 = vmatpush.msra.mxu0 0.0
        %1695 = vmatpush.msra.mxu0 0.0
        %1696 = vmatpush.msra.mxu0 0.0
        %1697 = vmatpush.msra.mxu0 0.0
        %1698 = vmatpush.msra.mxu0 0.0
        %1699 = vmatpush.msra.mxu0 0.0
        %1700 = vmatpush.msra.mxu0 0.0
        %1701 = vmatpush.msra.mxu0 0.0
        %1702 = vmatpush.msra.mxu0 %v1011
        %1703 = vmatpush.msra.mxu0 %v1010
        %1704 = vmatpush.msra.mxu0 %v1009
        %1705 = vmatpush.msra.mxu0 %v1008
        %1706 = vmatmul.f32.gmra.mxu0 %v1685
        %v1707 = vpop.f32.mrf.mxu0
        %v1708 = vadd.f32 %v1677, %v1707
        %1709 = vmatmul.f32.gmra.mxu0 %v1688
        %v1710 = vpop.f32.mrf.mxu0
        %v1711 = vadd.f32 %v1682, %v1710
        %1712 = vdwg.mxu0
        %s1713 = scalar_lea.vmem %s6, 8
        %v1714 = vld [vmem:[%s1713] sm:$0xff]
        %1716 = vset.pattern.permute.xlu0 0
        %1717 = vperm.xlu0 %1716, %v1714
        %v1718 = vpop.permute.xlu0 %1717
        %v1720 = vadd.f32 %v1718, %v1708
        %v1721 = vmul.f32 %v1720, 1.442695
        %v1722 = vpow.pop %v1721
        %v1723 = vmul.f32 %v1667, %v1722
        %s1724 = scalar_lea.vmem %s7, 8
        %v1725 = vld [vmem:[%s1724] sm:$0xff]
        %1727 = vset.pattern.permute.xlu0 0
        %1728 = vperm.xlu0 %1727, %v1725
        %v1729 = vpop.permute.xlu0 %1728
        %v1731 = vadd.f32 %v1729, %v1711
        %v1732 = vadd.f32 %v1723, %v1731
        %v1733 = vrot.slane %v1720, 4
        %v1734 = vadd.f32 %v1720, %v1733
        %v1735 = vrot.slane %v1734, 2
        %v1736 = vadd.f32 %v1734, %v1735
        %v1737 = vrot.slane %v1736, 1
        %v1738 = vadd.f32 %v1736, %v1737
        %v1739 = vadd.f32 %v1217, %v1738
        %s1740 = scalar_lea.vmem %s8, 8
        %v1741 = vld [vmem:[%s1740] sm:$0xff]
        %s1742 = scalar_lea.vmem %s9, 8
        %v1743 = vld [vmem:[%s1742] sm:$0xff]
        %1745 = vset.pattern.permute.xlu0 0
        %1746 = vperm.xlu0 %1745, %v1743
        %v1747 = vpop.permute.xlu0 %1746
        %v1750 = vsel %vm1225, %v1741, 0
        %1752 = vmatpush.msra.mxu0 0.0
        %1753 = vmatpush.msra.mxu0 0.0
        %1754 = vmatpush.msra.mxu0 0.0
        %1755 = vmatpush.msra.mxu0 0.0
        %1756 = vmatpush.msra.mxu0 0.0
        %1757 = vmatpush.msra.mxu0 0.0
        %1758 = vmatpush.msra.mxu0 0.0
        %1759 = vmatpush.msra.mxu0 0.0
        %1760 = vmatpush.msra.mxu0 0.0
        %1761 = vmatpush.msra.mxu0 0.0
        %1762 = vmatpush.msra.mxu0 0.0
        %1763 = vmatpush.msra.mxu0 0.0
        %1764 = vmatpush.msra.mxu0 0.0
        %1765 = vmatpush.msra.mxu0 0.0
        %1766 = vmatpush.msra.mxu0 0.0
        %1767 = vmatpush.msra.mxu0 %v1732
        %1768 = vmatmul.f32.gmra.mxu0 %v1750
        %v1769 = vpop.f32.mrf.mxu0
        %v1770 = vadd.f32 %v1747, %v1769
        %1771 = vdwg.mxu0
        %s1772 = scalar_lea.vmem %s10, 32
        %v1773 = vld [vmem:[%s1772] sm:$0xff]
        %v1774 = vld [vmem:[%s1772 + $0x8] sm:$0xff]
        %v1775 = vld [vmem:[%s1772 + $0x10] sm:$0xff]
        %v1776 = vld [vmem:[%s1772 + $0x18] sm:$0xff]
        %v1778 = vsel %vm1225, %v1773, 0
        %v1781 = vsel %vm1225, %v1774, 0
        %v1784 = vsel %vm1225, %v1775, 0
        %v1787 = vsel %vm1225, %v1776, 0
        %1789 = vmatpush.msra.mxu0 0.0
        %1790 = vmatpush.msra.mxu0 0.0
        %1791 = vmatpush.msra.mxu0 0.0
        %1792 = vmatpush.msra.mxu0 0.0
        %1793 = vmatpush.msra.mxu0 0.0
        %1794 = vmatpush.msra.mxu0 0.0
        %1795 = vmatpush.msra.mxu0 0.0
        %1796 = vmatpush.msra.mxu0 0.0
        %1797 = vmatpush.msra.mxu0 0.0
        %1798 = vmatpush.msra.mxu0 0.0
        %1799 = vmatpush.msra.mxu0 0.0
        %1800 = vmatpush.msra.mxu0 0.0
        %1801 = vmatpush.msra.mxu0 0.0
        %1802 = vmatpush.msra.mxu0 0.0
        %1803 = vmatpush.msra.mxu0 0.0
        %1804 = vmatpush.msra.mxu0 %v1770
        %1805 = vmatmul.f32.gmra.mxu0 %v1778
        %v1806 = vpop.f32.mrf.mxu0
        %v1807 = vadd.f32 %v1114, %v1806
        %1808 = vmatmul.f32.gmra.mxu0 %v1781
        %v1809 = vpop.f32.mrf.mxu0
        %v1810 = vadd.f32 %v1117, %v1809
        %1811 = vmatmul.f32.gmra.mxu0 %v1784
        %v1812 = vpop.f32.mrf.mxu0
        %v1813 = vadd.f32 %v1120, %v1812
        %1814 = vmatmul.f32.gmra.mxu0 %v1787
        %v1815 = vpop.f32.mrf.mxu0
        %v1816 = vadd.f32 %v1123, %v1815
        %1817 = vdwg.mxu0
        %s1818 = scalar_lea.vmem %s12, 32
        %v1819 = vld [vmem:[%s1818] sm:$0xff]
        %v1820 = vld [vmem:[%s1818 + $0x8] sm:$0xff]
        %v1821 = vld [vmem:[%s1818 + $0x10] sm:$0xff]
        %v1822 = vld [vmem:[%s1818 + $0x18] sm:$0xff]
        %1824 = vset.pattern.permute.xlu0 0
        %1825 = vperm.xlu0 %1824, %v1819
        %v1826 = vpop.permute.xlu0 %1825
        %1829 = vset.pattern.permute.xlu0 0
        %1830 = vperm.xlu0 %1829, %v1820
        %v1831 = vpop.permute.xlu0 %1830
        %1834 = vset.pattern.permute.xlu0 0
        %1835 = vperm.xlu0 %1834, %v1821
        %v1836 = vpop.permute.xlu0 %1835
        %1839 = vset.pattern.permute.xlu0 0
        %1840 = vperm.xlu0 %1839, %v1822
        %v1841 = vpop.permute.xlu0 %1840
        %v1843 = vadd.f32 %v1807, %v1826
        %v1844 = vadd.f32 %v1810, %v1831
        %v1845 = vadd.f32 %v1813, %v1836
        %v1846 = vadd.f32 %v1816, %v1841
        %v1847 = vmax.f32 %v1843, 0.0
        %v1848 = vmax.f32 %v1844, 0.0
        %v1849 = vmax.f32 %v1845, 0.0
        %v1850 = vmax.f32 %v1846, 0.0
        %s1851 = scalar_lea.vmem %s13, 64
        %v1852 = vld [vmem:[%s1851] sm:$0xff]
        %v1853 = vld [vmem:[%s1851 + $0x8] sm:$0xff]
        %v1854 = vld [vmem:[%s1851 + $0x10] sm:$0xff]
        %v1855 = vld [vmem:[%s1851 + $0x18] sm:$0xff]
        %s1856 = scalar_lea.vmem %s14, 64
        %v1857 = vld [vmem:[%s1856] sm:$0xff]
        %v1858 = vld [vmem:[%s1856 + $0x8] sm:$0xff]
        %v1859 = vld [vmem:[%s1856 + $0x10] sm:$0xff]
        %v1860 = vld [vmem:[%s1856 + $0x18] sm:$0xff]
        %1862 = vset.pattern.permute.xlu0 0
        %1863 = vperm.xlu0 %1862, %v1857
        %v1864 = vpop.permute.xlu0 %1863
        %1867 = vset.pattern.permute.xlu0 0
        %1868 = vperm.xlu0 %1867, %v1858
        %v1869 = vpop.permute.xlu0 %1868
        %1872 = vset.pattern.permute.xlu0 0
        %1873 = vperm.xlu0 %1872, %v1859
        %v1874 = vpop.permute.xlu0 %1873
        %1877 = vset.pattern.permute.xlu0 0
        %1878 = vperm.xlu0 %1877, %v1860
        %v1879 = vpop.permute.xlu0 %1878
        %v1882 = vsel %vm1163, %v1852, 0
        %v1885 = vsel %vm1163, %v1853, 0
        %v1888 = vsel %vm1163, %v1854, 0
        %v1891 = vsel %vm1163, %v1855, 0
        %1893 = vmatpush.msra.mxu0 0.0
        %1894 = vmatpush.msra.mxu0 0.0
        %1895 = vmatpush.msra.mxu0 0.0
        %1896 = vmatpush.msra.mxu0 0.0
        %1897 = vmatpush.msra.mxu0 0.0
        %1898 = vmatpush.msra.mxu0 0.0
        %1899 = vmatpush.msra.mxu0 0.0
        %1900 = vmatpush.msra.mxu0 0.0
        %1901 = vmatpush.msra.mxu0 0.0
        %1902 = vmatpush.msra.mxu0 0.0
        %1903 = vmatpush.msra.mxu0 0.0
        %1904 = vmatpush.msra.mxu0 0.0
        %1905 = vmatpush.msra.mxu0 %v1850
        %1906 = vmatpush.msra.mxu0 %v1849
        %1907 = vmatpush.msra.mxu0 %v1848
        %1908 = vmatpush.msra.mxu0 %v1847
        %1909 = vmatmul.f32.gmra.mxu0 %v1882
        %v1910 = vpop.f32.mrf.mxu0
        %v1911 = vadd.f32 %v1864, %v1910
        %1912 = vmatmul.f32.gmra.mxu0 %v1885
        %v1913 = vpop.f32.mrf.mxu0
        %v1914 = vadd.f32 %v1869, %v1913
        %1915 = vmatmul.f32.gmra.mxu0 %v1888
        %v1916 = vpop.f32.mrf.mxu0
        %v1917 = vadd.f32 %v1874, %v1916
        %1918 = vmatmul.f32.gmra.mxu0 %v1891
        %v1919 = vpop.f32.mrf.mxu0
        %v1920 = vadd.f32 %v1879, %v1919
        %1921 = vdwg.mxu0
        %v1922 = vmax.f32 %v1911, 0.0
        %v1923 = vmax.f32 %v1914, 0.0
        %v1924 = vmax.f32 %v1917, 0.0
        %v1925 = vmax.f32 %v1920, 0.0
        %s1926 = scalar_lea.vmem %s15, 64
        %v1927 = vld [vmem:[%s1926] sm:$0xff]
        %v1928 = vld [vmem:[%s1926 + $0x8] sm:$0xff]
        %v1929 = vld [vmem:[%s1926 + $0x10] sm:$0xff]
        %v1930 = vld [vmem:[%s1926 + $0x18] sm:$0xff]
        %s1931 = scalar_lea.vmem %s16, 64
        %v1932 = vld [vmem:[%s1931] sm:$0xff]
        %v1933 = vld [vmem:[%s1931 + $0x8] sm:$0xff]
        %v1934 = vld [vmem:[%s1931 + $0x10] sm:$0xff]
        %v1935 = vld [vmem:[%s1931 + $0x18] sm:$0xff]
        %1937 = vset.pattern.permute.xlu0 0
        %1938 = vperm.xlu0 %1937, %v1932
        %v1939 = vpop.permute.xlu0 %1938
        %1942 = vset.pattern.permute.xlu0 0
        %1943 = vperm.xlu0 %1942, %v1933
        %v1944 = vpop.permute.xlu0 %1943
        %1947 = vset.pattern.permute.xlu0 0
        %1948 = vperm.xlu0 %1947, %v1934
        %v1949 = vpop.permute.xlu0 %1948
        %1952 = vset.pattern.permute.xlu0 0
        %1953 = vperm.xlu0 %1952, %v1935
        %v1954 = vpop.permute.xlu0 %1953
        %v1957 = vsel %vm1163, %v1927, 0
        %v1960 = vsel %vm1163, %v1928, 0
        %v1963 = vsel %vm1163, %v1929, 0
        %v1966 = vsel %vm1163, %v1930, 0
        %1968 = vmatpush.msra.mxu0 0.0
        %1969 = vmatpush.msra.mxu0 0.0
        %1970 = vmatpush.msra.mxu0 0.0
        %1971 = vmatpush.msra.mxu0 0.0
        %1972 = vmatpush.msra.mxu0 0.0
        %1973 = vmatpush.msra.mxu0 0.0
        %1974 = vmatpush.msra.mxu0 0.0
        %1975 = vmatpush.msra.mxu0 0.0
        %1976 = vmatpush.msra.mxu0 0.0
        %1977 = vmatpush.msra.mxu0 0.0
        %1978 = vmatpush.msra.mxu0 0.0
        %1979 = vmatpush.msra.mxu0 0.0
        %1980 = vmatpush.msra.mxu0 %v1925
        %1981 = vmatpush.msra.mxu0 %v1924
        %1982 = vmatpush.msra.mxu0 %v1923
        %1983 = vmatpush.msra.mxu0 %v1922
        %1984 = vmatmul.f32.gmra.mxu0 %v1957
        %v1985 = vpop.f32.mrf.mxu0
        %v1986 = vadd.f32 %v1939, %v1985
        %1987 = vmatmul.f32.gmra.mxu0 %v1960
        %v1988 = vpop.f32.mrf.mxu0
        %v1989 = vadd.f32 %v1944, %v1988
        %1990 = vmatmul.f32.gmra.mxu0 %v1963
        %v1991 = vpop.f32.mrf.mxu0
        %v1992 = vadd.f32 %v1949, %v1991
        %1993 = vmatmul.f32.gmra.mxu0 %v1966
        %v1994 = vpop.f32.mrf.mxu0
        %v1995 = vadd.f32 %v1954, %v1994
        %1996 = vdwg.mxu0
        %v1997 = vmax.f32 %v1986, 0.0
        %v1998 = vmax.f32 %v1989, 0.0
        %v1999 = vmax.f32 %v1992, 0.0
        %v2000 = vmax.f32 %v1995, 0.0
        %v2001 = vadd.f32 %v1847, %v1997
        %v2002 = vadd.f32 %v1848, %v1998
        %v2003 = vadd.f32 %v1849, %v1999
        %v2004 = vadd.f32 %v1850, %v2000
        %s2005 = scalar_lea.vmem %s13, 96
        %v2006 = vld [vmem:[%s2005] sm:$0xff]
        %v2007 = vld [vmem:[%s2005 + $0x8] sm:$0xff]
        %v2008 = vld [vmem:[%s2005 + $0x10] sm:$0xff]
        %v2009 = vld [vmem:[%s2005 + $0x18] sm:$0xff]
        %s2010 = scalar_lea.vmem %s14, 96
        %v2011 = vld [vmem:[%s2010] sm:$0xff]
        %v2012 = vld [vmem:[%s2010 + $0x8] sm:$0xff]
        %v2013 = vld [vmem:[%s2010 + $0x10] sm:$0xff]
        %v2014 = vld [vmem:[%s2010 + $0x18] sm:$0xff]
        %2016 = vset.pattern.permute.xlu0 0
        %2017 = vperm.xlu0 %2016, %v2011
        %v2018 = vpop.permute.xlu0 %2017
        %2021 = vset.pattern.permute.xlu0 0
        %2022 = vperm.xlu0 %2021, %v2012
        %v2023 = vpop.permute.xlu0 %2022
        %2026 = vset.pattern.permute.xlu0 0
        %2027 = vperm.xlu0 %2026, %v2013
        %v2028 = vpop.permute.xlu0 %2027
        %2031 = vset.pattern.permute.xlu0 0
        %2032 = vperm.xlu0 %2031, %v2014
        %v2033 = vpop.permute.xlu0 %2032
        %v2036 = vsel %vm1163, %v2006, 0
        %v2039 = vsel %vm1163, %v2007, 0
        %v2042 = vsel %vm1163, %v2008, 0
        %v2045 = vsel %vm1163, %v2009, 0
        %2047 = vmatpush.msra.mxu0 0.0
        %2048 = vmatpush.msra.mxu0 0.0
        %2049 = vmatpush.msra.mxu0 0.0
        %2050 = vmatpush.msra.mxu0 0.0
        %2051 = vmatpush.msra.mxu0 0.0
        %2052 = vmatpush.msra.mxu0 0.0
        %2053 = vmatpush.msra.mxu0 0.0
        %2054 = vmatpush.msra.mxu0 0.0
        %2055 = vmatpush.msra.mxu0 0.0
        %2056 = vmatpush.msra.mxu0 0.0
        %2057 = vmatpush.msra.mxu0 0.0
        %2058 = vmatpush.msra.mxu0 0.0
        %2059 = vmatpush.msra.mxu0 %v2004
        %2060 = vmatpush.msra.mxu0 %v2003
        %2061 = vmatpush.msra.mxu0 %v2002
        %2062 = vmatpush.msra.mxu0 %v2001
        %2063 = vmatmul.f32.gmra.mxu0 %v2036
        %v2064 = vpop.f32.mrf.mxu0
        %v2065 = vadd.f32 %v2018, %v2064
        %2066 = vmatmul.f32.gmra.mxu0 %v2039
        %v2067 = vpop.f32.mrf.mxu0
        %v2068 = vadd.f32 %v2023, %v2067
        %2069 = vmatmul.f32.gmra.mxu0 %v2042
        %v2070 = vpop.f32.mrf.mxu0
        %v2071 = vadd.f32 %v2028, %v2070
        %2072 = vmatmul.f32.gmra.mxu0 %v2045
        %v2073 = vpop.f32.mrf.mxu0
        %v2074 = vadd.f32 %v2033, %v2073
        %2075 = vdwg.mxu0
        %v2076 = vmax.f32 %v2065, 0.0
        %v2077 = vmax.f32 %v2068, 0.0
        %v2078 = vmax.f32 %v2071, 0.0
        %v2079 = vmax.f32 %v2074, 0.0
        %s2080 = scalar_lea.vmem %s15, 96
        %v2081 = vld [vmem:[%s2080] sm:$0xff]
        %v2082 = vld [vmem:[%s2080 + $0x8] sm:$0xff]
        %v2083 = vld [vmem:[%s2080 + $0x10] sm:$0xff]
        %v2084 = vld [vmem:[%s2080 + $0x18] sm:$0xff]
        %s2085 = scalar_lea.vmem %s16, 96
        %v2086 = vld [vmem:[%s2085] sm:$0xff]
        %v2087 = vld [vmem:[%s2085 + $0x8] sm:$0xff]
        %v2088 = vld [vmem:[%s2085 + $0x10] sm:$0xff]
        %v2089 = vld [vmem:[%s2085 + $0x18] sm:$0xff]
        %2091 = vset.pattern.permute.xlu0 0
        %2092 = vperm.xlu0 %2091, %v2086
        %v2093 = vpop.permute.xlu0 %2092
        %2096 = vset.pattern.permute.xlu0 0
        %2097 = vperm.xlu0 %2096, %v2087
        %v2098 = vpop.permute.xlu0 %2097
        %2101 = vset.pattern.permute.xlu0 0
        %2102 = vperm.xlu0 %2101, %v2088
        %v2103 = vpop.permute.xlu0 %2102
        %2106 = vset.pattern.permute.xlu0 0
        %2107 = vperm.xlu0 %2106, %v2089
        %v2108 = vpop.permute.xlu0 %2107
        %v2111 = vsel %vm1163, %v2081, 0
        %v2114 = vsel %vm1163, %v2082, 0
        %v2117 = vsel %vm1163, %v2083, 0
        %v2120 = vsel %vm1163, %v2084, 0
        %2122 = vmatpush.msra.mxu0 0.0
        %2123 = vmatpush.msra.mxu0 0.0
        %2124 = vmatpush.msra.mxu0 0.0
        %2125 = vmatpush.msra.mxu0 0.0
        %2126 = vmatpush.msra.mxu0 0.0
        %2127 = vmatpush.msra.mxu0 0.0
        %2128 = vmatpush.msra.mxu0 0.0
        %2129 = vmatpush.msra.mxu0 0.0
        %2130 = vmatpush.msra.mxu0 0.0
        %2131 = vmatpush.msra.mxu0 0.0
        %2132 = vmatpush.msra.mxu0 0.0
        %2133 = vmatpush.msra.mxu0 0.0
        %2134 = vmatpush.msra.mxu0 %v2079
        %2135 = vmatpush.msra.mxu0 %v2078
        %2136 = vmatpush.msra.mxu0 %v2077
        %2137 = vmatpush.msra.mxu0 %v2076
        %2138 = vmatmul.f32.gmra.mxu0 %v2111
        %v2139 = vpop.f32.mrf.mxu0
        %v2140 = vadd.f32 %v2093, %v2139
        %2141 = vmatmul.f32.gmra.mxu0 %v2114
        %v2142 = vpop.f32.mrf.mxu0
        %v2143 = vadd.f32 %v2098, %v2142
        %2144 = vmatmul.f32.gmra.mxu0 %v2117
        %v2145 = vpop.f32.mrf.mxu0
        %v2146 = vadd.f32 %v2103, %v2145
        %2147 = vmatmul.f32.gmra.mxu0 %v2120
        %v2148 = vpop.f32.mrf.mxu0
        %v2149 = vadd.f32 %v2108, %v2148
        %2150 = vdwg.mxu0
        %v2151 = vmax.f32 %v2140, 0.0
        %v2152 = vmax.f32 %v2143, 0.0
        %v2153 = vmax.f32 %v2146, 0.0
        %v2154 = vmax.f32 %v2149, 0.0
        %v2155 = vadd.f32 %v2001, %v2151
        %v2156 = vadd.f32 %v2002, %v2152
        %v2157 = vadd.f32 %v2003, %v2153
        %v2158 = vadd.f32 %v2004, %v2154
        %s2159 = scalar_lea.vmem %s17, 8
        %v2160 = vld [vmem:[%s2159] sm:$0xff]
        %s2161 = scalar_lea.vmem %s18, 8
        %v2162 = vld [vmem:[%s2161] sm:$0xff]
        %2164 = vset.pattern.permute.xlu0 0
        %2165 = vperm.xlu0 %2164, %v2162
        %v2166 = vpop.permute.xlu0 %2165
        %v2169 = vsel %vm1163, %v2160, 0
        %2171 = vmatpush.msra.mxu0 0.0
        %2172 = vmatpush.msra.mxu0 0.0
        %2173 = vmatpush.msra.mxu0 0.0
        %2174 = vmatpush.msra.mxu0 0.0
        %2175 = vmatpush.msra.mxu0 0.0
        %2176 = vmatpush.msra.mxu0 0.0
        %2177 = vmatpush.msra.mxu0 0.0
        %2178 = vmatpush.msra.mxu0 0.0
        %2179 = vmatpush.msra.mxu0 0.0
        %2180 = vmatpush.msra.mxu0 0.0
        %2181 = vmatpush.msra.mxu0 0.0
        %2182 = vmatpush.msra.mxu0 0.0
        %2183 = vmatpush.msra.mxu0 %v2158
        %2184 = vmatpush.msra.mxu0 %v2157
        %2185 = vmatpush.msra.mxu0 %v2156
        %2186 = vmatpush.msra.mxu0 %v2155
        %2187 = vmatmul.f32.gmra.mxu0 %v2169
        %v2188 = vpop.f32.mrf.mxu0
        %v2189 = vadd.f32 %v2166, %v2188
        %2190 = vdwg.mxu0
        %s2191 = scalar_lea.vmem %s19, 8
        %v2192 = vld [vmem:[%s2191] sm:$0xff]
        %2194 = vset.pattern.permute.xlu0 0
        %2195 = vperm.xlu0 %2194, %v2192
        %v2196 = vpop.permute.xlu0 %2195
        %v2198 = vmul.f32 %v2189, %v2196
        %v2199 = vadd.f32 %v1770, %v2198
        %s2200 = scalar_lea.vmem %s4, 32
        %v2201 = vld [vmem:[%s2200] sm:$0xff]
        %v2202 = vld [vmem:[%s2200 + $0x8] sm:$0xff]
        %s2203 = scalar_lea.vmem %s5, 32
        %v2204 = vld [vmem:[%s2203] sm:$0xff]
        %v2205 = vld [vmem:[%s2203 + $0x8] sm:$0xff]
        %2207 = vset.pattern.permute.xlu0 0
        %2208 = vperm.xlu0 %2207, %v2204
        %v2209 = vpop.permute.xlu0 %2208
        %2212 = vset.pattern.permute.xlu0 0
        %2213 = vperm.xlu0 %2212, %v2205
        %v2214 = vpop.permute.xlu0 %2213
        %v2217 = vsel %vm1163, %v2201, 0
        %v2220 = vsel %vm1163, %v2202, 0
        %2222 = vmatpush.msra.mxu0 0.0
        %2223 = vmatpush.msra.mxu0 0.0
        %2224 = vmatpush.msra.mxu0 0.0
        %2225 = vmatpush.msra.mxu0 0.0
        %2226 = vmatpush.msra.mxu0 0.0
        %2227 = vmatpush.msra.mxu0 0.0
        %2228 = vmatpush.msra.mxu0 0.0
        %2229 = vmatpush.msra.mxu0 0.0
        %2230 = vmatpush.msra.mxu0 0.0
        %2231 = vmatpush.msra.mxu0 0.0
        %2232 = vmatpush.msra.mxu0 0.0
        %2233 = vmatpush.msra.mxu0 0.0
        %2234 = vmatpush.msra.mxu0 %v1015
        %2235 = vmatpush.msra.mxu0 %v1014
        %2236 = vmatpush.msra.mxu0 %v1013
        %2237 = vmatpush.msra.mxu0 %v1012
        %2238 = vmatmul.f32.gmra.mxu0 %v2217
        %v2239 = vpop.f32.mrf.mxu0
        %v2240 = vadd.f32 %v2209, %v2239
        %2241 = vmatmul.f32.gmra.mxu0 %v2220
        %v2242 = vpop.f32.mrf.mxu0
        %v2243 = vadd.f32 %v2214, %v2242
        %2244 = vdwg.mxu0
        %s2245 = scalar_lea.vmem %s6, 16
        %v2246 = vld [vmem:[%s2245] sm:$0xff]
        %2248 = vset.pattern.permute.xlu0 0
        %2249 = vperm.xlu0 %2248, %v2246
        %v2250 = vpop.permute.xlu0 %2249
        %v2252 = vadd.f32 %v2250, %v2240
        %v2253 = vmul.f32 %v2252, 1.442695
        %v2254 = vpow.pop %v2253
        %v2255 = vmul.f32 %v2199, %v2254
        %s2256 = scalar_lea.vmem %s7, 16
        %v2257 = vld [vmem:[%s2256] sm:$0xff]
        %2259 = vset.pattern.permute.xlu0 0
        %2260 = vperm.xlu0 %2259, %v2257
        %v2261 = vpop.permute.xlu0 %2260
        %v2263 = vadd.f32 %v2261, %v2243
        %v2264 = vadd.f32 %v2255, %v2263
        %v2265 = vrot.slane %v2252, 4
        %v2266 = vadd.f32 %v2252, %v2265
        %v2267 = vrot.slane %v2266, 2
        %v2268 = vadd.f32 %v2266, %v2267
        %v2269 = vrot.slane %v2268, 1
        %v2270 = vadd.f32 %v2268, %v2269
        %v2271 = vadd.f32 %v1739, %v2270
        %s2272 = scalar_lea.vmem %s8, 16
        %v2273 = vld [vmem:[%s2272] sm:$0xff]
        %s2274 = scalar_lea.vmem %s9, 16
        %v2275 = vld [vmem:[%s2274] sm:$0xff]
        %2277 = vset.pattern.permute.xlu0 0
        %2278 = vperm.xlu0 %2277, %v2275
        %v2279 = vpop.permute.xlu0 %2278
        %v2282 = vsel %vm1225, %v2273, 0
        %2284 = vmatpush.msra.mxu0 0.0
        %2285 = vmatpush.msra.mxu0 0.0
        %2286 = vmatpush.msra.mxu0 0.0
        %2287 = vmatpush.msra.mxu0 0.0
        %2288 = vmatpush.msra.mxu0 0.0
        %2289 = vmatpush.msra.mxu0 0.0
        %2290 = vmatpush.msra.mxu0 0.0
        %2291 = vmatpush.msra.mxu0 0.0
        %2292 = vmatpush.msra.mxu0 0.0
        %2293 = vmatpush.msra.mxu0 0.0
        %2294 = vmatpush.msra.mxu0 0.0
        %2295 = vmatpush.msra.mxu0 0.0
        %2296 = vmatpush.msra.mxu0 0.0
        %2297 = vmatpush.msra.mxu0 0.0
        %2298 = vmatpush.msra.mxu0 0.0
        %2299 = vmatpush.msra.mxu0 %v2264
        %2300 = vmatmul.f32.gmra.mxu0 %v2282
        %v2301 = vpop.f32.mrf.mxu0
        %v2302 = vadd.f32 %v2279, %v2301
        %2303 = vdwg.mxu0
        %s2304 = scalar_lea.vmem %s10, 64
        %v2305 = vld [vmem:[%s2304] sm:$0xff]
        %v2306 = vld [vmem:[%s2304 + $0x8] sm:$0xff]
        %v2307 = vld [vmem:[%s2304 + $0x10] sm:$0xff]
        %v2308 = vld [vmem:[%s2304 + $0x18] sm:$0xff]
        %v2310 = vsel %vm1225, %v2305, 0
        %v2313 = vsel %vm1225, %v2306, 0
        %v2316 = vsel %vm1225, %v2307, 0
        %v2319 = vsel %vm1225, %v2308, 0
        %2321 = vmatpush.msra.mxu0 0.0
        %2322 = vmatpush.msra.mxu0 0.0
        %2323 = vmatpush.msra.mxu0 0.0
        %2324 = vmatpush.msra.mxu0 0.0
        %2325 = vmatpush.msra.mxu0 0.0
        %2326 = vmatpush.msra.mxu0 0.0
        %2327 = vmatpush.msra.mxu0 0.0
        %2328 = vmatpush.msra.mxu0 0.0
        %2329 = vmatpush.msra.mxu0 0.0
        %2330 = vmatpush.msra.mxu0 0.0
        %2331 = vmatpush.msra.mxu0 0.0
        %2332 = vmatpush.msra.mxu0 0.0
        %2333 = vmatpush.msra.mxu0 0.0
        %2334 = vmatpush.msra.mxu0 0.0
        %2335 = vmatpush.msra.mxu0 0.0
        %2336 = vmatpush.msra.mxu0 %v2302
        %2337 = vmatmul.f32.gmra.mxu0 %v2310
        %v2338 = vpop.f32.mrf.mxu0
        %v2339 = vadd.f32 %v1126, %v2338
        %2340 = vmatmul.f32.gmra.mxu0 %v2313
        %v2341 = vpop.f32.mrf.mxu0
        %v2342 = vadd.f32 %v1129, %v2341
        %2343 = vmatmul.f32.gmra.mxu0 %v2316
        %v2344 = vpop.f32.mrf.mxu0
        %v2345 = vadd.f32 %v1132, %v2344
        %2346 = vmatmul.f32.gmra.mxu0 %v2319
        %v2347 = vpop.f32.mrf.mxu0
        %v2348 = vadd.f32 %v1135, %v2347
        %2349 = vdwg.mxu0
        %s2350 = scalar_lea.vmem %s12, 64
        %v2351 = vld [vmem:[%s2350] sm:$0xff]
        %v2352 = vld [vmem:[%s2350 + $0x8] sm:$0xff]
        %v2353 = vld [vmem:[%s2350 + $0x10] sm:$0xff]
        %v2354 = vld [vmem:[%s2350 + $0x18] sm:$0xff]
        %2356 = vset.pattern.permute.xlu0 0
        %2357 = vperm.xlu0 %2356, %v2351
        %v2358 = vpop.permute.xlu0 %2357
        %2361 = vset.pattern.permute.xlu0 0
        %2362 = vperm.xlu0 %2361, %v2352
        %v2363 = vpop.permute.xlu0 %2362
        %2366 = vset.pattern.permute.xlu0 0
        %2367 = vperm.xlu0 %2366, %v2353
        %v2368 = vpop.permute.xlu0 %2367
        %2371 = vset.pattern.permute.xlu0 0
        %2372 = vperm.xlu0 %2371, %v2354
        %v2373 = vpop.permute.xlu0 %2372
        %v2375 = vadd.f32 %v2339, %v2358
        %v2376 = vadd.f32 %v2342, %v2363
        %v2377 = vadd.f32 %v2345, %v2368
        %v2378 = vadd.f32 %v2348, %v2373
        %v2379 = vmax.f32 %v2375, 0.0
        %v2380 = vmax.f32 %v2376, 0.0
        %v2381 = vmax.f32 %v2377, 0.0
        %v2382 = vmax.f32 %v2378, 0.0
        %s2383 = scalar_lea.vmem %s13, 128
        %v2384 = vld [vmem:[%s2383] sm:$0xff]
        %v2385 = vld [vmem:[%s2383 + $0x8] sm:$0xff]
        %v2386 = vld [vmem:[%s2383 + $0x10] sm:$0xff]
        %v2387 = vld [vmem:[%s2383 + $0x18] sm:$0xff]
        %s2388 = scalar_lea.vmem %s14, 128
        %v2389 = vld [vmem:[%s2388] sm:$0xff]
        %v2390 = vld [vmem:[%s2388 + $0x8] sm:$0xff]
        %v2391 = vld [vmem:[%s2388 + $0x10] sm:$0xff]
        %v2392 = vld [vmem:[%s2388 + $0x18] sm:$0xff]
        %2394 = vset.pattern.permute.xlu0 0
        %2395 = vperm.xlu0 %2394, %v2389
        %v2396 = vpop.permute.xlu0 %2395
        %2399 = vset.pattern.permute.xlu0 0
        %2400 = vperm.xlu0 %2399, %v2390
        %v2401 = vpop.permute.xlu0 %2400
        %2404 = vset.pattern.permute.xlu0 0
        %2405 = vperm.xlu0 %2404, %v2391
        %v2406 = vpop.permute.xlu0 %2405
        %2409 = vset.pattern.permute.xlu0 0
        %2410 = vperm.xlu0 %2409, %v2392
        %v2411 = vpop.permute.xlu0 %2410
        %v2414 = vsel %vm1163, %v2384, 0
        %v2417 = vsel %vm1163, %v2385, 0
        %v2420 = vsel %vm1163, %v2386, 0
        %v2423 = vsel %vm1163, %v2387, 0
        %2425 = vmatpush.msra.mxu0 0.0
        %2426 = vmatpush.msra.mxu0 0.0
        %2427 = vmatpush.msra.mxu0 0.0
        %2428 = vmatpush.msra.mxu0 0.0
        %2429 = vmatpush.msra.mxu0 0.0
        %2430 = vmatpush.msra.mxu0 0.0
        %2431 = vmatpush.msra.mxu0 0.0
        %2432 = vmatpush.msra.mxu0 0.0
        %2433 = vmatpush.msra.mxu0 0.0
        %2434 = vmatpush.msra.mxu0 0.0
        %2435 = vmatpush.msra.mxu0 0.0
        %2436 = vmatpush.msra.mxu0 0.0
        %2437 = vmatpush.msra.mxu0 %v2382
        %2438 = vmatpush.msra.mxu0 %v2381
        %2439 = vmatpush.msra.mxu0 %v2380
        %2440 = vmatpush.msra.mxu0 %v2379
        %2441 = vmatmul.f32.gmra.mxu0 %v2414
        %v2442 = vpop.f32.mrf.mxu0
        %v2443 = vadd.f32 %v2396, %v2442
        %2444 = vmatmul.f32.gmra.mxu0 %v2417
        %v2445 = vpop.f32.mrf.mxu0
        %v2446 = vadd.f32 %v2401, %v2445
        %2447 = vmatmul.f32.gmra.mxu0 %v2420
        %v2448 = vpop.f32.mrf.mxu0
        %v2449 = vadd.f32 %v2406, %v2448
        %2450 = vmatmul.f32.gmra.mxu0 %v2423
        %v2451 = vpop.f32.mrf.mxu0
        %v2452 = vadd.f32 %v2411, %v2451
        %2453 = vdwg.mxu0
        %v2454 = vmax.f32 %v2443, 0.0
        %v2455 = vmax.f32 %v2446, 0.0
        %v2456 = vmax.f32 %v2449, 0.0
        %v2457 = vmax.f32 %v2452, 0.0
        %s2458 = scalar_lea.vmem %s15, 128
        %v2459 = vld [vmem:[%s2458] sm:$0xff]
        %v2460 = vld [vmem:[%s2458 + $0x8] sm:$0xff]
        %v2461 = vld [vmem:[%s2458 + $0x10] sm:$0xff]
        %v2462 = vld [vmem:[%s2458 + $0x18] sm:$0xff]
        %s2463 = scalar_lea.vmem %s16, 128
        %v2464 = vld [vmem:[%s2463] sm:$0xff]
        %v2465 = vld [vmem:[%s2463 + $0x8] sm:$0xff]
        %v2466 = vld [vmem:[%s2463 + $0x10] sm:$0xff]
        %v2467 = vld [vmem:[%s2463 + $0x18] sm:$0xff]
        %2469 = vset.pattern.permute.xlu0 0
        %2470 = vperm.xlu0 %2469, %v2464
        %v2471 = vpop.permute.xlu0 %2470
        %2474 = vset.pattern.permute.xlu0 0
        %2475 = vperm.xlu0 %2474, %v2465
        %v2476 = vpop.permute.xlu0 %2475
        %2479 = vset.pattern.permute.xlu0 0
        %2480 = vperm.xlu0 %2479, %v2466
        %v2481 = vpop.permute.xlu0 %2480
        %2484 = vset.pattern.permute.xlu0 0
        %2485 = vperm.xlu0 %2484, %v2467
        %v2486 = vpop.permute.xlu0 %2485
        %v2489 = vsel %vm1163, %v2459, 0
        %v2492 = vsel %vm1163, %v2460, 0
        %v2495 = vsel %vm1163, %v2461, 0
        %v2498 = vsel %vm1163, %v2462, 0
        %2500 = vmatpush.msra.mxu0 0.0
        %2501 = vmatpush.msra.mxu0 0.0
        %2502 = vmatpush.msra.mxu0 0.0
        %2503 = vmatpush.msra.mxu0 0.0
        %2504 = vmatpush.msra.mxu0 0.0
        %2505 = vmatpush.msra.mxu0 0.0
        %2506 = vmatpush.msra.mxu0 0.0
        %2507 = vmatpush.msra.mxu0 0.0
        %2508 = vmatpush.msra.mxu0 0.0
        %2509 = vmatpush.msra.mxu0 0.0
        %2510 = vmatpush.msra.mxu0 0.0
        %2511 = vmatpush.msra.mxu0 0.0
        %2512 = vmatpush.msra.mxu0 %v2457
        %2513 = vmatpush.msra.mxu0 %v2456
        %2514 = vmatpush.msra.mxu0 %v2455
        %2515 = vmatpush.msra.mxu0 %v2454
        %2516 = vmatmul.f32.gmra.mxu0 %v2489
        %v2517 = vpop.f32.mrf.mxu0
        %v2518 = vadd.f32 %v2471, %v2517
        %2519 = vmatmul.f32.gmra.mxu0 %v2492
        %v2520 = vpop.f32.mrf.mxu0
        %v2521 = vadd.f32 %v2476, %v2520
        %2522 = vmatmul.f32.gmra.mxu0 %v2495
        %v2523 = vpop.f32.mrf.mxu0
        %v2524 = vadd.f32 %v2481, %v2523
        %2525 = vmatmul.f32.gmra.mxu0 %v2498
        %v2526 = vpop.f32.mrf.mxu0
        %v2527 = vadd.f32 %v2486, %v2526
        %2528 = vdwg.mxu0
        %v2529 = vmax.f32 %v2518, 0.0
        %v2530 = vmax.f32 %v2521, 0.0
        %v2531 = vmax.f32 %v2524, 0.0
        %v2532 = vmax.f32 %v2527, 0.0
        %v2533 = vadd.f32 %v2379, %v2529
        %v2534 = vadd.f32 %v2380, %v2530
        %v2535 = vadd.f32 %v2381, %v2531
        %v2536 = vadd.f32 %v2382, %v2532
        %s2537 = scalar_lea.vmem %s13, 160
        %v2538 = vld [vmem:[%s2537] sm:$0xff]
        %v2539 = vld [vmem:[%s2537 + $0x8] sm:$0xff]
        %v2540 = vld [vmem:[%s2537 + $0x10] sm:$0xff]
        %v2541 = vld [vmem:[%s2537 + $0x18] sm:$0xff]
        %s2542 = scalar_lea.vmem %s14, 160
        %v2543 = vld [vmem:[%s2542] sm:$0xff]
        %v2544 = vld [vmem:[%s2542 + $0x8] sm:$0xff]
        %v2545 = vld [vmem:[%s2542 + $0x10] sm:$0xff]
        %v2546 = vld [vmem:[%s2542 + $0x18] sm:$0xff]
        %2548 = vset.pattern.permute.xlu0 0
        %2549 = vperm.xlu0 %2548, %v2543
        %v2550 = vpop.permute.xlu0 %2549
        %2553 = vset.pattern.permute.xlu0 0
        %2554 = vperm.xlu0 %2553, %v2544
        %v2555 = vpop.permute.xlu0 %2554
        %2558 = vset.pattern.permute.xlu0 0
        %2559 = vperm.xlu0 %2558, %v2545
        %v2560 = vpop.permute.xlu0 %2559
        %2563 = vset.pattern.permute.xlu0 0
        %2564 = vperm.xlu0 %2563, %v2546
        %v2565 = vpop.permute.xlu0 %2564
        %v2568 = vsel %vm1163, %v2538, 0
        %v2571 = vsel %vm1163, %v2539, 0
        %v2574 = vsel %vm1163, %v2540, 0
        %v2577 = vsel %vm1163, %v2541, 0
        %2579 = vmatpush.msra.mxu0 0.0
        %2580 = vmatpush.msra.mxu0 0.0
        %2581 = vmatpush.msra.mxu0 0.0
        %2582 = vmatpush.msra.mxu0 0.0
        %2583 = vmatpush.msra.mxu0 0.0
        %2584 = vmatpush.msra.mxu0 0.0
        %2585 = vmatpush.msra.mxu0 0.0
        %2586 = vmatpush.msra.mxu0 0.0
        %2587 = vmatpush.msra.mxu0 0.0
        %2588 = vmatpush.msra.mxu0 0.0
        %2589 = vmatpush.msra.mxu0 0.0
        %2590 = vmatpush.msra.mxu0 0.0
        %2591 = vmatpush.msra.mxu0 %v2536
        %2592 = vmatpush.msra.mxu0 %v2535
        %2593 = vmatpush.msra.mxu0 %v2534
        %2594 = vmatpush.msra.mxu0 %v2533
        %2595 = vmatmul.f32.gmra.mxu0 %v2568
        %v2596 = vpop.f32.mrf.mxu0
        %v2597 = vadd.f32 %v2550, %v2596
        %2598 = vmatmul.f32.gmra.mxu0 %v2571
        %v2599 = vpop.f32.mrf.mxu0
        %v2600 = vadd.f32 %v2555, %v2599
        %2601 = vmatmul.f32.gmra.mxu0 %v2574
        %v2602 = vpop.f32.mrf.mxu0
        %v2603 = vadd.f32 %v2560, %v2602
        %2604 = vmatmul.f32.gmra.mxu0 %v2577
        %v2605 = vpop.f32.mrf.mxu0
        %v2606 = vadd.f32 %v2565, %v2605
        %2607 = vdwg.mxu0
        %v2608 = vmax.f32 %v2597, 0.0
        %v2609 = vmax.f32 %v2600, 0.0
        %v2610 = vmax.f32 %v2603, 0.0
        %v2611 = vmax.f32 %v2606, 0.0
        %s2612 = scalar_lea.vmem %s15, 160
        %v2613 = vld [vmem:[%s2612] sm:$0xff]
        %v2614 = vld [vmem:[%s2612 + $0x8] sm:$0xff]
        %v2615 = vld [vmem:[%s2612 + $0x10] sm:$0xff]
        %v2616 = vld [vmem:[%s2612 + $0x18] sm:$0xff]
        %s2617 = scalar_lea.vmem %s16, 160
        %v2618 = vld [vmem:[%s2617] sm:$0xff]
        %v2619 = vld [vmem:[%s2617 + $0x8] sm:$0xff]
        %v2620 = vld [vmem:[%s2617 + $0x10] sm:$0xff]
        %v2621 = vld [vmem:[%s2617 + $0x18] sm:$0xff]
        %2623 = vset.pattern.permute.xlu0 0
        %2624 = vperm.xlu0 %2623, %v2618
        %v2625 = vpop.permute.xlu0 %2624
        %2628 = vset.pattern.permute.xlu0 0
        %2629 = vperm.xlu0 %2628, %v2619
        %v2630 = vpop.permute.xlu0 %2629
        %2633 = vset.pattern.permute.xlu0 0
        %2634 = vperm.xlu0 %2633, %v2620
        %v2635 = vpop.permute.xlu0 %2634
        %2638 = vset.pattern.permute.xlu0 0
        %2639 = vperm.xlu0 %2638, %v2621
        %v2640 = vpop.permute.xlu0 %2639
        %v2643 = vsel %vm1163, %v2613, 0
        %v2646 = vsel %vm1163, %v2614, 0
        %v2649 = vsel %vm1163, %v2615, 0
        %v2652 = vsel %vm1163, %v2616, 0
        %2654 = vmatpush.msra.mxu0 0.0
        %2655 = vmatpush.msra.mxu0 0.0
        %2656 = vmatpush.msra.mxu0 0.0
        %2657 = vmatpush.msra.mxu0 0.0
        %2658 = vmatpush.msra.mxu0 0.0
        %2659 = vmatpush.msra.mxu0 0.0
        %2660 = vmatpush.msra.mxu0 0.0
        %2661 = vmatpush.msra.mxu0 0.0
        %2662 = vmatpush.msra.mxu0 0.0
        %2663 = vmatpush.msra.mxu0 0.0
        %2664 = vmatpush.msra.mxu0 0.0
        %2665 = vmatpush.msra.mxu0 0.0
        %2666 = vmatpush.msra.mxu0 %v2611
        %2667 = vmatpush.msra.mxu0 %v2610
        %2668 = vmatpush.msra.mxu0 %v2609
        %2669 = vmatpush.msra.mxu0 %v2608
        %2670 = vmatmul.f32.gmra.mxu0 %v2643
        %v2671 = vpop.f32.mrf.mxu0
        %v2672 = vadd.f32 %v2625, %v2671
        %2673 = vmatmul.f32.gmra.mxu0 %v2646
        %v2674 = vpop.f32.mrf.mxu0
        %v2675 = vadd.f32 %v2630, %v2674
        %2676 = vmatmul.f32.gmra.mxu0 %v2649
        %v2677 = vpop.f32.mrf.mxu0
        %v2678 = vadd.f32 %v2635, %v2677
        %2679 = vmatmul.f32.gmra.mxu0 %v2652
        %v2680 = vpop.f32.mrf.mxu0
        %v2681 = vadd.f32 %v2640, %v2680
        %2682 = vdwg.mxu0
        %v2683 = vmax.f32 %v2672, 0.0
        %v2684 = vmax.f32 %v2675, 0.0
        %v2685 = vmax.f32 %v2678, 0.0
        %v2686 = vmax.f32 %v2681, 0.0
        %v2687 = vadd.f32 %v2533, %v2683
        %v2688 = vadd.f32 %v2534, %v2684
        %v2689 = vadd.f32 %v2535, %v2685
        %v2690 = vadd.f32 %v2536, %v2686
        %s2691 = scalar_lea.vmem %s17, 16
        %v2692 = vld [vmem:[%s2691] sm:$0xff]
        %s2693 = scalar_lea.vmem %s18, 16
        %v2694 = vld [vmem:[%s2693] sm:$0xff]
        %2696 = vset.pattern.permute.xlu0 0
        %2697 = vperm.xlu0 %2696, %v2694
        %v2698 = vpop.permute.xlu0 %2697
        %v2701 = vsel %vm1163, %v2692, 0
        %2703 = vmatpush.msra.mxu0 0.0
        %2704 = vmatpush.msra.mxu0 0.0
        %2705 = vmatpush.msra.mxu0 0.0
        %2706 = vmatpush.msra.mxu0 0.0
        %2707 = vmatpush.msra.mxu0 0.0
        %2708 = vmatpush.msra.mxu0 0.0
        %2709 = vmatpush.msra.mxu0 0.0
        %2710 = vmatpush.msra.mxu0 0.0
        %2711 = vmatpush.msra.mxu0 0.0
        %2712 = vmatpush.msra.mxu0 0.0
        %2713 = vmatpush.msra.mxu0 0.0
        %2714 = vmatpush.msra.mxu0 0.0
        %2715 = vmatpush.msra.mxu0 %v2690
        %2716 = vmatpush.msra.mxu0 %v2689
        %2717 = vmatpush.msra.mxu0 %v2688
        %2718 = vmatpush.msra.mxu0 %v2687
        %2719 = vmatmul.f32.gmra.mxu0 %v2701
        %v2720 = vpop.f32.mrf.mxu0
        %v2721 = vadd.f32 %v2698, %v2720
        %2722 = vdwg.mxu0
        %s2723 = scalar_lea.vmem %s19, 16
        %v2724 = vld [vmem:[%s2723] sm:$0xff]
        %2726 = vset.pattern.permute.xlu0 0
        %2727 = vperm.xlu0 %2726, %v2724
        %v2728 = vpop.permute.xlu0 %2727
        %v2730 = vmul.f32 %v2721, %v2728
        %v2731 = vadd.f32 %v2302, %v2730
        %s2732 = scalar_lea.vmem %s4, 48
        %v2733 = vld [vmem:[%s2732] sm:$0xff]
        %v2734 = vld [vmem:[%s2732 + $0x8] sm:$0xff]
        %s2735 = scalar_lea.vmem %s5, 48
        %v2736 = vld [vmem:[%s2735] sm:$0xff]
        %v2737 = vld [vmem:[%s2735 + $0x8] sm:$0xff]
        %2739 = vset.pattern.permute.xlu0 0
        %2740 = vperm.xlu0 %2739, %v2736
        %v2741 = vpop.permute.xlu0 %2740
        %2744 = vset.pattern.permute.xlu0 0
        %2745 = vperm.xlu0 %2744, %v2737
        %v2746 = vpop.permute.xlu0 %2745
        %v2749 = vsel %vm1163, %v2733, 0
        %v2752 = vsel %vm1163, %v2734, 0
        %2754 = vmatpush.msra.mxu0 0.0
        %2755 = vmatpush.msra.mxu0 0.0
        %2756 = vmatpush.msra.mxu0 0.0
        %2757 = vmatpush.msra.mxu0 0.0
        %2758 = vmatpush.msra.mxu0 0.0
        %2759 = vmatpush.msra.mxu0 0.0
        %2760 = vmatpush.msra.mxu0 0.0
        %2761 = vmatpush.msra.mxu0 0.0
        %2762 = vmatpush.msra.mxu0 0.0
        %2763 = vmatpush.msra.mxu0 0.0
        %2764 = vmatpush.msra.mxu0 0.0
        %2765 = vmatpush.msra.mxu0 0.0
        %2766 = vmatpush.msra.mxu0 %v1019
        %2767 = vmatpush.msra.mxu0 %v1018
        %2768 = vmatpush.msra.mxu0 %v1017
        %2769 = vmatpush.msra.mxu0 %v1016
        %2770 = vmatmul.f32.gmra.mxu0 %v2749
        %v2771 = vpop.f32.mrf.mxu0
        %v2772 = vadd.f32 %v2741, %v2771
        %2773 = vmatmul.f32.gmra.mxu0 %v2752
        %v2774 = vpop.f32.mrf.mxu0
        %v2775 = vadd.f32 %v2746, %v2774
        %2776 = vdwg.mxu0
        %s2777 = scalar_lea.vmem %s6, 24
        %v2778 = vld [vmem:[%s2777] sm:$0xff]
        %2780 = vset.pattern.permute.xlu0 0
        %2781 = vperm.xlu0 %2780, %v2778
        %v2782 = vpop.permute.xlu0 %2781
        %v2784 = vadd.f32 %v2782, %v2772
        %v2785 = vmul.f32 %v2784, 1.442695
        %v2786 = vpow.pop %v2785
        %v2787 = vmul.f32 %v2731, %v2786
        %s2788 = scalar_lea.vmem %s7, 24
        %v2789 = vld [vmem:[%s2788] sm:$0xff]
        %2791 = vset.pattern.permute.xlu0 0
        %2792 = vperm.xlu0 %2791, %v2789
        %v2793 = vpop.permute.xlu0 %2792
        %v2795 = vadd.f32 %v2793, %v2775
        %v2796 = vadd.f32 %v2787, %v2795
        %v2797 = vrot.slane %v2784, 4
        %v2798 = vadd.f32 %v2784, %v2797
        %v2799 = vrot.slane %v2798, 2
        %v2800 = vadd.f32 %v2798, %v2799
        %v2801 = vrot.slane %v2800, 1
        %v2802 = vadd.f32 %v2800, %v2801
        %v2803 = vadd.f32 %v2271, %v2802
        %s2804 = scalar_lea.vmem %s8, 24
        %v2805 = vld [vmem:[%s2804] sm:$0xff]
        %s2806 = scalar_lea.vmem %s9, 24
        %v2807 = vld [vmem:[%s2806] sm:$0xff]
        %2809 = vset.pattern.permute.xlu0 0
        %2810 = vperm.xlu0 %2809, %v2807
        %v2811 = vpop.permute.xlu0 %2810
        %v2814 = vsel %vm1225, %v2805, 0
        %2816 = vmatpush.msra.mxu0 0.0
        %2817 = vmatpush.msra.mxu0 0.0
        %2818 = vmatpush.msra.mxu0 0.0
        %2819 = vmatpush.msra.mxu0 0.0
        %2820 = vmatpush.msra.mxu0 0.0
        %2821 = vmatpush.msra.mxu0 0.0
        %2822 = vmatpush.msra.mxu0 0.0
        %2823 = vmatpush.msra.mxu0 0.0
        %2824 = vmatpush.msra.mxu0 0.0
        %2825 = vmatpush.msra.mxu0 0.0
        %2826 = vmatpush.msra.mxu0 0.0
        %2827 = vmatpush.msra.mxu0 0.0
        %2828 = vmatpush.msra.mxu0 0.0
        %2829 = vmatpush.msra.mxu0 0.0
        %2830 = vmatpush.msra.mxu0 0.0
        %2831 = vmatpush.msra.mxu0 %v2796
        %2832 = vmatmul.f32.gmra.mxu0 %v2814
        %v2833 = vpop.f32.mrf.mxu0
        %v2834 = vadd.f32 %v2811, %v2833
        %2835 = vdwg.mxu0
        %s2836 = scalar_lea.vmem %s10, 96
        %v2837 = vld [vmem:[%s2836] sm:$0xff]
        %v2838 = vld [vmem:[%s2836 + $0x8] sm:$0xff]
        %v2839 = vld [vmem:[%s2836 + $0x10] sm:$0xff]
        %v2840 = vld [vmem:[%s2836 + $0x18] sm:$0xff]
        %v2842 = vsel %vm1225, %v2837, 0
        %v2845 = vsel %vm1225, %v2838, 0
        %v2848 = vsel %vm1225, %v2839, 0
        %v2851 = vsel %vm1225, %v2840, 0
        %2853 = vmatpush.msra.mxu0 0.0
        %2854 = vmatpush.msra.mxu0 0.0
        %2855 = vmatpush.msra.mxu0 0.0
        %2856 = vmatpush.msra.mxu0 0.0
        %2857 = vmatpush.msra.mxu0 0.0
        %2858 = vmatpush.msra.mxu0 0.0
        %2859 = vmatpush.msra.mxu0 0.0
        %2860 = vmatpush.msra.mxu0 0.0
        %2861 = vmatpush.msra.mxu0 0.0
        %2862 = vmatpush.msra.mxu0 0.0
        %2863 = vmatpush.msra.mxu0 0.0
        %2864 = vmatpush.msra.mxu0 0.0
        %2865 = vmatpush.msra.mxu0 0.0
        %2866 = vmatpush.msra.mxu0 0.0
        %2867 = vmatpush.msra.mxu0 0.0
        %2868 = vmatpush.msra.mxu0 %v2834
        %2869 = vmatmul.f32.gmra.mxu0 %v2842
        %v2870 = vpop.f32.mrf.mxu0
        %v2871 = vadd.f32 %v1138, %v2870
        %2872 = vmatmul.f32.gmra.mxu0 %v2845
        %v2873 = vpop.f32.mrf.mxu0
        %v2874 = vadd.f32 %v1141, %v2873
        %2875 = vmatmul.f32.gmra.mxu0 %v2848
        %v2876 = vpop.f32.mrf.mxu0
        %v2877 = vadd.f32 %v1144, %v2876
        %2878 = vmatmul.f32.gmra.mxu0 %v2851
        %v2879 = vpop.f32.mrf.mxu0
        %v2880 = vadd.f32 %v1147, %v2879
        %2881 = vdwg.mxu0
        %s2882 = scalar_lea.vmem %s12, 96
        %v2883 = vld [vmem:[%s2882] sm:$0xff]
        %v2884 = vld [vmem:[%s2882 + $0x8] sm:$0xff]
        %v2885 = vld [vmem:[%s2882 + $0x10] sm:$0xff]
        %v2886 = vld [vmem:[%s2882 + $0x18] sm:$0xff]
        %2888 = vset.pattern.permute.xlu0 0
        %2889 = vperm.xlu0 %2888, %v2883
        %v2890 = vpop.permute.xlu0 %2889
        %2893 = vset.pattern.permute.xlu0 0
        %2894 = vperm.xlu0 %2893, %v2884
        %v2895 = vpop.permute.xlu0 %2894
        %2898 = vset.pattern.permute.xlu0 0
        %2899 = vperm.xlu0 %2898, %v2885
        %v2900 = vpop.permute.xlu0 %2899
        %2903 = vset.pattern.permute.xlu0 0
        %2904 = vperm.xlu0 %2903, %v2886
        %v2905 = vpop.permute.xlu0 %2904
        %v2907 = vadd.f32 %v2871, %v2890
        %v2908 = vadd.f32 %v2874, %v2895
        %v2909 = vadd.f32 %v2877, %v2900
        %v2910 = vadd.f32 %v2880, %v2905
        %v2911 = vmax.f32 %v2907, 0.0
        %v2912 = vmax.f32 %v2908, 0.0
        %v2913 = vmax.f32 %v2909, 0.0
        %v2914 = vmax.f32 %v2910, 0.0
        %s2915 = scalar_lea.vmem %s13, 192
        %v2916 = vld [vmem:[%s2915] sm:$0xff]
        %v2917 = vld [vmem:[%s2915 + $0x8] sm:$0xff]
        %v2918 = vld [vmem:[%s2915 + $0x10] sm:$0xff]
        %v2919 = vld [vmem:[%s2915 + $0x18] sm:$0xff]
        %s2920 = scalar_lea.vmem %s14, 192
        %v2921 = vld [vmem:[%s2920] sm:$0xff]
        %v2922 = vld [vmem:[%s2920 + $0x8] sm:$0xff]
        %v2923 = vld [vmem:[%s2920 + $0x10] sm:$0xff]
        %v2924 = vld [vmem:[%s2920 + $0x18] sm:$0xff]
        %2926 = vset.pattern.permute.xlu0 0
        %2927 = vperm.xlu0 %2926, %v2921
        %v2928 = vpop.permute.xlu0 %2927
        %2931 = vset.pattern.permute.xlu0 0
        %2932 = vperm.xlu0 %2931, %v2922
        %v2933 = vpop.permute.xlu0 %2932
        %2936 = vset.pattern.permute.xlu0 0
        %2937 = vperm.xlu0 %2936, %v2923
        %v2938 = vpop.permute.xlu0 %2937
        %2941 = vset.pattern.permute.xlu0 0
        %2942 = vperm.xlu0 %2941, %v2924
        %v2943 = vpop.permute.xlu0 %2942
        %v2946 = vsel %vm1163, %v2916, 0
        %v2949 = vsel %vm1163, %v2917, 0
        %v2952 = vsel %vm1163, %v2918, 0
        %v2955 = vsel %vm1163, %v2919, 0
        %2957 = vmatpush.msra.mxu0 0.0
        %2958 = vmatpush.msra.mxu0 0.0
        %2959 = vmatpush.msra.mxu0 0.0
        %2960 = vmatpush.msra.mxu0 0.0
        %2961 = vmatpush.msra.mxu0 0.0
        %2962 = vmatpush.msra.mxu0 0.0
        %2963 = vmatpush.msra.mxu0 0.0
        %2964 = vmatpush.msra.mxu0 0.0
        %2965 = vmatpush.msra.mxu0 0.0
        %2966 = vmatpush.msra.mxu0 0.0
        %2967 = vmatpush.msra.mxu0 0.0
        %2968 = vmatpush.msra.mxu0 0.0
        %2969 = vmatpush.msra.mxu0 %v2914
        %2970 = vmatpush.msra.mxu0 %v2913
        %2971 = vmatpush.msra.mxu0 %v2912
        %2972 = vmatpush.msra.mxu0 %v2911
        %2973 = vmatmul.f32.gmra.mxu0 %v2946
        %v2974 = vpop.f32.mrf.mxu0
        %v2975 = vadd.f32 %v2928, %v2974
        %2976 = vmatmul.f32.gmra.mxu0 %v2949
        %v2977 = vpop.f32.mrf.mxu0
        %v2978 = vadd.f32 %v2933, %v2977
        %2979 = vmatmul.f32.gmra.mxu0 %v2952
        %v2980 = vpop.f32.mrf.mxu0
        %v2981 = vadd.f32 %v2938, %v2980
        %2982 = vmatmul.f32.gmra.mxu0 %v2955
        %v2983 = vpop.f32.mrf.mxu0
        %v2984 = vadd.f32 %v2943, %v2983
        %2985 = vdwg.mxu0
        %v2986 = vmax.f32 %v2975, 0.0
        %v2987 = vmax.f32 %v2978, 0.0
        %v2988 = vmax.f32 %v2981, 0.0
        %v2989 = vmax.f32 %v2984, 0.0
        %s2990 = scalar_lea.vmem %s15, 192
        %v2991 = vld [vmem:[%s2990] sm:$0xff]
        %v2992 = vld [vmem:[%s2990 + $0x8] sm:$0xff]
        %v2993 = vld [vmem:[%s2990 + $0x10] sm:$0xff]
        %v2994 = vld [vmem:[%s2990 + $0x18] sm:$0xff]
        %s2995 = scalar_lea.vmem %s16, 192
        %v2996 = vld [vmem:[%s2995] sm:$0xff]
        %v2997 = vld [vmem:[%s2995 + $0x8] sm:$0xff]
        %v2998 = vld [vmem:[%s2995 + $0x10] sm:$0xff]
        %v2999 = vld [vmem:[%s2995 + $0x18] sm:$0xff]
        %3001 = vset.pattern.permute.xlu0 0
        %3002 = vperm.xlu0 %3001, %v2996
        %v3003 = vpop.permute.xlu0 %3002
        %3006 = vset.pattern.permute.xlu0 0
        %3007 = vperm.xlu0 %3006, %v2997
        %v3008 = vpop.permute.xlu0 %3007
        %3011 = vset.pattern.permute.xlu0 0
        %3012 = vperm.xlu0 %3011, %v2998
        %v3013 = vpop.permute.xlu0 %3012
        %3016 = vset.pattern.permute.xlu0 0
        %3017 = vperm.xlu0 %3016, %v2999
        %v3018 = vpop.permute.xlu0 %3017
        %v3021 = vsel %vm1163, %v2991, 0
        %v3024 = vsel %vm1163, %v2992, 0
        %v3027 = vsel %vm1163, %v2993, 0
        %v3030 = vsel %vm1163, %v2994, 0
        %3032 = vmatpush.msra.mxu0 0.0
        %3033 = vmatpush.msra.mxu0 0.0
        %3034 = vmatpush.msra.mxu0 0.0
        %3035 = vmatpush.msra.mxu0 0.0
        %3036 = vmatpush.msra.mxu0 0.0
        %3037 = vmatpush.msra.mxu0 0.0
        %3038 = vmatpush.msra.mxu0 0.0
        %3039 = vmatpush.msra.mxu0 0.0
        %3040 = vmatpush.msra.mxu0 0.0
        %3041 = vmatpush.msra.mxu0 0.0
        %3042 = vmatpush.msra.mxu0 0.0
        %3043 = vmatpush.msra.mxu0 0.0
        %3044 = vmatpush.msra.mxu0 %v2989
        %3045 = vmatpush.msra.mxu0 %v2988
        %3046 = vmatpush.msra.mxu0 %v2987
        %3047 = vmatpush.msra.mxu0 %v2986
        %3048 = vmatmul.f32.gmra.mxu0 %v3021
        %v3049 = vpop.f32.mrf.mxu0
        %v3050 = vadd.f32 %v3003, %v3049
        %3051 = vmatmul.f32.gmra.mxu0 %v3024
        %v3052 = vpop.f32.mrf.mxu0
        %v3053 = vadd.f32 %v3008, %v3052
        %3054 = vmatmul.f32.gmra.mxu0 %v3027
        %v3055 = vpop.f32.mrf.mxu0
        %v3056 = vadd.f32 %v3013, %v3055
        %3057 = vmatmul.f32.gmra.mxu0 %v3030
        %v3058 = vpop.f32.mrf.mxu0
        %v3059 = vadd.f32 %v3018, %v3058
        %3060 = vdwg.mxu0
        %v3061 = vmax.f32 %v3050, 0.0
        %v3062 = vmax.f32 %v3053, 0.0
        %v3063 = vmax.f32 %v3056, 0.0
        %v3064 = vmax.f32 %v3059, 0.0
        %v3065 = vadd.f32 %v2911, %v3061
        %v3066 = vadd.f32 %v2912, %v3062
        %v3067 = vadd.f32 %v2913, %v3063
        %v3068 = vadd.f32 %v2914, %v3064
        %s3069 = scalar_lea.vmem %s13, 224
        %v3070 = vld [vmem:[%s3069] sm:$0xff]
        %v3071 = vld [vmem:[%s3069 + $0x8] sm:$0xff]
        %v3072 = vld [vmem:[%s3069 + $0x10] sm:$0xff]
        %v3073 = vld [vmem:[%s3069 + $0x18] sm:$0xff]
        %s3074 = scalar_lea.vmem %s14, 224
        %v3075 = vld [vmem:[%s3074] sm:$0xff]
        %v3076 = vld [vmem:[%s3074 + $0x8] sm:$0xff]
        %v3077 = vld [vmem:[%s3074 + $0x10] sm:$0xff]
        %v3078 = vld [vmem:[%s3074 + $0x18] sm:$0xff]
        %3080 = vset.pattern.permute.xlu0 0
        %3081 = vperm.xlu0 %3080, %v3075
        %v3082 = vpop.permute.xlu0 %3081
        %3085 = vset.pattern.permute.xlu0 0
        %3086 = vperm.xlu0 %3085, %v3076
        %v3087 = vpop.permute.xlu0 %3086
        %3090 = vset.pattern.permute.xlu0 0
        %3091 = vperm.xlu0 %3090, %v3077
        %v3092 = vpop.permute.xlu0 %3091
        %3095 = vset.pattern.permute.xlu0 0
        %3096 = vperm.xlu0 %3095, %v3078
        %v3097 = vpop.permute.xlu0 %3096
        %v3100 = vsel %vm1163, %v3070, 0
        %v3103 = vsel %vm1163, %v3071, 0
        %v3106 = vsel %vm1163, %v3072, 0
        %v3109 = vsel %vm1163, %v3073, 0
        %3111 = vmatpush.msra.mxu0 0.0
        %3112 = vmatpush.msra.mxu0 0.0
        %3113 = vmatpush.msra.mxu0 0.0
        %3114 = vmatpush.msra.mxu0 0.0
        %3115 = vmatpush.msra.mxu0 0.0
        %3116 = vmatpush.msra.mxu0 0.0
        %3117 = vmatpush.msra.mxu0 0.0
        %3118 = vmatpush.msra.mxu0 0.0
        %3119 = vmatpush.msra.mxu0 0.0
        %3120 = vmatpush.msra.mxu0 0.0
        %3121 = vmatpush.msra.mxu0 0.0
        %3122 = vmatpush.msra.mxu0 0.0
        %3123 = vmatpush.msra.mxu0 %v3068
        %3124 = vmatpush.msra.mxu0 %v3067
        %3125 = vmatpush.msra.mxu0 %v3066
        %3126 = vmatpush.msra.mxu0 %v3065
        %3127 = vmatmul.f32.gmra.mxu0 %v3100
        %v3128 = vpop.f32.mrf.mxu0
        %v3129 = vadd.f32 %v3082, %v3128
        %3130 = vmatmul.f32.gmra.mxu0 %v3103
        %v3131 = vpop.f32.mrf.mxu0
        %v3132 = vadd.f32 %v3087, %v3131
        %3133 = vmatmul.f32.gmra.mxu0 %v3106
        %v3134 = vpop.f32.mrf.mxu0
        %v3135 = vadd.f32 %v3092, %v3134
        %3136 = vmatmul.f32.gmra.mxu0 %v3109
        %v3137 = vpop.f32.mrf.mxu0
        %v3138 = vadd.f32 %v3097, %v3137
        %3139 = vdwg.mxu0
        %v3140 = vmax.f32 %v3129, 0.0
        %v3141 = vmax.f32 %v3132, 0.0
        %v3142 = vmax.f32 %v3135, 0.0
        %v3143 = vmax.f32 %v3138, 0.0
        %s3144 = scalar_lea.vmem %s15, 224
        %v3145 = vld [vmem:[%s3144] sm:$0xff]
        %v3146 = vld [vmem:[%s3144 + $0x8] sm:$0xff]
        %v3147 = vld [vmem:[%s3144 + $0x10] sm:$0xff]
        %v3148 = vld [vmem:[%s3144 + $0x18] sm:$0xff]
        %s3149 = scalar_lea.vmem %s16, 224
        %v3150 = vld [vmem:[%s3149] sm:$0xff]
        %v3151 = vld [vmem:[%s3149 + $0x8] sm:$0xff]
        %v3152 = vld [vmem:[%s3149 + $0x10] sm:$0xff]
        %v3153 = vld [vmem:[%s3149 + $0x18] sm:$0xff]
        %3155 = vset.pattern.permute.xlu0 0
        %3156 = vperm.xlu0 %3155, %v3150
        %v3157 = vpop.permute.xlu0 %3156
        %3160 = vset.pattern.permute.xlu0 0
        %3161 = vperm.xlu0 %3160, %v3151
        %v3162 = vpop.permute.xlu0 %3161
        %3165 = vset.pattern.permute.xlu0 0
        %3166 = vperm.xlu0 %3165, %v3152
        %v3167 = vpop.permute.xlu0 %3166
        %3170 = vset.pattern.permute.xlu0 0
        %3171 = vperm.xlu0 %3170, %v3153
        %v3172 = vpop.permute.xlu0 %3171
        %v3175 = vsel %vm1163, %v3145, 0
        %v3178 = vsel %vm1163, %v3146, 0
        %v3181 = vsel %vm1163, %v3147, 0
        %v3184 = vsel %vm1163, %v3148, 0
        %3186 = vmatpush.msra.mxu0 0.0
        %3187 = vmatpush.msra.mxu0 0.0
        %3188 = vmatpush.msra.mxu0 0.0
        %3189 = vmatpush.msra.mxu0 0.0
        %3190 = vmatpush.msra.mxu0 0.0
        %3191 = vmatpush.msra.mxu0 0.0
        %3192 = vmatpush.msra.mxu0 0.0
        %3193 = vmatpush.msra.mxu0 0.0
        %3194 = vmatpush.msra.mxu0 0.0
        %3195 = vmatpush.msra.mxu0 0.0
        %3196 = vmatpush.msra.mxu0 0.0
        %3197 = vmatpush.msra.mxu0 0.0
        %3198 = vmatpush.msra.mxu0 %v3143
        %3199 = vmatpush.msra.mxu0 %v3142
        %3200 = vmatpush.msra.mxu0 %v3141
        %3201 = vmatpush.msra.mxu0 %v3140
        %3202 = vmatmul.f32.gmra.mxu0 %v3175
        %v3203 = vpop.f32.mrf.mxu0
        %v3204 = vadd.f32 %v3157, %v3203
        %3205 = vmatmul.f32.gmra.mxu0 %v3178
        %v3206 = vpop.f32.mrf.mxu0
        %v3207 = vadd.f32 %v3162, %v3206
        %3208 = vmatmul.f32.gmra.mxu0 %v3181
        %v3209 = vpop.f32.mrf.mxu0
        %v3210 = vadd.f32 %v3167, %v3209
        %3211 = vmatmul.f32.gmra.mxu0 %v3184
        %v3212 = vpop.f32.mrf.mxu0
        %v3213 = vadd.f32 %v3172, %v3212
        %3214 = vdwg.mxu0
        %v3215 = vmax.f32 %v3204, 0.0
        %v3216 = vmax.f32 %v3207, 0.0
        %v3217 = vmax.f32 %v3210, 0.0
        %v3218 = vmax.f32 %v3213, 0.0
        %v3219 = vadd.f32 %v3065, %v3215
        %v3220 = vadd.f32 %v3066, %v3216
        %v3221 = vadd.f32 %v3067, %v3217
        %v3222 = vadd.f32 %v3068, %v3218
        %s3223 = scalar_lea.vmem %s17, 24
        %v3224 = vld [vmem:[%s3223] sm:$0xff]
        %s3225 = scalar_lea.vmem %s18, 24
        %v3226 = vld [vmem:[%s3225] sm:$0xff]
        %3228 = vset.pattern.permute.xlu0 0
        %3229 = vperm.xlu0 %3228, %v3226
        %v3230 = vpop.permute.xlu0 %3229
        %v3233 = vsel %vm1163, %v3224, 0
        %3235 = vmatpush.msra.mxu0 0.0
        %3236 = vmatpush.msra.mxu0 0.0
        %3237 = vmatpush.msra.mxu0 0.0
        %3238 = vmatpush.msra.mxu0 0.0
        %3239 = vmatpush.msra.mxu0 0.0
        %3240 = vmatpush.msra.mxu0 0.0
        %3241 = vmatpush.msra.mxu0 0.0
        %3242 = vmatpush.msra.mxu0 0.0
        %3243 = vmatpush.msra.mxu0 0.0
        %3244 = vmatpush.msra.mxu0 0.0
        %3245 = vmatpush.msra.mxu0 0.0
        %3246 = vmatpush.msra.mxu0 0.0
        %3247 = vmatpush.msra.mxu0 %v3222
        %3248 = vmatpush.msra.mxu0 %v3221
        %3249 = vmatpush.msra.mxu0 %v3220
        %3250 = vmatpush.msra.mxu0 %v3219
        %3251 = vmatmul.f32.gmra.mxu0 %v3233
        %v3252 = vpop.f32.mrf.mxu0
        %v3253 = vadd.f32 %v3230, %v3252
        %3254 = vdwg.mxu0
        %s3255 = scalar_lea.vmem %s19, 24
        %v3256 = vld [vmem:[%s3255] sm:$0xff]
        %3258 = vset.pattern.permute.xlu0 0
        %3259 = vperm.xlu0 %3258, %v3256
        %v3260 = vpop.permute.xlu0 %3259
        %v3262 = vmul.f32 %v3253, %v3260
        %v3263 = vadd.f32 %v2834, %v3262
        %v3264 = vld [vmem:[%s20] sm:$0xff]
        %3266 = vset.pattern.permute.xlu0 0
        %3267 = vperm.xlu0 %3266, %v3264
        %v3268 = vpop.permute.xlu0 %3267
        %v3270 = vsub.f32 %v3263, %v3268
        %v3271 = vld [vmem:[%s21] sm:$0xff]
        %3273 = vset.pattern.permute.xlu0 0
        %3274 = vperm.xlu0 %3273, %v3271
        %v3275 = vpop.permute.xlu0 %3274
        %v3277 = vmul.f32 %v3270, %v3275
        %3278 = vst [vmem:[%s764] sm:$0xff] %v3277
        %3279 = vst [vmem:[%s770] sm:$0x1] %v2803
        %s3280 = sand.u32 %s521, 1
        %s3281 = scalar_lea.sflag [#allocation4], %s3280
        %s3282 = sand.u32 %s521, 1
        %s3283 = smul.addr %s3282, 8
        %s3284 = scalar_lea.vmem [#allocation3], %s3283
        %s3285 = sand.u32 %s547, 1
        %s3286 = scalar_lea.sflag [#allocation6], %s3285
        %s3287 = sand.u32 %s547, 1
        %s3288 = scalar_lea.vmem [#allocation5], %s3287
        // Predicated region
        $region147: #{tpu_custom_call.1} parent=141 // pred_check
          %p3289 = pneg %p531
        $region148: #{tpu_custom_call.1} parent=141 // pred_check_branch
          %3291 = sbr.rel (%p3289) target = $region150
        $region149: #{tpu_custom_call.1} parent=141 // pred_region
          %3293 = vsyncadd %s3281, 0
          %s3294 = smul.addr %s41, 8
          %s3295 = scalar_lea.hbm %s22, %s3294
          %s3297 = sshll.u32 %s3284, 4
          %s3298 = int_to_ptr.vmem [resolvable:$true] %s3297
          %s3299 = sshll.u32 %s3295, 4
          %s3300 = int_to_ptr.hbm [resolvable:$true] %s3299
          %3302 = dma.vmem_to_hbm [thread:$0]  %s3298, 128, %s3300, %s3281
        $region150: #{tpu_custom_call.1} parent=141 // pred_fallthru
          _
        // Predicated region
        $region151: #{tpu_custom_call.1} parent=141 // pred_check
          %p3303 = pneg %p557
        $region152: #{tpu_custom_call.1} parent=141 // pred_check_branch
          %3305 = sbr.rel (%p3303) target = $region154
        $region153: #{tpu_custom_call.1} parent=141 // pred_region
          %3307 = vsyncadd %s3286, 0
          %s3308 = scalar_lea.hbm %s23, %s41
          %s3310 = sshll.u32 %s3288, 4
          %s3311 = int_to_ptr.vmem [resolvable:$true] %s3310
          %s3312 = sshll.u32 %s3308, 4
          %s3313 = int_to_ptr.hbm [resolvable:$true] %s3312
          %3315 = dma.vmem_to_hbm [thread:$0]  %s3311, 16, %s3313, %s3286
        $region154: #{tpu_custom_call.1} parent=141 // pred_fallthru
          _
      $region142: #{tpu_custom_call.1} parent=5 // pred_fallthru
        _
      %p3316 = scmp.le.s32.totalorder 2, %s36
      // Predicated region
      $region155: #{tpu_custom_call.1} parent=5 // pred_check
        %p3317 = pneg %p3316
      $region156: #{tpu_custom_call.1} parent=5 // pred_check_branch
        %3319 = sbr.rel (%p3317) target = $region158
      $region157: #{tpu_custom_call.1} parent=5 // pred_region
        %s3320 = ssub.s32 %s36, 2
        // Predicated region
        $region159: #{tpu_custom_call.1} parent=157 // pred_check
          %p3321 = pneg %p537
        $region160: #{tpu_custom_call.1} parent=157 // pred_check_branch
          %3323 = sbr.rel (%p3321) target = $region162
        $region161: #{tpu_custom_call.1} parent=157 // pred_region
          %s3324 = sand.u32 %s522, 1
          %s3325 = scalar_lea.sflag [#allocation4], %s3324
          %s3326 = sand.u32 %s522, 1
          %s3327 = smul.addr %s3326, 8
          %s3328 = scalar_lea.vmem [#allocation3], %s3327
          %3330 = dma.done %s3325, 128
        $region162: #{tpu_custom_call.1} parent=157 // pred_fallthru
          _
        // Predicated region
        $region163: #{tpu_custom_call.1} parent=157 // pred_check
          %p3331 = pneg %p563
        $region164: #{tpu_custom_call.1} parent=157 // pred_check_branch
          %3333 = sbr.rel (%p3331) target = $region166
        $region165: #{tpu_custom_call.1} parent=157 // pred_region
          %s3334 = sand.u32 %s548, 1
          %s3335 = scalar_lea.sflag [#allocation6], %s3334
          %s3336 = sand.u32 %s548, 1
          %s3337 = scalar_lea.vmem [#allocation5], %s3336
          %3339 = dma.done %s3335, 16
        $region166: #{tpu_custom_call.1} parent=157 // pred_fallthru
          _
      $region158: #{tpu_custom_call.1} parent=5 // pred_fallthru
        _
    $region6: #{tpu_custom_call.1} parent=1 // loop_footer
      %s40 = sadd.s32 1, %s36
    $region7: #{tpu_custom_call.1} parent=1 // loop_footer_branch
      %35 = sbr.rel target = $region3
    $region8: #{tpu_custom_call.1} parent=1 // loop_exit
      _
    %3340 = vsyncpa [#allocation4], 1
    %s3341 = scalar_lea.sflag [#allocation4], 1
    %3342 = vsyncpa %s3341, 1
    %3343 = vsyncpa [#allocation6], 1
    %s3344 = scalar_lea.sflag [#allocation6], 1
    %3345 = vsyncpa %s3344, 1

</llo_original>
